<compile_context>
chip_gen: v7x
topology: tpu7x:2x2x1
jax: 0.10.0
libtpu: 0.0.40
codegen_flags: <defaults>
</compile_context>

<pallas_src>
import functools

import jax
import jax.numpy as jnp
from jax.experimental import pallas as pl
from jax.experimental.pallas import tpu as pltpu


# ------------------------------ helpers --------------------------------------

def _round_up(x, m):
    return ((x + m - 1) // m) * m


def _pad_gate_cols(w, H, Hp):
    """(..., 4*H) -> (..., 4*Hp): each gate's H cols placed at g*Hp, rest 0."""
    lead = w.shape[:-1]
    w4 = w.reshape(lead + (4, H))
    out = jnp.zeros(lead + (4, Hp), w.dtype).at[..., :H].set(w4)
    return out.reshape(lead + (4 * Hp,))


def _pad_rows(w, n):
    out = jnp.zeros((n,) + w.shape[1:], w.dtype)
    return out.at[: w.shape[0]].set(w)


def _pick_chunk(T, cap=32):
    """Largest divisor of T that is <= cap (timesteps per grid step)."""
    for tc in range(min(T, cap), 0, -1):
        if T % tc == 0:
            return tc
    return T


# ----------------------------- Pallas kernel ---------------------------------

def fused_lstm_kernel(*refs, num_layers):
    """Fused multi-layer LSTM recurrence + final linear/sigmoid.

    Grid axis 0 = time chunk (sequential, 'arbitrary').

    refs (positional, in order):
      gx_ref   : (Tc, B, 4H)  precomputed x @ W_ih0 + (b_ih0+b_hh0), this chunk
      h0_ref   : (L, B, H)    initial hidden states
      c0_ref   : (L, B, H)    initial cell states
      w_hh0    : (H, 4H)      layer-0 recurrent weights (pre-transposed)
      [w_cat_l : (2H, 4H), b_l : (1, 4H)]   for layers 1..L-1 (fused [ih; hh])
      w_out    : (H, O)       output projection (pre-transposed)
      b_out    : (1, O)
      pred_ref : (B, O)       output; written every chunk, last chunk wins
      h_scr, c_scr : VMEM (L, B, H) recurrent state carried across grid steps
    Gate order is PyTorch's i, f, g, o; H here is the lane-padded hidden size.
    """
    gx_ref, h0_ref, c0_ref, w_hh0_ref = refs[:4]
    idx = 4
    w_cat_refs, b_refs = [], []
    for _ in range(num_layers - 1):
        w_cat_refs.append(refs[idx])
        b_refs.append(refs[idx + 1])
        idx += 2
    w_out_ref, b_out_ref = refs[idx], refs[idx + 1]
    pred_ref = refs[idx + 2]
    h_scr, c_scr = refs[idx + 3], refs[idx + 4]

    Tc = gx_ref.shape[0]
    H = h_scr.shape[2]

    @pl.when(pl.program_id(0) == 0)
    def _():
        h_scr[...] = h0_ref[...]
        c_scr[...] = c0_ref[...]

    # Carry state in registers across the (statically unrolled) chunk.
    h = [h_scr[l] for l in range(num_layers)]
    c = [c_scr[l] for l in range(num_layers)]

    def cell(gates, c_prev):
        # One full-width sigmoid over (B, 4H); all slices are 128-lane aligned
        # because H is padded to a multiple of 128.
        sig = jax.nn.sigmoid(gates)
        i_g = sig[:, 0 * H:1 * H]
        f_g = sig[:, 1 * H:2 * H]
        o_g = sig[:, 3 * H:4 * H]
        g_g = jnp.tanh(gates[:, 2 * H:3 * H])
        c_new = f_g * c_prev + i_g * g_g
        h_new = o_g * jnp.tanh(c_new)
        return h_new, c_new

    for t in range(Tc):                              # static unroll over chunk
        # Layer 0: input projection already hoisted into gx.
        gates0 = gx_ref[t] + jnp.dot(h[0], w_hh0_ref[...],
                                     preferred_element_type=jnp.float32)
        h[0], c[0] = cell(gates0, c[0])
        x_t = h[0]
        # Layers >= 1: single fused matmul [x_t, h_prev] @ [W_ih; W_hh].
        for l in range(1, num_layers):
            xin = jnp.concatenate([x_t, h[l]], axis=1)          # (B, 2H)
            gates = (jnp.dot(xin, w_cat_refs[l - 1][...],
                             preferred_element_type=jnp.float32)
                     + b_refs[l - 1][...])
            h[l], c[l] = cell(gates, c[l])
            x_t = h[l]

    for l in range(num_layers):
        h_scr[l] = h[l]
        c_scr[l] = c[l]

    # Fused output head; only the last chunk's write survives in HBM.
    pred_ref[...] = jax.nn.sigmoid(
        jnp.dot(h[num_layers - 1], w_out_ref[...],
                preferred_element_type=jnp.float32) + b_out_ref[...])


# ------------------------------ model wrapper ---------------------------------

class LSTMClassPallas:
    """JAX/Pallas port of the PyTorch LSTMClass forward pass."""

    def __init__(self, input_size, hidden_size, num_layers, output_size,
                 batch_size, key):
        self.input_size = input_size
        self.hidden_size = hidden_size
        self.num_layers = num_layers
        self.output_size = output_size
        self.batch_size = batch_size

        H = hidden_size
        Hp = _round_up(H, 128)          # lane-aligned hidden size
        Op = _round_up(output_size, 128)  # lane-dense output writeback
        self.Hp, self.Op = Hp, Op
        G = 4 * Hp

        bound = 1.0 / float(H) ** 0.5
        keys = jax.random.split(key, num_layers * 4 + 2)

        # Unpadded, pre-transposed params (also used by the pure-JAX reference)
        self.ref_layers = []
        for layer in range(num_layers):
            in_sz = input_size if layer == 0 else H
            k_wih, k_whh, k_bih, k_bhh = keys[layer * 4:layer * 4 + 4]
            w_ih = jax.random.uniform(k_wih, (in_sz, 4 * H), jnp.float32,
                                      -bound, bound)
            w_hh = jax.random.uniform(k_whh, (H, 4 * H), jnp.float32,
                                      -bound, bound)
            b_ih = jax.random.uniform(k_bih, (4 * H,), jnp.float32,
                                      -bound, bound)
            b_hh = jax.random.uniform(k_bhh, (4 * H,), jnp.float32,
                                      -bound, bound)
            self.ref_layers.append((w_ih, w_hh, b_ih + b_hh))

        k_wo, k_bo = keys[-2], keys[-1]
        w_out = jax.random.uniform(k_wo, (H, output_size), jnp.float32,
                                   -bound, bound)
        b_out = jax.random.uniform(k_bo, (output_size,), jnp.float32,
                                   -bound, bound)
        self.ref_out = (w_out, b_out)

        # --- padded / fused kernel-layout parameters (kept f32 for numerics) ---
        w_ih0, w_hh0, b0 = self.ref_layers[0]
        self.k_w_ih0 = _pad_gate_cols(w_ih0, H, Hp)                     # (I, G)
        self.k_b0 = _pad_gate_cols(b0, H, Hp)[None, :]                  # (1, G)
        self.k_w_hh0 = _pad_rows(_pad_gate_cols(w_hh0, H, Hp), Hp)      # (Hp, G)

        self.k_w_cat, self.k_b = [], []
        for layer in range(1, num_layers):
            w_ih, w_hh, b = self.ref_layers[layer]
            w_cat = jnp.concatenate(
                [_pad_rows(_pad_gate_cols(w_ih, H, Hp), Hp),
                 _pad_rows(_pad_gate_cols(w_hh, H, Hp), Hp)], axis=0)   # (2Hp, G)
            self.k_w_cat.append(w_cat)
            self.k_b.append(_pad_gate_cols(b, H, Hp)[None, :])          # (1, G)

        self.k_w_out = (jnp.zeros((Hp, Op), jnp.float32)
                        .at[:H, :output_size].set(w_out))
        self.k_b_out = (jnp.zeros((1, Op), jnp.float32)
                        .at[0, :output_size].set(b_out))

    def __call__(self, x, y, h0, c0):
        """x: (B, T, input_size) batch_first; h0/c0: (num_layers, B, H)."""
        x = jnp.asarray(x, jnp.float32)
        B, T, _ = x.shape
        L, H = self.num_layers, self.hidden_size
        Hp, Op = self.Hp, self.Op
        G = 4 * Hp
        Bp = _round_up(max(B, 8), 8)       # full sublane group
        Tc = _pick_chunk(T)                # timesteps per grid step

        x_p = jnp.zeros((Bp, T, self.input_size), jnp.float32).at[:B].set(x)
        h0_p = (jnp.zeros((L, Bp, Hp), jnp.float32)
                .at[:, :B, :H].set(jnp.asarray(h0, jnp.float32)))
        c0_p = (jnp.zeros((L, Bp, Hp), jnp.float32)
                .at[:, :B, :H].set(jnp.asarray(c0, jnp.float32)))

        # Hoisted layer-0 input projection: one big GEMM over ALL timesteps,
        # emitted time-major so the kernel indexes gx[t] without relayout.
        gx = jnp.einsum('bti,ig->tbg', x_p, self.k_w_ih0,
                        precision=jax.lax.Precision.HIGHEST) + self.k_b0

        in_specs = [
            pl.BlockSpec((Tc, Bp, G), lambda ci: (ci, 0, 0)),
            pl.BlockSpec((L, Bp, Hp), lambda ci: (0, 0, 0)),
            pl.BlockSpec((L, Bp, Hp), lambda ci: (0, 0, 0)),
            pl.BlockSpec((Hp, G), lambda ci: (0, 0)),
        ]
        args = [gx, h0_p, c0_p, self.k_w_hh0]
        for layer in range(1, L):
            in_specs += [pl.BlockSpec((2 * Hp, G), lambda ci: (0, 0)),
                         pl.BlockSpec((1, G), lambda ci: (0, 0))]
            args += [self.k_w_cat[layer - 1], self.k_b[layer - 1]]
        in_specs += [pl.BlockSpec((Hp, Op), lambda ci: (0, 0)),
                     pl.BlockSpec((1, Op), lambda ci: (0, 0))]
        args += [self.k_w_out, self.k_b_out]

        pred_p = pl.pallas_call(
            functools.partial(fused_lstm_kernel, num_layers=L),
            out_shape=jax.ShapeDtypeStruct((Bp, Op), jnp.float32),
            grid_spec=pltpu.PrefetchScalarGridSpec(
                num_scalar_prefetch=0,
                grid=(T // Tc,),
                in_specs=in_specs,
                out_specs=pl.BlockSpec((Bp, Op), lambda ci: (0, 0)),
                scratch_shapes=[pltpu.VMEM((L, Bp, Hp), jnp.float32),
                                pltpu.VMEM((L, Bp, Hp), jnp.float32)]),
            compiler_params=pltpu.CompilerParams(
                dimension_semantics=("arbitrary",)),   # time recurrence
        )(*args)

        pred = pred_p[:B, :self.output_size]
        # torch.FloatTensor(y) -> float32 cast of y
        return pred, jnp.asarray(y, dtype=jnp.float32)

    # Pure-JAX (non-Pallas) reference with identical weights, for checking.
    def reference_forward(self, x, h0, c0):
        hp = jax.lax.Precision.HIGHEST
        x = jnp.asarray(x, jnp.float32)
        B, T, _ = x.shape
        H = self.hidden_size
        h = [jnp.asarray(h0[l], jnp.float32) for l in range(self.num_layers)]
        c = [jnp.asarray(c0[l], jnp.float32) for l in range(self.num_layers)]
        last = None
        for t in range(T):
            inp = x[:, t, :]
            for l in range(self.num_layers):
                w_ih, w_hh, b = self.ref_layers[l]
                gates = (jnp.dot(inp, w_ih, precision=hp)
                         + jnp.dot(h[l], w_hh, precision=hp) + b)
                i = jax.nn.sigmoid(gates[:, :H])
                f = jax.nn.sigmoid(gates[:, H:2 * H])
                g = jnp.tanh(gates[:, 2 * H:3 * H])
                o = jax.nn.sigmoid(gates[:, 3 * H:])
                c[l] = f * c[l] + i * g
                h[l] = o * jnp.tanh(c[l])
                inp = h[l]
            last = inp
        w_out, b_out = self.ref_out
        return jax.nn.sigmoid(jnp.dot(last, w_out, precision=hp) + b_out)


# ------------------------------ Demo / test -----------------------------------

if __name__ == "__main__":
    batch_size = 2
    seq_len = 8
    input_size = 16
    hidden_size = 32
    num_layers = 2
    output_size = 4

    key = jax.random.PRNGKey(0)
    k_model, k_x, k_y, k_h0, k_c0 = jax.random.split(key, 5)

    model = LSTMClassPallas(input_size, hidden_size, num_layers, output_size,
                            batch_size, k_model)

    x = jax.random.normal(k_x, (batch_size, seq_len, input_size), jnp.float32)
    y = jax.random.normal(k_y, (batch_size, output_size), jnp.float32)
    h0 = jax.random.normal(k_h0, (num_layers, batch_size, hidden_size),
                           jnp.float32)
    c0 = jax.random.normal(k_c0, (num_layers, batch_size, hidden_size),
                           jnp.float32)

    pred, y_out = model(x, y, h0, c0)
    jax.block_until_ready(pred)
    jax.block_until_ready(y_out)

    assert pred.shape == (batch_size, output_size)
    assert y_out.shape == (batch_size, output_size)
    assert bool(jnp.all(jnp.isfinite(pred)))

    # Check against a pure-JAX LSTM reference using the same weights.
    ref = model.reference_forward(x, h0, c0)
    max_err = float(jnp.max(jnp.abs(pred - ref)))
    assert max_err < 2e-3, f"mismatch vs reference: max_err={max_err}"

    print("KERNEL_OK")
</pallas_src>

<mosaic_0001>
module attributes {stable_mosaic.version = 11 : i64} {
  func.func @fused_lstm_kernel(%arg0: i32, %arg1: memref<8x8x512xf32, #tpu.memory_space<vmem>>, %arg2: memref<2x8x128xf32, #tpu.memory_space<vmem>>, %arg3: memref<2x8x128xf32, #tpu.memory_space<vmem>>, %arg4: memref<128x512xf32, #tpu.memory_space<vmem>>, %arg5: memref<256x512xf32, #tpu.memory_space<vmem>>, %arg6: memref<1x512xf32, #tpu.memory_space<vmem>>, %arg7: memref<128x128xf32, #tpu.memory_space<vmem>>, %arg8: memref<1x128xf32, #tpu.memory_space<vmem>>, %arg9: memref<8x128xf32, #tpu.memory_space<vmem>>, %arg10: memref<2x8x128xf32, #tpu.memory_space<vmem>>, %arg11: memref<2x8x128xf32, #tpu.memory_space<vmem>>) attributes {dimension_semantics = [#tpu.dimension_semantics<arbitrary>], iteration_bounds = array<i64: 1>, scalar_prefetch = 0 : i64, scratch_operands = 2 : i64, tpu.core_type = #tpu.core_type<tc>, window_params = [{transform_indices = @transform_0, window_bounds = array<i64: 8, 8, 512>}, {pipeline_mode = #tpu.pipeline_mode<synchronous>, transform_indices = @transform_1, window_bounds = array<i64: 2, 8, 128>}, {pipeline_mode = #tpu.pipeline_mode<synchronous>, transform_indices = @transform_2, window_bounds = array<i64: 2, 8, 128>}, {pipeline_mode = #tpu.pipeline_mode<synchronous>, transform_indices = @transform_3, window_bounds = array<i64: 128, 512>}, {pipeline_mode = #tpu.pipeline_mode<synchronous>, transform_indices = @transform_4, window_bounds = array<i64: 256, 512>}, {pipeline_mode = #tpu.pipeline_mode<synchronous>, transform_indices = @transform_5, window_bounds = array<i64: 1, 512>}, {pipeline_mode = #tpu.pipeline_mode<synchronous>, transform_indices = @transform_6, window_bounds = array<i64: 128, 128>}, {pipeline_mode = #tpu.pipeline_mode<synchronous>, transform_indices = @transform_7, window_bounds = array<i64: 1, 128>}, {pipeline_mode = #tpu.pipeline_mode<synchronous>, transform_indices = @transform_8, window_bounds = array<i64: 8, 128>}]} {
    %c0_i32 = arith.constant 0 : i32
    %0 = arith.cmpi eq, %arg0, %c0_i32 : i32
    %1 = arith.extui %0 : i1 to i32
    %c0_i32_0 = arith.constant 0 : i32
    %2 = arith.cmpi ne, %1, %c0_i32_0 : i32
    scf.if %2 {
      %c0_128 = arith.constant 0 : index
      %c0_129 = arith.constant 0 : index
      %c0_130 = arith.constant 0 : index
      %362 = vector.load %arg2[%c0_128, %c0_129, %c0_130] : memref<2x8x128xf32, #tpu.memory_space<vmem>>, vector<2x8x128xf32>
      %c0_131 = arith.constant 0 : index
      %c0_132 = arith.constant 0 : index
      %c0_133 = arith.constant 0 : index
      %363 = vector.load %arg10[%c0_131, %c0_132, %c0_133] : memref<2x8x128xf32, #tpu.memory_space<vmem>>, vector<2x8x128xf32>
      tpu.vector_store %arg10[%c0_131, %c0_132, %c0_133], %362 {strides = array<i32>} : memref<2x8x128xf32, #tpu.memory_space<vmem>>, vector<2x8x128xf32>,
      %c0_134 = arith.constant 0 : index
      %c0_135 = arith.constant 0 : index
      %c0_136 = arith.constant 0 : index
      %364 = vector.load %arg3[%c0_134, %c0_135, %c0_136] : memref<2x8x128xf32, #tpu.memory_space<vmem>>, vector<2x8x128xf32>
      %c0_137 = arith.constant 0 : index
      %c0_138 = arith.constant 0 : index
      %c0_139 = arith.constant 0 : index
      %365 = vector.load %arg11[%c0_137, %c0_138, %c0_139] : memref<2x8x128xf32, #tpu.memory_space<vmem>>, vector<2x8x128xf32>
      tpu.vector_store %arg11[%c0_137, %c0_138, %c0_139], %364 {strides = array<i32>} : memref<2x8x128xf32, #tpu.memory_space<vmem>>, vector<2x8x128xf32>,
    } else {
    }
    %c0 = arith.constant 0 : index
    %c0_1 = arith.constant 0 : index
    %c0_2 = arith.constant 0 : index
    %3 = vector.load %arg10[%c0, %c0_1, %c0_2] : memref<2x8x128xf32, #tpu.memory_space<vmem>>, vector<1x8x128xf32>
    %4 = vector.shape_cast %3 : vector<1x8x128xf32> to vector<8x128xf32>
    %c1 = arith.constant 1 : index
    %c0_3 = arith.constant 0 : index
    %c0_4 = arith.constant 0 : index
    %5 = vector.load %arg10[%c1, %c0_3, %c0_4] : memref<2x8x128xf32, #tpu.memory_space<vmem>>, vector<1x8x128xf32>
    %6 = vector.shape_cast %5 : vector<1x8x128xf32> to vector<8x128xf32>
    %c0_5 = arith.constant 0 : index
    %c0_6 = arith.constant 0 : index
    %c0_7 = arith.constant 0 : index
    %7 = vector.load %arg11[%c0_5, %c0_6, %c0_7] : memref<2x8x128xf32, #tpu.memory_space<vmem>>, vector<1x8x128xf32>
    %8 = vector.shape_cast %7 : vector<1x8x128xf32> to vector<8x128xf32>
    %c1_8 = arith.constant 1 : index
    %c0_9 = arith.constant 0 : index
    %c0_10 = arith.constant 0 : index
    %9 = vector.load %arg11[%c1_8, %c0_9, %c0_10] : memref<2x8x128xf32, #tpu.memory_space<vmem>>, vector<1x8x128xf32>
    %10 = vector.shape_cast %9 : vector<1x8x128xf32> to vector<8x128xf32>
    %c0_11 = arith.constant 0 : index
    %c0_12 = arith.constant 0 : index
    %c0_13 = arith.constant 0 : index
    %11 = vector.load %arg1[%c0_11, %c0_12, %c0_13] : memref<8x8x512xf32, #tpu.memory_space<vmem>>, vector<1x8x512xf32>
    %12 = vector.shape_cast %11 : vector<1x8x512xf32> to vector<8x512xf32>
    %c0_14 = arith.constant 0 : index
    %c0_15 = arith.constant 0 : index
    %13 = vector.load %arg4[%c0_14, %c0_15] : memref<128x512xf32, #tpu.memory_space<vmem>>, vector<128x512xf32>
    %cst = arith.constant dense<0.000000e+00> : vector<8x512xf32>
    %14 = tpu.matmul %4, %13, %cst {dimension_numbers = #tpu.dot_dimension_numbers<[1], [0], [0], [1], [0, 0, 1, 1], [], []>} : vector<8x128xf32>, vector<128x512xf32>, vector<8x512xf32> -> vector<8x512xf32>
    %15 = arith.addf %12, %14 : vector<8x512xf32>
    %16 = arith.negf %15 : vector<8x512xf32>
    %17 = math.exp %16 : vector<8x512xf32>
    %cst_16 = arith.constant 1.000000e+00 : f32
    %18 = vector.broadcast %cst_16 : f32 to vector<8x512xf32>
    %19 = arith.addf %18, %17 : vector<8x512xf32>
    %20 = arith.divf %18, %19 : vector<8x512xf32>
    %21 = vector.extract_strided_slice %20 {offsets = [0, 0], sizes = [8, 128], strides = [1, 1]} : vector<8x512xf32> to vector<8x128xf32>
    %22 = vector.extract_strided_slice %20 {offsets = [0, 128], sizes = [8, 128], strides = [1, 1]} : vector<8x512xf32> to vector<8x128xf32>
    %23 = vector.extract_strided_slice %20 {offsets = [0, 384], sizes = [8, 128], strides = [1, 1]} : vector<8x512xf32> to vector<8x128xf32>
    %24 = vector.extract_strided_slice %15 {offsets = [0, 256], sizes = [8, 128], strides = [1, 1]} : vector<8x512xf32> to vector<8x128xf32>
    %25 = math.tanh %24 : vector<8x128xf32>
    %26 = arith.mulf %22, %8 : vector<8x128xf32>
    %27 = arith.mulf %21, %25 : vector<8x128xf32>
    %28 = arith.addf %26, %27 : vector<8x128xf32>
    %29 = math.tanh %28 : vector<8x128xf32>
    %30 = arith.mulf %23, %29 : vector<8x128xf32>
    %31 = tpu.concatenate %30, %6 in 1 : vector<8x128xf32>, vector<8x128xf32> -> vector<8x256xf32>
    %c0_17 = arith.constant 0 : index
    %c0_18 = arith.constant 0 : index
    %32 = vector.load %arg5[%c0_17, %c0_18] : memref<256x512xf32, #tpu.memory_space<vmem>>, vector<256x512xf32>
    %cst_19 = arith.constant dense<0.000000e+00> : vector<8x512xf32>
    %33 = tpu.matmul %31, %32, %cst_19 {dimension_numbers = #tpu.dot_dimension_numbers<[1], [0], [0], [1], [0, 0, 1, 1], [], []>} : vector<8x256xf32>, vector<256x512xf32>, vector<8x512xf32> -> vector<8x512xf32>
    %c0_20 = arith.constant 0 : index
    %c0_21 = arith.constant 0 : index
    %34 = vector.load %arg6[%c0_20, %c0_21] : memref<1x512xf32, #tpu.memory_space<vmem>>, vector<1x512xf32>
    %35 = vector.broadcast %34 : vector<1x512xf32> to vector<8x512xf32>
    %36 = arith.addf %33, %35 : vector<8x512xf32>
    %37 = arith.negf %36 : vector<8x512xf32>
    %38 = math.exp %37 : vector<8x512xf32>
    %cst_22 = arith.constant 1.000000e+00 : f32
    %39 = vector.broadcast %cst_22 : f32 to vector<8x512xf32>
    %40 = arith.addf %39, %38 : vector<8x512xf32>
    %41 = arith.divf %39, %40 : vector<8x512xf32>
    %42 = vector.extract_strided_slice %41 {offsets = [0, 0], sizes = [8, 128], strides = [1, 1]} : vector<8x512xf32> to vector<8x128xf32>
    %43 = vector.extract_strided_slice %41 {offsets = [0, 128], sizes = [8, 128], strides = [1, 1]} : vector<8x512xf32> to vector<8x128xf32>
    %44 = vector.extract_strided_slice %41 {offsets = [0, 384], sizes = [8, 128], strides = [1, 1]} : vector<8x512xf32> to vector<8x128xf32>
    %45 = vector.extract_strided_slice %36 {offsets = [0, 256], sizes = [8, 128], strides = [1, 1]} : vector<8x512xf32> to vector<8x128xf32>
    %46 = math.tanh %45 : vector<8x128xf32>
    %47 = arith.mulf %43, %10 : vector<8x128xf32>
    %48 = arith.mulf %42, %46 : vector<8x128xf32>
    %49 = arith.addf %47, %48 : vector<8x128xf32>
    %50 = math.tanh %49 : vector<8x128xf32>
    %51 = arith.mulf %44, %50 : vector<8x128xf32>
    %c1_23 = arith.constant 1 : index
    %c0_24 = arith.constant 0 : index
    %c0_25 = arith.constant 0 : index
    %52 = vector.load %arg1[%c1_23, %c0_24, %c0_25] : memref<8x8x512xf32, #tpu.memory_space<vmem>>, vector<1x8x512xf32>
    %53 = vector.shape_cast %52 : vector<1x8x512xf32> to vector<8x512xf32>
    %c0_26 = arith.constant 0 : index
    %c0_27 = arith.constant 0 : index
    %54 = vector.load %arg4[%c0_26, %c0_27] : memref<128x512xf32, #tpu.memory_space<vmem>>, vector<128x512xf32>
    %cst_28 = arith.constant dense<0.000000e+00> : vector<8x512xf32>
    %55 = tpu.matmul %30, %54, %cst_28 {dimension_numbers = #tpu.dot_dimension_numbers<[1], [0], [0], [1], [0, 0, 1, 1], [], []>} : vector<8x128xf32>, vector<128x512xf32>, vector<8x512xf32> -> vector<8x512xf32>
    %56 = arith.addf %53, %55 : vector<8x512xf32>
    %57 = arith.negf %56 : vector<8x512xf32>
    %58 = math.exp %57 : vector<8x512xf32>
    %cst_29 = arith.constant 1.000000e+00 : f32
    %59 = vector.broadcast %cst_29 : f32 to vector<8x512xf32>
    %60 = arith.addf %59, %58 : vector<8x512xf32>
    %61 = arith.divf %59, %60 : vector<8x512xf32>
    %62 = vector.extract_strided_slice %61 {offsets = [0, 0], sizes = [8, 128], strides = [1, 1]} : vector<8x512xf32> to vector<8x128xf32>
    %63 = vector.extract_strided_slice %61 {offsets = [0, 128], sizes = [8, 128], strides = [1, 1]} : vector<8x512xf32> to vector<8x128xf32>
    %64 = vector.extract_strided_slice %61 {offsets = [0, 384], sizes = [8, 128], strides = [1, 1]} : vector<8x512xf32> to vector<8x128xf32>
    %65 = vector.extract_strided_slice %56 {offsets = [0, 256], sizes = [8, 128], strides = [1, 1]} : vector<8x512xf32> to vector<8x128xf32>
    %66 = math.tanh %65 : vector<8x128xf32>
    %67 = arith.mulf %63, %28 : vector<8x128xf32>
    %68 = arith.mulf %62, %66 : vector<8x128xf32>
    %69 = arith.addf %67, %68 : vector<8x128xf32>
    %70 = math.tanh %69 : vector<8x128xf32>
    %71 = arith.mulf %64, %70 : vector<8x128xf32>
    %72 = tpu.concatenate %71, %51 in 1 : vector<8x128xf32>, vector<8x128xf32> -> vector<8x256xf32>
    %c0_30 = arith.constant 0 : index
    %c0_31 = arith.constant 0 : index
    %73 = vector.load %arg5[%c0_30, %c0_31] : memref<256x512xf32, #tpu.memory_space<vmem>>, vector<256x512xf32>
    %cst_32 = arith.constant dense<0.000000e+00> : vector<8x512xf32>
    %74 = tpu.matmul %72, %73, %cst_32 {dimension_numbers = #tpu.dot_dimension_numbers<[1], [0], [0], [1], [0, 0, 1, 1], [], []>} : vector<8x256xf32>, vector<256x512xf32>, vector<8x512xf32> -> vector<8x512xf32>
    %c0_33 = arith.constant 0 : index
    %c0_34 = arith.constant 0 : index
    %75 = vector.load %arg6[%c0_33, %c0_34] : memref<1x512xf32, #tpu.memory_space<vmem>>, vector<1x512xf32>
    %76 = vector.broadcast %75 : vector<1x512xf32> to vector<8x512xf32>
    %77 = arith.addf %74, %76 : vector<8x512xf32>
    %78 = arith.negf %77 : vector<8x512xf32>
    %79 = math.exp %78 : vector<8x512xf32>
    %cst_35 = arith.constant 1.000000e+00 : f32
    %80 = vector.broadcast %cst_35 : f32 to vector<8x512xf32>
    %81 = arith.addf %80, %79 : vector<8x512xf32>
    %82 = arith.divf %80, %81 : vector<8x512xf32>
    %83 = vector.extract_strided_slice %82 {offsets = [0, 0], sizes = [8, 128], strides = [1, 1]} : vector<8x512xf32> to vector<8x128xf32>
    %84 = vector.extract_strided_slice %82 {offsets = [0, 128], sizes = [8, 128], strides = [1, 1]} : vector<8x512xf32> to vector<8x128xf32>
    %85 = vector.extract_strided_slice %82 {offsets = [0, 384], sizes = [8, 128], strides = [1, 1]} : vector<8x512xf32> to vector<8x128xf32>
    %86 = vector.extract_strided_slice %77 {offsets = [0, 256], sizes = [8, 128], strides = [1, 1]} : vector<8x512xf32> to vector<8x128xf32>
    %87 = math.tanh %86 : vector<8x128xf32>
    %88 = arith.mulf %84, %49 : vector<8x128xf32>
    %89 = arith.mulf %83, %87 : vector<8x128xf32>
    %90 = arith.addf %88, %89 : vector<8x128xf32>
    %91 = math.tanh %90 : vector<8x128xf32>
    %92 = arith.mulf %85, %91 : vector<8x128xf32>
    %c2 = arith.constant 2 : index
    %c0_36 = arith.constant 0 : index
    %c0_37 = arith.constant 0 : index
    %93 = vector.load %arg1[%c2, %c0_36, %c0_37] : memref<8x8x512xf32, #tpu.memory_space<vmem>>, vector<1x8x512xf32>
    %94 = vector.shape_cast %93 : vector<1x8x512xf32> to vector<8x512xf32>
    %c0_38 = arith.constant 0 : index
    %c0_39 = arith.constant 0 : index
    %95 = vector.load %arg4[%c0_38, %c0_39] : memref<128x512xf32, #tpu.memory_space<vmem>>, vector<128x512xf32>
    %cst_40 = arith.constant dense<0.000000e+00> : vector<8x512xf32>
    %96 = tpu.matmul %71, %95, %cst_40 {dimension_numbers = #tpu.dot_dimension_numbers<[1], [0], [0], [1], [0, 0, 1, 1], [], []>} : vector<8x128xf32>, vector<128x512xf32>, vector<8x512xf32> -> vector<8x512xf32>
    %97 = arith.addf %94, %96 : vector<8x512xf32>
    %98 = arith.negf %97 : vector<8x512xf32>
    %99 = math.exp %98 : vector<8x512xf32>
    %cst_41 = arith.constant 1.000000e+00 : f32
    %100 = vector.broadcast %cst_41 : f32 to vector<8x512xf32>
    %101 = arith.addf %100, %99 : vector<8x512xf32>
    %102 = arith.divf %100, %101 : vector<8x512xf32>
    %103 = vector.extract_strided_slice %102 {offsets = [0, 0], sizes = [8, 128], strides = [1, 1]} : vector<8x512xf32> to vector<8x128xf32>
    %104 = vector.extract_strided_slice %102 {offsets = [0, 128], sizes = [8, 128], strides = [1, 1]} : vector<8x512xf32> to vector<8x128xf32>
    %105 = vector.extract_strided_slice %102 {offsets = [0, 384], sizes = [8, 128], strides = [1, 1]} : vector<8x512xf32> to vector<8x128xf32>
    %106 = vector.extract_strided_slice %97 {offsets = [0, 256], sizes = [8, 128], strides = [1, 1]} : vector<8x512xf32> to vector<8x128xf32>
    %107 = math.tanh %106 : vector<8x128xf32>
    %108 = arith.mulf %104, %69 : vector<8x128xf32>
    %109 = arith.mulf %103, %107 : vector<8x128xf32>
    %110 = arith.addf %108, %109 : vector<8x128xf32>
    %111 = math.tanh %110 : vector<8x128xf32>
    %112 = arith.mulf %105, %111 : vector<8x128xf32>
    %113 = tpu.concatenate %112, %92 in 1 : vector<8x128xf32>, vector<8x128xf32> -> vector<8x256xf32>
    %c0_42 = arith.constant 0 : index
    %c0_43 = arith.constant 0 : index
    %114 = vector.load %arg5[%c0_42, %c0_43] : memref<256x512xf32, #tpu.memory_space<vmem>>, vector<256x512xf32>
    %cst_44 = arith.constant dense<0.000000e+00> : vector<8x512xf32>
    %115 = tpu.matmul %113, %114, %cst_44 {dimension_numbers = #tpu.dot_dimension_numbers<[1], [0], [0], [1], [0, 0, 1, 1], [], []>} : vector<8x256xf32>, vector<256x512xf32>, vector<8x512xf32> -> vector<8x512xf32>
    %c0_45 = arith.constant 0 : index
    %c0_46 = arith.constant 0 : index
    %116 = vector.load %arg6[%c0_45, %c0_46] : memref<1x512xf32, #tpu.memory_space<vmem>>, vector<1x512xf32>
    %117 = vector.broadcast %116 : vector<1x512xf32> to vector<8x512xf32>
    %118 = arith.addf %115, %117 : vector<8x512xf32>
    %119 = arith.negf %118 : vector<8x512xf32>
    %120 = math.exp %119 : vector<8x512xf32>
    %cst_47 = arith.constant 1.000000e+00 : f32
    %121 = vector.broadcast %cst_47 : f32 to vector<8x512xf32>
    %122 = arith.addf %121, %120 : vector<8x512xf32>
    %123 = arith.divf %121, %122 : vector<8x512xf32>
    %124 = vector.extract_strided_slice %123 {offsets = [0, 0], sizes = [8, 128], strides = [1, 1]} : vector<8x512xf32> to vector<8x128xf32>
    %125 = vector.extract_strided_slice %123 {offsets = [0, 128], sizes = [8, 128], strides = [1, 1]} : vector<8x512xf32> to vector<8x128xf32>
    %126 = vector.extract_strided_slice %123 {offsets = [0, 384], sizes = [8, 128], strides = [1, 1]} : vector<8x512xf32> to vector<8x128xf32>
    %127 = vector.extract_strided_slice %118 {offsets = [0, 256], sizes = [8, 128], strides = [1, 1]} : vector<8x512xf32> to vector<8x128xf32>
    %128 = math.tanh %127 : vector<8x128xf32>
    %129 = arith.mulf %125, %90 : vector<8x128xf32>
    %130 = arith.mulf %124, %128 : vector<8x128xf32>
    %131 = arith.addf %129, %130 : vector<8x128xf32>
    %132 = math.tanh %131 : vector<8x128xf32>
    %133 = arith.mulf %126, %132 : vector<8x128xf32>
    %c3 = arith.constant 3 : index
    %c0_48 = arith.constant 0 : index
    %c0_49 = arith.constant 0 : index
    %134 = vector.load %arg1[%c3, %c0_48, %c0_49] : memref<8x8x512xf32, #tpu.memory_space<vmem>>, vector<1x8x512xf32>
    %135 = vector.shape_cast %134 : vector<1x8x512xf32> to vector<8x512xf32>
    %c0_50 = arith.constant 0 : index
    %c0_51 = arith.constant 0 : index
    %136 = vector.load %arg4[%c0_50, %c0_51] : memref<128x512xf32, #tpu.memory_space<vmem>>, vector<128x512xf32>
    %cst_52 = arith.constant dense<0.000000e+00> : vector<8x512xf32>
    %137 = tpu.matmul %112, %136, %cst_52 {dimension_numbers = #tpu.dot_dimension_numbers<[1], [0], [0], [1], [0, 0, 1, 1], [], []>} : vector<8x128xf32>, vector<128x512xf32>, vector<8x512xf32> -> vector<8x512xf32>
    %138 = arith.addf %135, %137 : vector<8x512xf32>
    %139 = arith.negf %138 : vector<8x512xf32>
    %140 = math.exp %139 : vector<8x512xf32>
    %cst_53 = arith.constant 1.000000e+00 : f32
    %141 = vector.broadcast %cst_53 : f32 to vector<8x512xf32>
    %142 = arith.addf %141, %140 : vector<8x512xf32>
    %143 = arith.divf %141, %142 : vector<8x512xf32>
    %144 = vector.extract_strided_slice %143 {offsets = [0, 0], sizes = [8, 128], strides = [1, 1]} : vector<8x512xf32> to vector<8x128xf32>
    %145 = vector.extract_strided_slice %143 {offsets = [0, 128], sizes = [8, 128], strides = [1, 1]} : vector<8x512xf32> to vector<8x128xf32>
    %146 = vector.extract_strided_slice %143 {offsets = [0, 384], sizes = [8, 128], strides = [1, 1]} : vector<8x512xf32> to vector<8x128xf32>
    %147 = vector.extract_strided_slice %138 {offsets = [0, 256], sizes = [8, 128], strides = [1, 1]} : vector<8x512xf32> to vector<8x128xf32>
    %148 = math.tanh %147 : vector<8x128xf32>
    %149 = arith.mulf %145, %110 : vector<8x128xf32>
    %150 = arith.mulf %144, %148 : vector<8x128xf32>
    %151 = arith.addf %149, %150 : vector<8x128xf32>
    %152 = math.tanh %151 : vector<8x128xf32>
    %153 = arith.mulf %146, %152 : vector<8x128xf32>
    %154 = tpu.concatenate %153, %133 in 1 : vector<8x128xf32>, vector<8x128xf32> -> vector<8x256xf32>
    %c0_54 = arith.constant 0 : index
    %c0_55 = arith.constant 0 : index
    %155 = vector.load %arg5[%c0_54, %c0_55] : memref<256x512xf32, #tpu.memory_space<vmem>>, vector<256x512xf32>
    %cst_56 = arith.constant dense<0.000000e+00> : vector<8x512xf32>
    %156 = tpu.matmul %154, %155, %cst_56 {dimension_numbers = #tpu.dot_dimension_numbers<[1], [0], [0], [1], [0, 0, 1, 1], [], []>} : vector<8x256xf32>, vector<256x512xf32>, vector<8x512xf32> -> vector<8x512xf32>
    %c0_57 = arith.constant 0 : index
    %c0_58 = arith.constant 0 : index
    %157 = vector.load %arg6[%c0_57, %c0_58] : memref<1x512xf32, #tpu.memory_space<vmem>>, vector<1x512xf32>
    %158 = vector.broadcast %157 : vector<1x512xf32> to vector<8x512xf32>
    %159 = arith.addf %156, %158 : vector<8x512xf32>
    %160 = arith.negf %159 : vector<8x512xf32>
    %161 = math.exp %160 : vector<8x512xf32>
    %cst_59 = arith.constant 1.000000e+00 : f32
    %162 = vector.broadcast %cst_59 : f32 to vector<8x512xf32>
    %163 = arith.addf %162, %161 : vector<8x512xf32>
    %164 = arith.divf %162, %163 : vector<8x512xf32>
    %165 = vector.extract_strided_slice %164 {offsets = [0, 0], sizes = [8, 128], strides = [1, 1]} : vector<8x512xf32> to vector<8x128xf32>
    %166 = vector.extract_strided_slice %164 {offsets = [0, 128], sizes = [8, 128], strides = [1, 1]} : vector<8x512xf32> to vector<8x128xf32>
    %167 = vector.extract_strided_slice %164 {offsets = [0, 384], sizes = [8, 128], strides = [1, 1]} : vector<8x512xf32> to vector<8x128xf32>
    %168 = vector.extract_strided_slice %159 {offsets = [0, 256], sizes = [8, 128], strides = [1, 1]} : vector<8x512xf32> to vector<8x128xf32>
    %169 = math.tanh %168 : vector<8x128xf32>
    %170 = arith.mulf %166, %131 : vector<8x128xf32>
    %171 = arith.mulf %165, %169 : vector<8x128xf32>
    %172 = arith.addf %170, %171 : vector<8x128xf32>
    %173 = math.tanh %172 : vector<8x128xf32>
    %174 = arith.mulf %167, %173 : vector<8x128xf32>
    %c4 = arith.constant 4 : index
    %c0_60 = arith.constant 0 : index
    %c0_61 = arith.constant 0 : index
    %175 = vector.load %arg1[%c4, %c0_60, %c0_61] : memref<8x8x512xf32, #tpu.memory_space<vmem>>, vector<1x8x512xf32>
    %176 = vector.shape_cast %175 : vector<1x8x512xf32> to vector<8x512xf32>
    %c0_62 = arith.constant 0 : index
    %c0_63 = arith.constant 0 : index
    %177 = vector.load %arg4[%c0_62, %c0_63] : memref<128x512xf32, #tpu.memory_space<vmem>>, vector<128x512xf32>
    %cst_64 = arith.constant dense<0.000000e+00> : vector<8x512xf32>
    %178 = tpu.matmul %153, %177, %cst_64 {dimension_numbers = #tpu.dot_dimension_numbers<[1], [0], [0], [1], [0, 0, 1, 1], [], []>} : vector<8x128xf32>, vector<128x512xf32>, vector<8x512xf32> -> vector<8x512xf32>
    %179 = arith.addf %176, %178 : vector<8x512xf32>
    %180 = arith.negf %179 : vector<8x512xf32>
    %181 = math.exp %180 : vector<8x512xf32>
    %cst_65 = arith.constant 1.000000e+00 : f32
    %182 = vector.broadcast %cst_65 : f32 to vector<8x512xf32>
    %183 = arith.addf %182, %181 : vector<8x512xf32>
    %184 = arith.divf %182, %183 : vector<8x512xf32>
    %185 = vector.extract_strided_slice %184 {offsets = [0, 0], sizes = [8, 128], strides = [1, 1]} : vector<8x512xf32> to vector<8x128xf32>
    %186 = vector.extract_strided_slice %184 {offsets = [0, 128], sizes = [8, 128], strides = [1, 1]} : vector<8x512xf32> to vector<8x128xf32>
    %187 = vector.extract_strided_slice %184 {offsets = [0, 384], sizes = [8, 128], strides = [1, 1]} : vector<8x512xf32> to vector<8x128xf32>
    %188 = vector.extract_strided_slice %179 {offsets = [0, 256], sizes = [8, 128], strides = [1, 1]} : vector<8x512xf32> to vector<8x128xf32>
    %189 = math.tanh %188 : vector<8x128xf32>
    %190 = arith.mulf %186, %151 : vector<8x128xf32>
    %191 = arith.mulf %185, %189 : vector<8x128xf32>
    %192 = arith.addf %190, %191 : vector<8x128xf32>
    %193 = math.tanh %192 : vector<8x128xf32>
    %194 = arith.mulf %187, %193 : vector<8x128xf32>
    %195 = tpu.concatenate %194, %174 in 1 : vector<8x128xf32>, vector<8x128xf32> -> vector<8x256xf32>
    %c0_66 = arith.constant 0 : index
    %c0_67 = arith.constant 0 : index
    %196 = vector.load %arg5[%c0_66, %c0_67] : memref<256x512xf32, #tpu.memory_space<vmem>>, vector<256x512xf32>
    %cst_68 = arith.constant dense<0.000000e+00> : vector<8x512xf32>
    %197 = tpu.matmul %195, %196, %cst_68 {dimension_numbers = #tpu.dot_dimension_numbers<[1], [0], [0], [1], [0, 0, 1, 1], [], []>} : vector<8x256xf32>, vector<256x512xf32>, vector<8x512xf32> -> vector<8x512xf32>
    %c0_69 = arith.constant 0 : index
    %c0_70 = arith.constant 0 : index
    %198 = vector.load %arg6[%c0_69, %c0_70] : memref<1x512xf32, #tpu.memory_space<vmem>>, vector<1x512xf32>
    %199 = vector.broadcast %198 : vector<1x512xf32> to vector<8x512xf32>
    %200 = arith.addf %197, %199 : vector<8x512xf32>
    %201 = arith.negf %200 : vector<8x512xf32>
    %202 = math.exp %201 : vector<8x512xf32>
    %cst_71 = arith.constant 1.000000e+00 : f32
    %203 = vector.broadcast %cst_71 : f32 to vector<8x512xf32>
    %204 = arith.addf %203, %202 : vector<8x512xf32>
    %205 = arith.divf %203, %204 : vector<8x512xf32>
    %206 = vector.extract_strided_slice %205 {offsets = [0, 0], sizes = [8, 128], strides = [1, 1]} : vector<8x512xf32> to vector<8x128xf32>
    %207 = vector.extract_strided_slice %205 {offsets = [0, 128], sizes = [8, 128], strides = [1, 1]} : vector<8x512xf32> to vector<8x128xf32>
    %208 = vector.extract_strided_slice %205 {offsets = [0, 384], sizes = [8, 128], strides = [1, 1]} : vector<8x512xf32> to vector<8x128xf32>
    %209 = vector.extract_strided_slice %200 {offsets = [0, 256], sizes = [8, 128], strides = [1, 1]} : vector<8x512xf32> to vector<8x128xf32>
    %210 = math.tanh %209 : vector<8x128xf32>
    %211 = arith.mulf %207, %172 : vector<8x128xf32>
    %212 = arith.mulf %206, %210 : vector<8x128xf32>
    %213 = arith.addf %211, %212 : vector<8x128xf32>
    %214 = math.tanh %213 : vector<8x128xf32>
    %215 = arith.mulf %208, %214 : vector<8x128xf32>
    %c5 = arith.constant 5 : index
    %c0_72 = arith.constant 0 : index
    %c0_73 = arith.constant 0 : index
    %216 = vector.load %arg1[%c5, %c0_72, %c0_73] : memref<8x8x512xf32, #tpu.memory_space<vmem>>, vector<1x8x512xf32>
    %217 = vector.shape_cast %216 : vector<1x8x512xf32> to vector<8x512xf32>
    %c0_74 = arith.constant 0 : index
    %c0_75 = arith.constant 0 : index
    %218 = vector.load %arg4[%c0_74, %c0_75] : memref<128x512xf32, #tpu.memory_space<vmem>>, vector<128x512xf32>
    %cst_76 = arith.constant dense<0.000000e+00> : vector<8x512xf32>
    %219 = tpu.matmul %194, %218, %cst_76 {dimension_numbers = #tpu.dot_dimension_numbers<[1], [0], [0], [1], [0, 0, 1, 1], [], []>} : vector<8x128xf32>, vector<128x512xf32>, vector<8x512xf32> -> vector<8x512xf32>
    %220 = arith.addf %217, %219 : vector<8x512xf32>
    %221 = arith.negf %220 : vector<8x512xf32>
    %222 = math.exp %221 : vector<8x512xf32>
    %cst_77 = arith.constant 1.000000e+00 : f32
    %223 = vector.broadcast %cst_77 : f32 to vector<8x512xf32>
    %224 = arith.addf %223, %222 : vector<8x512xf32>
    %225 = arith.divf %223, %224 : vector<8x512xf32>
    %226 = vector.extract_strided_slice %225 {offsets = [0, 0], sizes = [8, 128], strides = [1, 1]} : vector<8x512xf32> to vector<8x128xf32>
    %227 = vector.extract_strided_slice %225 {offsets = [0, 128], sizes = [8, 128], strides = [1, 1]} : vector<8x512xf32> to vector<8x128xf32>
    %228 = vector.extract_strided_slice %225 {offsets = [0, 384], sizes = [8, 128], strides = [1, 1]} : vector<8x512xf32> to vector<8x128xf32>
    %229 = vector.extract_strided_slice %220 {offsets = [0, 256], sizes = [8, 128], strides = [1, 1]} : vector<8x512xf32> to vector<8x128xf32>
    %230 = math.tanh %229 : vector<8x128xf32>
    %231 = arith.mulf %227, %192 : vector<8x128xf32>
    %232 = arith.mulf %226, %230 : vector<8x128xf32>
    %233 = arith.addf %231, %232 : vector<8x128xf32>
    %234 = math.tanh %233 : vector<8x128xf32>
    %235 = arith.mulf %228, %234 : vector<8x128xf32>
    %236 = tpu.concatenate %235, %215 in 1 : vector<8x128xf32>, vector<8x128xf32> -> vector<8x256xf32>
    %c0_78 = arith.constant 0 : index
    %c0_79 = arith.constant 0 : index
    %237 = vector.load %arg5[%c0_78, %c0_79] : memref<256x512xf32, #tpu.memory_space<vmem>>, vector<256x512xf32>
    %cst_80 = arith.constant dense<0.000000e+00> : vector<8x512xf32>
    %238 = tpu.matmul %236, %237, %cst_80 {dimension_numbers = #tpu.dot_dimension_numbers<[1], [0], [0], [1], [0, 0, 1, 1], [], []>} : vector<8x256xf32>, vector<256x512xf32>, vector<8x512xf32> -> vector<8x512xf32>
    %c0_81 = arith.constant 0 : index
    %c0_82 = arith.constant 0 : index
    %239 = vector.load %arg6[%c0_81, %c0_82] : memref<1x512xf32, #tpu.memory_space<vmem>>, vector<1x512xf32>
    %240 = vector.broadcast %239 : vector<1x512xf32> to vector<8x512xf32>
    %241 = arith.addf %238, %240 : vector<8x512xf32>
    %242 = arith.negf %241 : vector<8x512xf32>
    %243 = math.exp %242 : vector<8x512xf32>
    %cst_83 = arith.constant 1.000000e+00 : f32
    %244 = vector.broadcast %cst_83 : f32 to vector<8x512xf32>
    %245 = arith.addf %244, %243 : vector<8x512xf32>
    %246 = arith.divf %244, %245 : vector<8x512xf32>
    %247 = vector.extract_strided_slice %246 {offsets = [0, 0], sizes = [8, 128], strides = [1, 1]} : vector<8x512xf32> to vector<8x128xf32>
    %248 = vector.extract_strided_slice %246 {offsets = [0, 128], sizes = [8, 128], strides = [1, 1]} : vector<8x512xf32> to vector<8x128xf32>
    %249 = vector.extract_strided_slice %246 {offsets = [0, 384], sizes = [8, 128], strides = [1, 1]} : vector<8x512xf32> to vector<8x128xf32>
    %250 = vector.extract_strided_slice %241 {offsets = [0, 256], sizes = [8, 128], strides = [1, 1]} : vector<8x512xf32> to vector<8x128xf32>
    %251 = math.tanh %250 : vector<8x128xf32>
    %252 = arith.mulf %248, %213 : vector<8x128xf32>
    %253 = arith.mulf %247, %251 : vector<8x128xf32>
    %254 = arith.addf %252, %253 : vector<8x128xf32>
    %255 = math.tanh %254 : vector<8x128xf32>
    %256 = arith.mulf %249, %255 : vector<8x128xf32>
    %c6 = arith.constant 6 : index
    %c0_84 = arith.constant 0 : index
    %c0_85 = arith.constant 0 : index
    %257 = vector.load %arg1[%c6, %c0_84, %c0_85] : memref<8x8x512xf32, #tpu.memory_space<vmem>>, vector<1x8x512xf32>
    %258 = vector.shape_cast %257 : vector<1x8x512xf32> to vector<8x512xf32>
    %c0_86 = arith.constant 0 : index
    %c0_87 = arith.constant 0 : index
    %259 = vector.load %arg4[%c0_86, %c0_87] : memref<128x512xf32, #tpu.memory_space<vmem>>, vector<128x512xf32>
    %cst_88 = arith.constant dense<0.000000e+00> : vector<8x512xf32>
    %260 = tpu.matmul %235, %259, %cst_88 {dimension_numbers = #tpu.dot_dimension_numbers<[1], [0], [0], [1], [0, 0, 1, 1], [], []>} : vector<8x128xf32>, vector<128x512xf32>, vector<8x512xf32> -> vector<8x512xf32>
    %261 = arith.addf %258, %260 : vector<8x512xf32>
    %262 = arith.negf %261 : vector<8x512xf32>
    %263 = math.exp %262 : vector<8x512xf32>
    %cst_89 = arith.constant 1.000000e+00 : f32
    %264 = vector.broadcast %cst_89 : f32 to vector<8x512xf32>
    %265 = arith.addf %264, %263 : vector<8x512xf32>
    %266 = arith.divf %264, %265 : vector<8x512xf32>
    %267 = vector.extract_strided_slice %266 {offsets = [0, 0], sizes = [8, 128], strides = [1, 1]} : vector<8x512xf32> to vector<8x128xf32>
    %268 = vector.extract_strided_slice %266 {offsets = [0, 128], sizes = [8, 128], strides = [1, 1]} : vector<8x512xf32> to vector<8x128xf32>
    %269 = vector.extract_strided_slice %266 {offsets = [0, 384], sizes = [8, 128], strides = [1, 1]} : vector<8x512xf32> to vector<8x128xf32>
    %270 = vector.extract_strided_slice %261 {offsets = [0, 256], sizes = [8, 128], strides = [1, 1]} : vector<8x512xf32> to vector<8x128xf32>
    %271 = math.tanh %270 : vector<8x128xf32>
    %272 = arith.mulf %268, %233 : vector<8x128xf32>
    %273 = arith.mulf %267, %271 : vector<8x128xf32>
    %274 = arith.addf %272, %273 : vector<8x128xf32>
    %275 = math.tanh %274 : vector<8x128xf32>
    %276 = arith.mulf %269, %275 : vector<8x128xf32>
    %277 = tpu.concatenate %276, %256 in 1 : vector<8x128xf32>, vector<8x128xf32> -> vector<8x256xf32>
    %c0_90 = arith.constant 0 : index
    %c0_91 = arith.constant 0 : index
    %278 = vector.load %arg5[%c0_90, %c0_91] : memref<256x512xf32, #tpu.memory_space<vmem>>, vector<256x512xf32>
    %cst_92 = arith.constant dense<0.000000e+00> : vector<8x512xf32>
    %279 = tpu.matmul %277, %278, %cst_92 {dimension_numbers = #tpu.dot_dimension_numbers<[1], [0], [0], [1], [0, 0, 1, 1], [], []>} : vector<8x256xf32>, vector<256x512xf32>, vector<8x512xf32> -> vector<8x512xf32>
    %c0_93 = arith.constant 0 : index
    %c0_94 = arith.constant 0 : index
    %280 = vector.load %arg6[%c0_93, %c0_94] : memref<1x512xf32, #tpu.memory_space<vmem>>, vector<1x512xf32>
    %281 = vector.broadcast %280 : vector<1x512xf32> to vector<8x512xf32>
    %282 = arith.addf %279, %281 : vector<8x512xf32>
    %283 = arith.negf %282 : vector<8x512xf32>
    %284 = math.exp %283 : vector<8x512xf32>
    %cst_95 = arith.constant 1.000000e+00 : f32
    %285 = vector.broadcast %cst_95 : f32 to vector<8x512xf32>
    %286 = arith.addf %285, %284 : vector<8x512xf32>
    %287 = arith.divf %285, %286 : vector<8x512xf32>
    %288 = vector.extract_strided_slice %287 {offsets = [0, 0], sizes = [8, 128], strides = [1, 1]} : vector<8x512xf32> to vector<8x128xf32>
    %289 = vector.extract_strided_slice %287 {offsets = [0, 128], sizes = [8, 128], strides = [1, 1]} : vector<8x512xf32> to vector<8x128xf32>
    %290 = vector.extract_strided_slice %287 {offsets = [0, 384], sizes = [8, 128], strides = [1, 1]} : vector<8x512xf32> to vector<8x128xf32>
    %291 = vector.extract_strided_slice %282 {offsets = [0, 256], sizes = [8, 128], strides = [1, 1]} : vector<8x512xf32> to vector<8x128xf32>
    %292 = math.tanh %291 : vector<8x128xf32>
    %293 = arith.mulf %289, %254 : vector<8x128xf32>
    %294 = arith.mulf %288, %292 : vector<8x128xf32>
    %295 = arith.addf %293, %294 : vector<8x128xf32>
    %296 = math.tanh %295 : vector<8x128xf32>
    %297 = arith.mulf %290, %296 : vector<8x128xf32>
    %c7 = arith.constant 7 : index
    %c0_96 = arith.constant 0 : index
    %c0_97 = arith.constant 0 : index
    %298 = vector.load %arg1[%c7, %c0_96, %c0_97] : memref<8x8x512xf32, #tpu.memory_space<vmem>>, vector<1x8x512xf32>
    %299 = vector.shape_cast %298 : vector<1x8x512xf32> to vector<8x512xf32>
    %c0_98 = arith.constant 0 : index
    %c0_99 = arith.constant 0 : index
    %300 = vector.load %arg4[%c0_98, %c0_99] : memref<128x512xf32, #tpu.memory_space<vmem>>, vector<128x512xf32>
    %cst_100 = arith.constant dense<0.000000e+00> : vector<8x512xf32>
    %301 = tpu.matmul %276, %300, %cst_100 {dimension_numbers = #tpu.dot_dimension_numbers<[1], [0], [0], [1], [0, 0, 1, 1], [], []>} : vector<8x128xf32>, vector<128x512xf32>, vector<8x512xf32> -> vector<8x512xf32>
    %302 = arith.addf %299, %301 : vector<8x512xf32>
    %303 = arith.negf %302 : vector<8x512xf32>
    %304 = math.exp %303 : vector<8x512xf32>
    %cst_101 = arith.constant 1.000000e+00 : f32
    %305 = vector.broadcast %cst_101 : f32 to vector<8x512xf32>
    %306 = arith.addf %305, %304 : vector<8x512xf32>
    %307 = arith.divf %305, %306 : vector<8x512xf32>
    %308 = vector.extract_strided_slice %307 {offsets = [0, 0], sizes = [8, 128], strides = [1, 1]} : vector<8x512xf32> to vector<8x128xf32>
    %309 = vector.extract_strided_slice %307 {offsets = [0, 128], sizes = [8, 128], strides = [1, 1]} : vector<8x512xf32> to vector<8x128xf32>
    %310 = vector.extract_strided_slice %307 {offsets = [0, 384], sizes = [8, 128], strides = [1, 1]} : vector<8x512xf32> to vector<8x128xf32>
    %311 = vector.extract_strided_slice %302 {offsets = [0, 256], sizes = [8, 128], strides = [1, 1]} : vector<8x512xf32> to vector<8x128xf32>
    %312 = math.tanh %311 : vector<8x128xf32>
    %313 = arith.mulf %309, %274 : vector<8x128xf32>
    %314 = arith.mulf %308, %312 : vector<8x128xf32>
    %315 = arith.addf %313, %314 : vector<8x128xf32>
    %316 = math.tanh %315 : vector<8x128xf32>
    %317 = arith.mulf %310, %316 : vector<8x128xf32>
    %318 = tpu.concatenate %317, %297 in 1 : vector<8x128xf32>, vector<8x128xf32> -> vector<8x256xf32>
    %c0_102 = arith.constant 0 : index
    %c0_103 = arith.constant 0 : index
    %319 = vector.load %arg5[%c0_102, %c0_103] : memref<256x512xf32, #tpu.memory_space<vmem>>, vector<256x512xf32>
    %cst_104 = arith.constant dense<0.000000e+00> : vector<8x512xf32>
    %320 = tpu.matmul %318, %319, %cst_104 {dimension_numbers = #tpu.dot_dimension_numbers<[1], [0], [0], [1], [0, 0, 1, 1], [], []>} : vector<8x256xf32>, vector<256x512xf32>, vector<8x512xf32> -> vector<8x512xf32>
    %c0_105 = arith.constant 0 : index
    %c0_106 = arith.constant 0 : index
    %321 = vector.load %arg6[%c0_105, %c0_106] : memref<1x512xf32, #tpu.memory_space<vmem>>, vector<1x512xf32>
    %322 = vector.broadcast %321 : vector<1x512xf32> to vector<8x512xf32>
    %323 = arith.addf %320, %322 : vector<8x512xf32>
    %324 = arith.negf %323 : vector<8x512xf32>
    %325 = math.exp %324 : vector<8x512xf32>
    %cst_107 = arith.constant 1.000000e+00 : f32
    %326 = vector.broadcast %cst_107 : f32 to vector<8x512xf32>
    %327 = arith.addf %326, %325 : vector<8x512xf32>
    %328 = arith.divf %326, %327 : vector<8x512xf32>
    %329 = vector.extract_strided_slice %328 {offsets = [0, 0], sizes = [8, 128], strides = [1, 1]} : vector<8x512xf32> to vector<8x128xf32>
    %330 = vector.extract_strided_slice %328 {offsets = [0, 128], sizes = [8, 128], strides = [1, 1]} : vector<8x512xf32> to vector<8x128xf32>
    %331 = vector.extract_strided_slice %328 {offsets = [0, 384], sizes = [8, 128], strides = [1, 1]} : vector<8x512xf32> to vector<8x128xf32>
    %332 = vector.extract_strided_slice %323 {offsets = [0, 256], sizes = [8, 128], strides = [1, 1]} : vector<8x512xf32> to vector<8x128xf32>
    %333 = math.tanh %332 : vector<8x128xf32>
    %334 = arith.mulf %330, %295 : vector<8x128xf32>
    %335 = arith.mulf %329, %333 : vector<8x128xf32>
    %336 = arith.addf %334, %335 : vector<8x128xf32>
    %337 = math.tanh %336 : vector<8x128xf32>
    %338 = arith.mulf %331, %337 : vector<8x128xf32>
    %c0_108 = arith.constant 0 : index
    %c0_109 = arith.constant 0 : index
    %c0_110 = arith.constant 0 : index
    %339 = vector.load %arg10[%c0_108, %c0_109, %c0_110] : memref<2x8x128xf32, #tpu.memory_space<vmem>>, vector<1x8x128xf32>
    %340 = vector.shape_cast %339 : vector<1x8x128xf32> to vector<8x128xf32>
    %341 = vector.shape_cast %317 : vector<8x128xf32> to vector<1x8x128xf32>
    tpu.vector_store %arg10[%c0_108, %c0_109, %c0_110], %341 {strides = array<i32>} : memref<2x8x128xf32, #tpu.memory_space<vmem>>, vector<1x8x128xf32>,
    %c0_111 = arith.constant 0 : index
    %c0_112 = arith.constant 0 : index
    %c0_113 = arith.constant 0 : index
    %342 = vector.load %arg11[%c0_111, %c0_112, %c0_113] : memref<2x8x128xf32, #tpu.memory_space<vmem>>, vector<1x8x128xf32>
    %343 = vector.shape_cast %342 : vector<1x8x128xf32> to vector<8x128xf32>
    %344 = vector.shape_cast %315 : vector<8x128xf32> to vector<1x8x128xf32>
    tpu.vector_store %arg11[%c0_111, %c0_112, %c0_113], %344 {strides = array<i32>} : memref<2x8x128xf32, #tpu.memory_space<vmem>>, vector<1x8x128xf32>,
    %c1_114 = arith.constant 1 : index
    %c0_115 = arith.constant 0 : index
    %c0_116 = arith.constant 0 : index
    %345 = vector.load %arg10[%c1_114, %c0_115, %c0_116] : memref<2x8x128xf32, #tpu.memory_space<vmem>>, vector<1x8x128xf32>
    %346 = vector.shape_cast %345 : vector<1x8x128xf32> to vector<8x128xf32>
    %347 = vector.shape_cast %338 : vector<8x128xf32> to vector<1x8x128xf32>
    tpu.vector_store %arg10[%c1_114, %c0_115, %c0_116], %347 {strides = array<i32>} : memref<2x8x128xf32, #tpu.memory_space<vmem>>, vector<1x8x128xf32>,
    %c1_117 = arith.constant 1 : index
    %c0_118 = arith.constant 0 : index
    %c0_119 = arith.constant 0 : index
    %348 = vector.load %arg11[%c1_117, %c0_118, %c0_119] : memref<2x8x128xf32, #tpu.memory_space<vmem>>, vector<1x8x128xf32>
    %349 = vector.shape_cast %348 : vector<1x8x128xf32> to vector<8x128xf32>
    %350 = vector.shape_cast %336 : vector<8x128xf32> to vector<1x8x128xf32>
    tpu.vector_store %arg11[%c1_117, %c0_118, %c0_119], %350 {strides = array<i32>} : memref<2x8x128xf32, #tpu.memory_space<vmem>>, vector<1x8x128xf32>,
    %c0_120 = arith.constant 0 : index
    %c0_121 = arith.constant 0 : index
    %351 = vector.load %arg7[%c0_120, %c0_121] : memref<128x128xf32, #tpu.memory_space<vmem>>, vector<128x128xf32>
    %cst_122 = arith.constant dense<0.000000e+00> : vector<8x128xf32>
    %352 = tpu.matmul %338, %351, %cst_122 {dimension_numbers = #tpu.dot_dimension_numbers<[1], [0], [0], [1], [0, 0, 1, 1], [], []>} : vector<8x128xf32>, vector<128x128xf32>, vector<8x128xf32> -> vector<8x128xf32>
    %c0_123 = arith.constant 0 : index
    %c0_124 = arith.constant 0 : index
    %353 = vector.load %arg8[%c0_123, %c0_124] : memref<1x128xf32, #tpu.memory_space<vmem>>, vector<1x128xf32>
    %354 = vector.broadcast %353 : vector<1x128xf32> to vector<8x128xf32>
    %355 = arith.addf %352, %354 : vector<8x128xf32>
    %356 = arith.negf %355 : vector<8x128xf32>
    %357 = math.exp %356 : vector<8x128xf32>
    %cst_125 = arith.constant 1.000000e+00 : f32
    %358 = vector.broadcast %cst_125 : f32 to vector<8x128xf32>
    %359 = arith.addf %358, %357 : vector<8x128xf32>
    %360 = arith.divf %358, %359 : vector<8x128xf32>
    %c0_126 = arith.constant 0 : index
    %c0_127 = arith.constant 0 : index
    %361 = vector.load %arg9[%c0_126, %c0_127] : memref<8x128xf32, #tpu.memory_space<vmem>>, vector<8x128xf32>
    tpu.vector_store %arg9[%c0_126, %c0_127], %360 {strides = array<i32>} : memref<8x128xf32, #tpu.memory_space<vmem>>, vector<8x128xf32>,
    return
  }
  func.func @transform_0(%arg0: i32) -> (i32, i32, i32) {
    %c0_i32 = arith.constant 0 : i32
    %c0_i32_0 = arith.constant 0 : i32
    %c0_i32_1 = arith.constant 0 : i32
    return %arg0, %c0_i32, %c0_i32_0 : i32, i32, i32
  }
  func.func @transform_1(%arg0: i32) -> (i32, i32, i32) {
    %c0_i32 = arith.constant 0 : i32
    %c0_i32_0 = arith.constant 0 : i32
    %c0_i32_1 = arith.constant 0 : i32
    %c0_i32_2 = arith.constant 0 : i32
    return %c0_i32, %c0_i32_0, %c0_i32_1 : i32, i32, i32
  }
  func.func @transform_2(%arg0: i32) -> (i32, i32, i32) {
    %c0_i32 = arith.constant 0 : i32
    %c0_i32_0 = arith.constant 0 : i32
    %c0_i32_1 = arith.constant 0 : i32
    %c0_i32_2 = arith.constant 0 : i32
    return %c0_i32, %c0_i32_0, %c0_i32_1 : i32, i32, i32
  }
  func.func @transform_3(%arg0: i32) -> (i32, i32) {
    %c0_i32 = arith.constant 0 : i32
    %c0_i32_0 = arith.constant 0 : i32
    %c0_i32_1 = arith.constant 0 : i32
    return %c0_i32, %c0_i32_0 : i32, i32
  }
  func.func @transform_4(%arg0: i32) -> (i32, i32) {
    %c0_i32 = arith.constant 0 : i32
    %c0_i32_0 = arith.constant 0 : i32
    %c0_i32_1 = arith.constant 0 : i32
    return %c0_i32, %c0_i32_0 : i32, i32
  }
  func.func @transform_5(%arg0: i32) -> (i32, i32) {
    %c0_i32 = arith.constant 0 : i32
    %c0_i32_0 = arith.constant 0 : i32
    %c0_i32_1 = arith.constant 0 : i32
    return %c0_i32, %c0_i32_0 : i32, i32
  }
  func.func @transform_6(%arg0: i32) -> (i32, i32) {
    %c0_i32 = arith.constant 0 : i32
    %c0_i32_0 = arith.constant 0 : i32
    %c0_i32_1 = arith.constant 0 : i32
    return %c0_i32, %c0_i32_0 : i32, i32
  }
  func.func @transform_7(%arg0: i32) -> (i32, i32) {
    %c0_i32 = arith.constant 0 : i32
    %c0_i32_0 = arith.constant 0 : i32
    %c0_i32_1 = arith.constant 0 : i32
    return %c0_i32, %c0_i32_0 : i32, i32
  }
  func.func @transform_8(%arg0: i32) -> (i32, i32) {
    %c0_i32 = arith.constant 0 : i32
    %c0_i32_0 = arith.constant 0 : i32
    %c0_i32_1 = arith.constant 0 : i32
    return %c0_i32, %c0_i32_0 : i32, i32
  }
}

</mosaic_0001>

<llo_original>
// kernel: tpu_custom_call.1
$region0: #{tpu_custom_call.1}
  #allocation0 [shape = 'u32[]', space=smem, size = 0x4, offset = 0x4, fixed_abs, tag = 'smem constant byte address 0x4 - core index']
  #allocation1 [shape = 'u32[144,128]{1,0:T(1,128)}', space=vmem, size = 0x12000, scoped, tag = 'internal scratch']
  #allocation2 [shape = 'f32[2,8,128]{2,1,0:T(8,128)}', space=vmem, size = 0x2000, scoped, tag = 'scratch operand']
  #allocation3 [shape = 'f32[2,8,128]{2,1,0:T(8,128)}', space=vmem, size = 0x2000, scoped, tag = 'scratch operand']
  %s0 = inlined_call_operand.hbm [shape: f32[8,8,512], index: 0, kind: input, shape index: {}]
  %s1 = inlined_call_operand.hbm [shape: f32[2,8,128], index: 1, kind: input, shape index: {}]
  %s2 = inlined_call_operand.hbm [shape: f32[2,8,128], index: 2, kind: input, shape index: {}]
  %s3 = inlined_call_operand.hbm [shape: f32[128,512], index: 3, kind: input, shape index: {}]
  %s4 = inlined_call_operand.hbm [shape: f32[256,512], index: 4, kind: input, shape index: {}]
  %s5 = inlined_call_operand.vmem [shape: f32[1,512], index: 5, kind: input, shape index: {}]
  %s6 = inlined_call_operand.hbm [shape: f32[128,128], index: 6, kind: input, shape index: {}]
  %s7 = inlined_call_operand.vmem [shape: f32[1,128], index: 7, kind: input, shape index: {}]
  %s8 = inlined_call_operand.hbm [shape: f32[8,128], index: 8, kind: output, shape index: {}]
  %s9 = sld [smem:[#allocation0]]
  $region70: #{tpu_custom_call.1} parent=0
    _
  %s11 = ssub.s32 1, %s9
  %s12 = scalar_select 0, %s11, %s9
  $region1: #{tpu_custom_call.1} parent=0
    #allocation4 [shape = 'u8[131072]{0}', space=vmem, size = 0x20000, scoped, tag = 'input window, operand 0, single buffered']
    #allocation5 [shape = 's32[1]{0}', space=sflag, size = 0x4, scoped, tag = 'scoped memory for tpu_custom_call.1']
    #allocation6 [shape = 's32[1]{0}', space=sflag, size = 0x4, scoped, tag = 'scoped memory for tpu_custom_call.1']
    #allocation7 [shape = 'u8[8192]{0}', space=vmem, size = 0x2000, scoped, tag = 'input window, operand 1, single buffered']
    #allocation8 [shape = 's32[1]{0}', space=sflag, size = 0x4, scoped, tag = 'scoped memory for tpu_custom_call.1']
    #allocation9 [shape = 'u8[8192]{0}', space=vmem, size = 0x2000, scoped, tag = 'input window, operand 2, single buffered']
    #allocation10 [shape = 'u8[262144]{0}', space=vmem, size = 0x40000, scoped, tag = 'input window, operand 3, single buffered']
    #allocation11 [shape = 's32[1]{0}', space=sflag, size = 0x4, scoped, tag = 'scoped memory for tpu_custom_call.1']
    #allocation12 [shape = 'u8[524288]{0}', space=vmem, size = 0x80000, scoped, tag = 'input window, operand 4, single buffered']
    #allocation13 [shape = 'u8[65536]{0}', space=vmem, size = 0x10000, scoped, tag = 'input window, operand 6, single buffered']
    #allocation14 [shape = 's32[1]{0}', space=sflag, size = 0x4, scoped, tag = 'scoped memory for tpu_custom_call.1']
    #allocation15 [shape = 'u8[4096]{0}', space=vmem, size = 0x1000, scoped, tag = 'output window, operand 0, single buffered']
    %13 = vsyncpa [#allocation5], 0
    %14 = vsyncpa [#allocation8], 0
    %15 = vsyncpa [#allocation11], 0
    %16 = vsyncpa [#allocation14], 0
    %17 = vsyncpa [#allocation6], 0
    // Predicated region
    $region2: #{tpu_custom_call.1} parent=1 // pred_check
      _
    $region3: #{tpu_custom_call.1} parent=1 // pred_check_branch
      %19 = sbr.rel (0) target = $region5
    $region4: #{tpu_custom_call.1} parent=1 // pred_region
      %s21 = ssub.s32 4096, 4096
      %22 = vsyncadd [#allocation5], %s21
      %s23 = sshll.u32 [#allocation4], 4
      %s24 = int_to_ptr.vmem [resolvable:$true] %s23
      %29 = dma.hbm_to_vmem [thread:$0]  %s0, 4096, %s24, [#allocation5], 512, 512, 32
    $region5: #{tpu_custom_call.1} parent=1 // pred_fallthru
      _
    // Predicated region
    $region6: #{tpu_custom_call.1} parent=1 // pred_check
      _
    $region7: #{tpu_custom_call.1} parent=1 // pred_check_branch
      %31 = sbr.rel (0) target = $region9
    $region8: #{tpu_custom_call.1} parent=1 // pred_region
      %s33 = ssub.s32 256, 256
      %34 = vsyncadd [#allocation8], %s33
      %s35 = sshll.u32 [#allocation7], 4
      %s36 = int_to_ptr.vmem [resolvable:$true] %s35
      %41 = dma.hbm_to_vmem [thread:$0]  %s1, 256, %s36, [#allocation8], 128, 128, 8
    $region9: #{tpu_custom_call.1} parent=1 // pred_fallthru
      _
    // Predicated region
    $region10: #{tpu_custom_call.1} parent=1 // pred_check
      _
    $region11: #{tpu_custom_call.1} parent=1 // pred_check_branch
      %43 = sbr.rel (0) target = $region13
    $region12: #{tpu_custom_call.1} parent=1 // pred_region
      %s45 = ssub.s32 256, 256
      %46 = vsyncadd [#allocation8], %s45
      %s47 = sshll.u32 [#allocation9], 4
      %s48 = int_to_ptr.vmem [resolvable:$true] %s47
      %53 = dma.hbm_to_vmem [thread:$0]  %s2, 256, %s48, [#allocation8], 128, 128, 8
    $region13: #{tpu_custom_call.1} parent=1 // pred_fallthru
      _
    // Predicated region
    $region14: #{tpu_custom_call.1} parent=1 // pred_check
      _
    $region15: #{tpu_custom_call.1} parent=1 // pred_check_branch
      %55 = sbr.rel (0) target = $region17
    $region16: #{tpu_custom_call.1} parent=1 // pred_region
      %s57 = ssub.s32 8192, 8192
      %58 = vsyncadd [#allocation11], %s57
      %s59 = sshll.u32 [#allocation10], 4
      %s60 = int_to_ptr.vmem [resolvable:$true] %s59
      %65 = dma.hbm_to_vmem [thread:$0]  %s3, 8192, %s60, [#allocation11], 512, 512, 32
    $region17: #{tpu_custom_call.1} parent=1 // pred_fallthru
      _
    // Predicated region
    $region18: #{tpu_custom_call.1} parent=1 // pred_check
      _
    $region19: #{tpu_custom_call.1} parent=1 // pred_check_branch
      %67 = sbr.rel (0) target = $region21
    $region20: #{tpu_custom_call.1} parent=1 // pred_region
      %s69 = ssub.s32 16384, 16384
      %70 = vsyncadd [#allocation11], %s69
      %s71 = sshll.u32 [#allocation12], 4
      %s72 = int_to_ptr.vmem [resolvable:$true] %s71
      %77 = dma.hbm_to_vmem [thread:$0]  %s4, 16384, %s72, [#allocation11], 512, 512, 32
    $region21: #{tpu_custom_call.1} parent=1 // pred_fallthru
      _
    // Predicated region
    $region22: #{tpu_custom_call.1} parent=1 // pred_check
      _
    $region23: #{tpu_custom_call.1} parent=1 // pred_check_branch
      %79 = sbr.rel (0) target = $region25
    $region24: #{tpu_custom_call.1} parent=1 // pred_region
      _
    $region25: #{tpu_custom_call.1} parent=1 // pred_fallthru
      _
    // Predicated region
    $region26: #{tpu_custom_call.1} parent=1 // pred_check
      _
    $region27: #{tpu_custom_call.1} parent=1 // pred_check_branch
      %81 = sbr.rel (0) target = $region29
    $region28: #{tpu_custom_call.1} parent=1 // pred_region
      %s83 = ssub.s32 2048, 2048
      %84 = vsyncadd [#allocation14], %s83
      %s85 = sshll.u32 [#allocation13], 4
      %s86 = int_to_ptr.vmem [resolvable:$true] %s85
      %91 = dma.hbm_to_vmem [thread:$0]  %s6, 2048, %s86, [#allocation14], 128, 128, 8
    $region29: #{tpu_custom_call.1} parent=1 // pred_fallthru
      _
    // Predicated region
    $region30: #{tpu_custom_call.1} parent=1 // pred_check
      _
    $region31: #{tpu_custom_call.1} parent=1 // pred_check_branch
      %93 = sbr.rel (0) target = $region33
    $region32: #{tpu_custom_call.1} parent=1 // pred_region
      _
    $region33: #{tpu_custom_call.1} parent=1 // pred_fallthru
      _
    // Predicated region
    $region34: #{tpu_custom_call.1} parent=1 // pred_check
      _
    $region35: #{tpu_custom_call.1} parent=1 // pred_check_branch
      %95 = sbr.rel (0) target = $region37
    $region36: #{tpu_custom_call.1} parent=1 // pred_region
      %96 = dma.done [#allocation5], 4096
    $region37: #{tpu_custom_call.1} parent=1 // pred_fallthru
      _
    // Predicated region
    $region38: #{tpu_custom_call.1} parent=1 // pred_check
      _
    $region39: #{tpu_custom_call.1} parent=1 // pred_check_branch
      %98 = sbr.rel (0) target = $region41
    $region40: #{tpu_custom_call.1} parent=1 // pred_region
      %99 = dma.done [#allocation8], 256
    $region41: #{tpu_custom_call.1} parent=1 // pred_fallthru
      _
    // Predicated region
    $region42: #{tpu_custom_call.1} parent=1 // pred_check
      _
    $region43: #{tpu_custom_call.1} parent=1 // pred_check_branch
      %101 = sbr.rel (0) target = $region45
    $region44: #{tpu_custom_call.1} parent=1 // pred_region
      %102 = dma.done [#allocation8], 256
    $region45: #{tpu_custom_call.1} parent=1 // pred_fallthru
      _
    // Predicated region
    $region46: #{tpu_custom_call.1} parent=1 // pred_check
      _
    $region47: #{tpu_custom_call.1} parent=1 // pred_check_branch
      %104 = sbr.rel (0) target = $region49
    $region48: #{tpu_custom_call.1} parent=1 // pred_region
      %105 = dma.done [#allocation11], 8192
    $region49: #{tpu_custom_call.1} parent=1 // pred_fallthru
      _
    // Predicated region
    $region50: #{tpu_custom_call.1} parent=1 // pred_check
      _
    $region51: #{tpu_custom_call.1} parent=1 // pred_check_branch
      %107 = sbr.rel (0) target = $region53
    $region52: #{tpu_custom_call.1} parent=1 // pred_region
      %108 = dma.done [#allocation11], 16384
    $region53: #{tpu_custom_call.1} parent=1 // pred_fallthru
      _
    // Predicated region
    $region54: #{tpu_custom_call.1} parent=1 // pred_check
      _
    $region55: #{tpu_custom_call.1} parent=1 // pred_check_branch
      %110 = sbr.rel (0) target = $region57
    $region56: #{tpu_custom_call.1} parent=1 // pred_region
      %111 = dma.done [#allocation14], 2048
    $region57: #{tpu_custom_call.1} parent=1 // pred_fallthru
      _
    %p112 = scmp.eq.s32.totalorder 0, 0
    // Predicated region
    $region58: #{tpu_custom_call.1} parent=1 // pred_check
      %p113 = pneg %p112
    $region59: #{tpu_custom_call.1} parent=1 // pred_check_branch
      %115 = sbr.rel (%p113) target = $region61
    $region60: #{tpu_custom_call.1} parent=1 // pred_region
      %v116 = vld [vmem:[#allocation7] sm:$0xff]
      %v117 = vld [vmem:[#allocation7 + $0x8] sm:$0xff]
      %118 = vst [vmem:[#allocation2] sm:$0xff] %v116
      %119 = vst [vmem:[#allocation2 + $0x8] sm:$0xff] %v117
      %v120 = vld [vmem:[#allocation9] sm:$0xff]
      %v121 = vld [vmem:[#allocation9 + $0x8] sm:$0xff]
      %122 = vst [vmem:[#allocation3] sm:$0xff] %v120
      %123 = vst [vmem:[#allocation3 + $0x8] sm:$0xff] %v121
    $region61: #{tpu_custom_call.1} parent=1 // pred_fallthru
      _
    %v124 = vld [vmem:[#allocation2] sm:$0xff]
    %s125 = scalar_lea.vmem [#allocation2], 8
    %v126 = vld [vmem:[%s125] sm:$0xff]
    %v127 = vld [vmem:[#allocation3] sm:$0xff]
    %s128 = scalar_lea.vmem [#allocation3], 8
    %v129 = vld [vmem:[%s128] sm:$0xff]
    %v130 = vld [vmem:[#allocation4] sm:$0xff]
    %v131 = vld [vmem:[#allocation4 + $0x8] sm:$0xff]
    %v132 = vld [vmem:[#allocation4 + $0x10] sm:$0xff]
    %v133 = vld [vmem:[#allocation4 + $0x18] sm:$0xff]
    %v134 = vld [vmem:[#allocation10] sm:$0xff]
    %v135 = vld [vmem:[#allocation10 + $0x8] sm:$0xff]
    %v136 = vld [vmem:[#allocation10 + $0x10] sm:$0xff]
    %v137 = vld [vmem:[#allocation10 + $0x18] sm:$0xff]
    %v138 = vld [vmem:[#allocation10 + $0x20] sm:$0xff]
    %v139 = vld [vmem:[#allocation10 + $0x28] sm:$0xff]
    %v140 = vld [vmem:[#allocation10 + $0x30] sm:$0xff]
    %v141 = vld [vmem:[#allocation10 + $0x38] sm:$0xff]
    %v142 = vld [vmem:[#allocation10 + $0x40] sm:$0xff]
    %v143 = vld [vmem:[#allocation10 + $0x48] sm:$0xff]
    %v144 = vld [vmem:[#allocation10 + $0x50] sm:$0xff]
    %v145 = vld [vmem:[#allocation10 + $0x58] sm:$0xff]
    %v146 = vld [vmem:[#allocation10 + $0x60] sm:$0xff]
    %v147 = vld [vmem:[#allocation10 + $0x68] sm:$0xff]
    %v148 = vld [vmem:[#allocation10 + $0x70] sm:$0xff]
    %v149 = vld [vmem:[#allocation10 + $0x78] sm:$0xff]
    %v150 = vld [vmem:[#allocation10 + $0x80] sm:$0xff]
    %v151 = vld [vmem:[#allocation10 + $0x88] sm:$0xff]
    %v152 = vld [vmem:[#allocation10 + $0x90] sm:$0xff]
    %v153 = vld [vmem:[#allocation10 + $0x98] sm:$0xff]
    %v154 = vld [vmem:[#allocation10 + $0xa0] sm:$0xff]
    %v155 = vld [vmem:[#allocation10 + $0xa8] sm:$0xff]
    %v156 = vld [vmem:[#allocation10 + $0xb0] sm:$0xff]
    %v157 = vld [vmem:[#allocation10 + $0xb8] sm:$0xff]
    %v158 = vld [vmem:[#allocation10 + $0xc0] sm:$0xff]
    %v159 = vld [vmem:[#allocation10 + $0xc8] sm:$0xff]
    %v160 = vld [vmem:[#allocation10 + $0xd0] sm:$0xff]
    %v161 = vld [vmem:[#allocation10 + $0xd8] sm:$0xff]
    %v162 = vld [vmem:[#allocation10 + $0xe0] sm:$0xff]
    %v163 = vld [vmem:[#allocation10 + $0xe8] sm:$0xff]
    %v164 = vld [vmem:[#allocation10 + $0xf0] sm:$0xff]
    %v165 = vld [vmem:[#allocation10 + $0xf8] sm:$0xff]
    %v166 = vld [vmem:[#allocation10 + $0x100] sm:$0xff]
    %v167 = vld [vmem:[#allocation10 + $0x108] sm:$0xff]
    %v168 = vld [vmem:[#allocation10 + $0x110] sm:$0xff]
    %v169 = vld [vmem:[#allocation10 + $0x118] sm:$0xff]
    %v170 = vld [vmem:[#allocation10 + $0x120] sm:$0xff]
    %v171 = vld [vmem:[#allocation10 + $0x128] sm:$0xff]
    %v172 = vld [vmem:[#allocation10 + $0x130] sm:$0xff]
    %v173 = vld [vmem:[#allocation10 + $0x138] sm:$0xff]
    %v174 = vld [vmem:[#allocation10 + $0x140] sm:$0xff]
    %v175 = vld [vmem:[#allocation10 + $0x148] sm:$0xff]
    %v176 = vld [vmem:[#allocation10 + $0x150] sm:$0xff]
    %v177 = vld [vmem:[#allocation10 + $0x158] sm:$0xff]
    %v178 = vld [vmem:[#allocation10 + $0x160] sm:$0xff]
    %v179 = vld [vmem:[#allocation10 + $0x168] sm:$0xff]
    %v180 = vld [vmem:[#allocation10 + $0x170] sm:$0xff]
    %v181 = vld [vmem:[#allocation10 + $0x178] sm:$0xff]
    %v182 = vld [vmem:[#allocation10 + $0x180] sm:$0xff]
    %v183 = vld [vmem:[#allocation10 + $0x188] sm:$0xff]
    %v184 = vld [vmem:[#allocation10 + $0x190] sm:$0xff]
    %v185 = vld [vmem:[#allocation10 + $0x198] sm:$0xff]
    %v186 = vld [vmem:[#allocation10 + $0x1a0] sm:$0xff]
    %v187 = vld [vmem:[#allocation10 + $0x1a8] sm:$0xff]
    %v188 = vld [vmem:[#allocation10 + $0x1b0] sm:$0xff]
    %v189 = vld [vmem:[#allocation10 + $0x1b8] sm:$0xff]
    %v190 = vld [vmem:[#allocation10 + $0x1c0] sm:$0xff]
    %v191 = vld [vmem:[#allocation10 + $0x1c8] sm:$0xff]
    %v192 = vld [vmem:[#allocation10 + $0x1d0] sm:$0xff]
    %v193 = vld [vmem:[#allocation10 + $0x1d8] sm:$0xff]
    %v194 = vld [vmem:[#allocation10 + $0x1e0] sm:$0xff]
    %v195 = vld [vmem:[#allocation10 + $0x1e8] sm:$0xff]
    %v196 = vld [vmem:[#allocation10 + $0x1f0] sm:$0xff]
    %v197 = vld [vmem:[#allocation10 + $0x1f8] sm:$0xff]
    %198 = vmatprep.subr.mxu0 %v135
    %199 = vmatpush1.msra.mxu0 %v134
    %200 = vmatprep.subr.mxu0 %v139
    %201 = vmatpush1.msra.mxu0 %v138
    %202 = vmatprep.subr.mxu0 %v143
    %203 = vmatpush1.msra.mxu0 %v142
    %204 = vmatprep.subr.mxu0 %v147
    %205 = vmatpush1.msra.mxu0 %v146
    %206 = vmatprep.subr.mxu0 %v151
    %207 = vmatpush1.msra.mxu0 %v150
    %208 = vmatprep.subr.mxu0 %v155
    %209 = vmatpush1.msra.mxu0 %v154
    %210 = vmatprep.subr.mxu0 %v159
    %211 = vmatpush1.msra.mxu0 %v158
    %212 = vmatprep.subr.mxu0 %v163
    %213 = vmatpush1.msra.mxu0 %v162
    %214 = vmatprep.subr.mxu0 %v167
    %215 = vmatpush1.msra.mxu0 %v166
    %216 = vmatprep.subr.mxu0 %v171
    %217 = vmatpush1.msra.mxu0 %v170
    %218 = vmatprep.subr.mxu0 %v175
    %219 = vmatpush1.msra.mxu0 %v174
    %220 = vmatprep.subr.mxu0 %v179
    %221 = vmatpush1.msra.mxu0 %v178
    %222 = vmatprep.subr.mxu0 %v183
    %223 = vmatpush1.msra.mxu0 %v182
    %224 = vmatprep.subr.mxu0 %v187
    %225 = vmatpush1.msra.mxu0 %v186
    %226 = vmatprep.subr.mxu0 %v191
    %227 = vmatpush1.msra.mxu0 %v190
    %228 = vmatprep.subr.mxu0 %v195
    %229 = vmatpush1.msra.mxu0 %v194
    %230 = vmatprep.subr.mxu0 0.0
    %231 = vmatpush1.msra.mxu0 0.0
    %232 = vmatprep.subr.mxu0 0.0
    %233 = vmatpush1.msra.mxu0 0.0
    %234 = vmatprep.subr.mxu0 0.0
    %235 = vmatpush1.msra.mxu0 0.0
    %236 = vmatprep.subr.mxu0 0.0
    %237 = vmatpush1.msra.mxu0 0.0
    %238 = vmatprep.subr.mxu0 0.0
    %239 = vmatpush1.msra.mxu0 0.0
    %240 = vmatprep.subr.mxu0 0.0
    %241 = vmatpush1.msra.mxu0 0.0
    %242 = vmatprep.subr.mxu0 0.0
    %243 = vmatpush1.msra.mxu0 0.0
    %244 = vmatprep.subr.mxu0 0.0
    %245 = vmatpush1.msra.mxu0 0.0
    %246 = vmatprep.subr.mxu0 0.0
    %247 = vmatpush1.msra.mxu0 0.0
    %248 = vmatprep.subr.mxu0 0.0
    %249 = vmatpush1.msra.mxu0 0.0
    %250 = vmatprep.subr.mxu0 0.0
    %251 = vmatpush1.msra.mxu0 0.0
    %252 = vmatprep.subr.mxu0 0.0
    %253 = vmatpush1.msra.mxu0 0.0
    %254 = vmatprep.subr.mxu0 0.0
    %255 = vmatpush1.msra.mxu0 0.0
    %256 = vmatprep.subr.mxu0 0.0
    %257 = vmatpush1.msra.mxu0 0.0
    %258 = vmatprep.subr.mxu0 0.0
    %259 = vmatpush1.msra.mxu0 0.0
    %260 = vmatprep.subr.mxu0 0.0
    %261 = vmatpush1.msra.mxu0 0.0
    %262 = vmatprep.mubr.f32.mxu0 0.0
    %263 = vmatmul.mubr.f32.gmra.mrb[0].mxu0 %v124
    %v264 = vpop.f32.mrb[0].mxu0
    %v265 = vadd.f32 0.0, %v264
    %v266 = vpop.f32.mrb[0].mxu0
    %v267 = vadd.f32 0.0, %v266
    %268 = vdwg.mxu0
    %269 = vmatprep.subr.mxu0 %v137
    %270 = vmatpush1.msra.mxu0 %v136
    %271 = vmatprep.subr.mxu0 %v141
    %272 = vmatpush1.msra.mxu0 %v140
    %273 = vmatprep.subr.mxu0 %v145
    %274 = vmatpush1.msra.mxu0 %v144
    %275 = vmatprep.subr.mxu0 %v149
    %276 = vmatpush1.msra.mxu0 %v148
    %277 = vmatprep.subr.mxu0 %v153
    %278 = vmatpush1.msra.mxu0 %v152
    %279 = vmatprep.subr.mxu0 %v157
    %280 = vmatpush1.msra.mxu0 %v156
    %281 = vmatprep.subr.mxu0 %v161
    %282 = vmatpush1.msra.mxu0 %v160
    %283 = vmatprep.subr.mxu0 %v165
    %284 = vmatpush1.msra.mxu0 %v164
    %285 = vmatprep.subr.mxu0 %v169
    %286 = vmatpush1.msra.mxu0 %v168
    %287 = vmatprep.subr.mxu0 %v173
    %288 = vmatpush1.msra.mxu0 %v172
    %289 = vmatprep.subr.mxu0 %v177
    %290 = vmatpush1.msra.mxu0 %v176
    %291 = vmatprep.subr.mxu0 %v181
    %292 = vmatpush1.msra.mxu0 %v180
    %293 = vmatprep.subr.mxu0 %v185
    %294 = vmatpush1.msra.mxu0 %v184
    %295 = vmatprep.subr.mxu0 %v189
    %296 = vmatpush1.msra.mxu0 %v188
    %297 = vmatprep.subr.mxu0 %v193
    %298 = vmatpush1.msra.mxu0 %v192
    %299 = vmatprep.subr.mxu0 %v197
    %300 = vmatpush1.msra.mxu0 %v196
    %301 = vmatprep.subr.mxu0 0.0
    %302 = vmatpush1.msra.mxu0 0.0
    %303 = vmatprep.subr.mxu0 0.0
    %304 = vmatpush1.msra.mxu0 0.0
    %305 = vmatprep.subr.mxu0 0.0
    %306 = vmatpush1.msra.mxu0 0.0
    %307 = vmatprep.subr.mxu0 0.0
    %308 = vmatpush1.msra.mxu0 0.0
    %309 = vmatprep.subr.mxu0 0.0
    %310 = vmatpush1.msra.mxu0 0.0
    %311 = vmatprep.subr.mxu0 0.0
    %312 = vmatpush1.msra.mxu0 0.0
    %313 = vmatprep.subr.mxu0 0.0
    %314 = vmatpush1.msra.mxu0 0.0
    %315 = vmatprep.subr.mxu0 0.0
    %316 = vmatpush1.msra.mxu0 0.0
    %317 = vmatprep.subr.mxu0 0.0
    %318 = vmatpush1.msra.mxu0 0.0
    %319 = vmatprep.subr.mxu0 0.0
    %320 = vmatpush1.msra.mxu0 0.0
    %321 = vmatprep.subr.mxu0 0.0
    %322 = vmatpush1.msra.mxu0 0.0
    %323 = vmatprep.subr.mxu0 0.0
    %324 = vmatpush1.msra.mxu0 0.0
    %325 = vmatprep.subr.mxu0 0.0
    %326 = vmatpush1.msra.mxu0 0.0
    %327 = vmatprep.subr.mxu0 0.0
    %328 = vmatpush1.msra.mxu0 0.0
    %329 = vmatprep.subr.mxu0 0.0
    %330 = vmatpush1.msra.mxu0 0.0
    %331 = vmatprep.subr.mxu0 0.0
    %332 = vmatpush1.msra.mxu0 0.0
    %333 = vmatprep.mubr.f32.mxu0 0.0
    %334 = vmatmul.mubr.f32.gmra.mrb[0].mxu0 %v124
    %v335 = vpop.f32.mrb[0].mxu0
    %v336 = vadd.f32 0.0, %v335
    %v337 = vpop.f32.mrb[0].mxu0
    %v338 = vadd.f32 0.0, %v337
    %339 = vdwg.mxu0
    %v340 = vadd.f32 %v130, %v265
    %v341 = vadd.f32 %v131, %v267
    %v342 = vadd.f32 %v132, %v336
    %v343 = vadd.f32 %v133, %v338
    %v344 = vxor.u32 %v340, 2147483648
    %v345 = vxor.u32 %v341, 2147483648
    %v346 = vxor.u32 %v343, 2147483648
    %v347 = vmul.f32 %v344, 1.442695
    %v348 = vpow.pop %v347
    %v349 = vmul.f32 %v345, 1.442695
    %v350 = vpow.pop %v349
    %v351 = vmul.f32 %v346, 1.442695
    %v352 = vpow.pop %v351
    %v353 = vadd.f32 %v348, 1.0
    %v354 = vadd.f32 %v350, 1.0
    %v355 = vadd.f32 %v352, 1.0
    %v356 = vrcp.pop %v353
    %v357 = vmul.f32 1.0, %v356
    %v358 = vrcp.pop %v354
    %v359 = vmul.f32 1.0, %v358
    %v360 = vrcp.pop %v355
    %v361 = vmul.f32 1.0, %v360
    %v362 = vtanh.pop %v342
    %v363 = vmul.f32 %v359, %v127
    %v364 = vmul.f32 %v357, %v362
    %v365 = vadd.f32 %v363, %v364
    %v366 = vtanh.pop %v365
    %v367 = vmul.f32 %v361, %v366
    %v368 = vld [vmem:[#allocation12] sm:$0xff]
    %v369 = vld [vmem:[#allocation12 + $0x8] sm:$0xff]
    %v370 = vld [vmem:[#allocation12 + $0x10] sm:$0xff]
    %v371 = vld [vmem:[#allocation12 + $0x18] sm:$0xff]
    %v372 = vld [vmem:[#allocation12 + $0x20] sm:$0xff]
    %v373 = vld [vmem:[#allocation12 + $0x28] sm:$0xff]
    %v374 = vld [vmem:[#allocation12 + $0x30] sm:$0xff]
    %v375 = vld [vmem:[#allocation12 + $0x38] sm:$0xff]
    %v376 = vld [vmem:[#allocation12 + $0x40] sm:$0xff]
    %v377 = vld [vmem:[#allocation12 + $0x48] sm:$0xff]
    %v378 = vld [vmem:[#allocation12 + $0x50] sm:$0xff]
    %v379 = vld [vmem:[#allocation12 + $0x58] sm:$0xff]
    %v380 = vld [vmem:[#allocation12 + $0x60] sm:$0xff]
    %v381 = vld [vmem:[#allocation12 + $0x68] sm:$0xff]
    %v382 = vld [vmem:[#allocation12 + $0x70] sm:$0xff]
    %v383 = vld [vmem:[#allocation12 + $0x78] sm:$0xff]
    %v384 = vld [vmem:[#allocation12 + $0x80] sm:$0xff]
    %v385 = vld [vmem:[#allocation12 + $0x88] sm:$0xff]
    %v386 = vld [vmem:[#allocation12 + $0x90] sm:$0xff]
    %v387 = vld [vmem:[#allocation12 + $0x98] sm:$0xff]
    %v388 = vld [vmem:[#allocation12 + $0xa0] sm:$0xff]
    %v389 = vld [vmem:[#allocation12 + $0xa8] sm:$0xff]
    %v390 = vld [vmem:[#allocation12 + $0xb0] sm:$0xff]
    %v391 = vld [vmem:[#allocation12 + $0xb8] sm:$0xff]
    %v392 = vld [vmem:[#allocation12 + $0xc0] sm:$0xff]
    %v393 = vld [vmem:[#allocation12 + $0xc8] sm:$0xff]
    %v394 = vld [vmem:[#allocation12 + $0xd0] sm:$0xff]
    %v395 = vld [vmem:[#allocation12 + $0xd8] sm:$0xff]
    %v396 = vld [vmem:[#allocation12 + $0xe0] sm:$0xff]
    %v397 = vld [vmem:[#allocation12 + $0xe8] sm:$0xff]
    %v398 = vld [vmem:[#allocation12 + $0xf0] sm:$0xff]
    %v399 = vld [vmem:[#allocation12 + $0xf8] sm:$0xff]
    %v400 = vld [vmem:[#allocation12 + $0x100] sm:$0xff]
    %v401 = vld [vmem:[#allocation12 + $0x108] sm:$0xff]
    %v402 = vld [vmem:[#allocation12 + $0x110] sm:$0xff]
    %v403 = vld [vmem:[#allocation12 + $0x118] sm:$0xff]
    %v404 = vld [vmem:[#allocation12 + $0x120] sm:$0xff]
    %v405 = vld [vmem:[#allocation12 + $0x128] sm:$0xff]
    %v406 = vld [vmem:[#allocation12 + $0x130] sm:$0xff]
    %v407 = vld [vmem:[#allocation12 + $0x138] sm:$0xff]
    %v408 = vld [vmem:[#allocation12 + $0x140] sm:$0xff]
    %v409 = vld [vmem:[#allocation12 + $0x148] sm:$0xff]
    %v410 = vld [vmem:[#allocation12 + $0x150] sm:$0xff]
    %v411 = vld [vmem:[#allocation12 + $0x158] sm:$0xff]
    %v412 = vld [vmem:[#allocation12 + $0x160] sm:$0xff]
    %v413 = vld [vmem:[#allocation12 + $0x168] sm:$0xff]
    %v414 = vld [vmem:[#allocation12 + $0x170] sm:$0xff]
    %v415 = vld [vmem:[#allocation12 + $0x178] sm:$0xff]
    %v416 = vld [vmem:[#allocation12 + $0x180] sm:$0xff]
    %v417 = vld [vmem:[#allocation12 + $0x188] sm:$0xff]
    %v418 = vld [vmem:[#allocation12 + $0x190] sm:$0xff]
    %v419 = vld [vmem:[#allocation12 + $0x198] sm:$0xff]
    %v420 = vld [vmem:[#allocation12 + $0x1a0] sm:$0xff]
    %v421 = vld [vmem:[#allocation12 + $0x1a8] sm:$0xff]
    %v422 = vld [vmem:[#allocation12 + $0x1b0] sm:$0xff]
    %v423 = vld [vmem:[#allocation12 + $0x1b8] sm:$0xff]
    %v424 = vld [vmem:[#allocation12 + $0x1c0] sm:$0xff]
    %v425 = vld [vmem:[#allocation12 + $0x1c8] sm:$0xff]
    %v426 = vld [vmem:[#allocation12 + $0x1d0] sm:$0xff]
    %v427 = vld [vmem:[#allocation12 + $0x1d8] sm:$0xff]
    %v428 = vld [vmem:[#allocation12 + $0x1e0] sm:$0xff]
    %v429 = vld [vmem:[#allocation12 + $0x1e8] sm:$0xff]
    %v430 = vld [vmem:[#allocation12 + $0x1f0] sm:$0xff]
    %v431 = vld [vmem:[#allocation12 + $0x1f8] sm:$0xff]
    %v432 = vld [vmem:[#allocation12 + $0x200] sm:$0xff]
    %v433 = vld [vmem:[#allocation12 + $0x208] sm:$0xff]
    %v434 = vld [vmem:[#allocation12 + $0x210] sm:$0xff]
    %v435 = vld [vmem:[#allocation12 + $0x218] sm:$0xff]
    %v436 = vld [vmem:[#allocation12 + $0x220] sm:$0xff]
    %v437 = vld [vmem:[#allocation12 + $0x228] sm:$0xff]
    %v438 = vld [vmem:[#allocation12 + $0x230] sm:$0xff]
    %v439 = vld [vmem:[#allocation12 + $0x238] sm:$0xff]
    %v440 = vld [vmem:[#allocation12 + $0x240] sm:$0xff]
    %v441 = vld [vmem:[#allocation12 + $0x248] sm:$0xff]
    %v442 = vld [vmem:[#allocation12 + $0x250] sm:$0xff]
    %v443 = vld [vmem:[#allocation12 + $0x258] sm:$0xff]
    %v444 = vld [vmem:[#allocation12 + $0x260] sm:$0xff]
    %v445 = vld [vmem:[#allocation12 + $0x268] sm:$0xff]
    %v446 = vld [vmem:[#allocation12 + $0x270] sm:$0xff]
    %v447 = vld [vmem:[#allocation12 + $0x278] sm:$0xff]
    %v448 = vld [vmem:[#allocation12 + $0x280] sm:$0xff]
    %v449 = vld [vmem:[#allocation12 + $0x288] sm:$0xff]
    %v450 = vld [vmem:[#allocation12 + $0x290] sm:$0xff]
    %v451 = vld [vmem:[#allocation12 + $0x298] sm:$0xff]
    %v452 = vld [vmem:[#allocation12 + $0x2a0] sm:$0xff]
    %v453 = vld [vmem:[#allocation12 + $0x2a8] sm:$0xff]
    %v454 = vld [vmem:[#allocation12 + $0x2b0] sm:$0xff]
    %v455 = vld [vmem:[#allocation12 + $0x2b8] sm:$0xff]
    %v456 = vld [vmem:[#allocation12 + $0x2c0] sm:$0xff]
    %v457 = vld [vmem:[#allocation12 + $0x2c8] sm:$0xff]
    %v458 = vld [vmem:[#allocation12 + $0x2d0] sm:$0xff]
    %v459 = vld [vmem:[#allocation12 + $0x2d8] sm:$0xff]
    %v460 = vld [vmem:[#allocation12 + $0x2e0] sm:$0xff]
    %v461 = vld [vmem:[#allocation12 + $0x2e8] sm:$0xff]
    %v462 = vld [vmem:[#allocation12 + $0x2f0] sm:$0xff]
    %v463 = vld [vmem:[#allocation12 + $0x2f8] sm:$0xff]
    %v464 = vld [vmem:[#allocation12 + $0x300] sm:$0xff]
    %v465 = vld [vmem:[#allocation12 + $0x308] sm:$0xff]
    %v466 = vld [vmem:[#allocation12 + $0x310] sm:$0xff]
    %v467 = vld [vmem:[#allocation12 + $0x318] sm:$0xff]
    %v468 = vld [vmem:[#allocation12 + $0x320] sm:$0xff]
    %v469 = vld [vmem:[#allocation12 + $0x328] sm:$0xff]
    %v470 = vld [vmem:[#allocation12 + $0x330] sm:$0xff]
    %v471 = vld [vmem:[#allocation12 + $0x338] sm:$0xff]
    %v472 = vld [vmem:[#allocation12 + $0x340] sm:$0xff]
    %v473 = vld [vmem:[#allocation12 + $0x348] sm:$0xff]
    %v474 = vld [vmem:[#allocation12 + $0x350] sm:$0xff]
    %v475 = vld [vmem:[#allocation12 + $0x358] sm:$0xff]
    %v476 = vld [vmem:[#allocation12 + $0x360] sm:$0xff]
    %v477 = vld [vmem:[#allocation12 + $0x368] sm:$0xff]
    %v478 = vld [vmem:[#allocation12 + $0x370] sm:$0xff]
    %v479 = vld [vmem:[#allocation12 + $0x378] sm:$0xff]
    %v480 = vld [vmem:[#allocation12 + $0x380] sm:$0xff]
    %v481 = vld [vmem:[#allocation12 + $0x388] sm:$0xff]
    %v482 = vld [vmem:[#allocation12 + $0x390] sm:$0xff]
    %v483 = vld [vmem:[#allocation12 + $0x398] sm:$0xff]
    %v484 = vld [vmem:[#allocation12 + $0x3a0] sm:$0xff]
    %v485 = vld [vmem:[#allocation12 + $0x3a8] sm:$0xff]
    %v486 = vld [vmem:[#allocation12 + $0x3b0] sm:$0xff]
    %v487 = vld [vmem:[#allocation12 + $0x3b8] sm:$0xff]
    %v488 = vld [vmem:[#allocation12 + $0x3c0] sm:$0xff]
    %v489 = vld [vmem:[#allocation12 + $0x3c8] sm:$0xff]
    %v490 = vld [vmem:[#allocation12 + $0x3d0] sm:$0xff]
    %v491 = vld [vmem:[#allocation12 + $0x3d8] sm:$0xff]
    %v492 = vld [vmem:[#allocation12 + $0x3e0] sm:$0xff]
    %v493 = vld [vmem:[#allocation12 + $0x3e8] sm:$0xff]
    %v494 = vld [vmem:[#allocation12 + $0x3f0] sm:$0xff]
    %v495 = vld [vmem:[#allocation12 + $0x3f8] sm:$0xff]
    %v496 = vld [vmem:[%s5] sm:$0xf]
    %v498 = vlaneseq
    %v499 = vshrl.u32 %v498, 7
    %v500 = vsub.s32 0, %v499
    %v501 = vrot.slane %v496, %v500
    %v502 = vlaneseq
    %v503 = vshrl.u32 %v502, 7
    %v504 = vsub.s32 1, %v503
    %v505 = vrot.slane %v496, %v504
    %v506 = vlaneseq
    %v507 = vshrl.u32 %v506, 7
    %v508 = vsub.s32 2, %v507
    %v509 = vrot.slane %v496, %v508
    %v510 = vlaneseq
    %v511 = vshrl.u32 %v510, 7
    %v512 = vsub.s32 3, %v511
    %v513 = vrot.slane %v496, %v512
    %518 = vmatprep.subr.mxu0 %v369
    %519 = vmatpush1.msra.mxu0 %v368
    %520 = vmatprep.subr.mxu0 %v373
    %521 = vmatpush1.msra.mxu0 %v372
    %522 = vmatprep.subr.mxu0 %v377
    %523 = vmatpush1.msra.mxu0 %v376
    %524 = vmatprep.subr.mxu0 %v381
    %525 = vmatpush1.msra.mxu0 %v380
    %526 = vmatprep.subr.mxu0 %v385
    %527 = vmatpush1.msra.mxu0 %v384
    %528 = vmatprep.subr.mxu0 %v389
    %529 = vmatpush1.msra.mxu0 %v388
    %530 = vmatprep.subr.mxu0 %v393
    %531 = vmatpush1.msra.mxu0 %v392
    %532 = vmatprep.subr.mxu0 %v397
    %533 = vmatpush1.msra.mxu0 %v396
    %534 = vmatprep.subr.mxu0 %v401
    %535 = vmatpush1.msra.mxu0 %v400
    %536 = vmatprep.subr.mxu0 %v405
    %537 = vmatpush1.msra.mxu0 %v404
    %538 = vmatprep.subr.mxu0 %v409
    %539 = vmatpush1.msra.mxu0 %v408
    %540 = vmatprep.subr.mxu0 %v413
    %541 = vmatpush1.msra.mxu0 %v412
    %542 = vmatprep.subr.mxu0 %v417
    %543 = vmatpush1.msra.mxu0 %v416
    %544 = vmatprep.subr.mxu0 %v421
    %545 = vmatpush1.msra.mxu0 %v420
    %546 = vmatprep.subr.mxu0 %v425
    %547 = vmatpush1.msra.mxu0 %v424
    %548 = vmatprep.subr.mxu0 %v429
    %549 = vmatpush1.msra.mxu0 %v428
    %550 = vmatprep.subr.mxu0 %v433
    %551 = vmatpush1.msra.mxu0 %v432
    %552 = vmatprep.subr.mxu0 %v437
    %553 = vmatpush1.msra.mxu0 %v436
    %554 = vmatprep.subr.mxu0 %v441
    %555 = vmatpush1.msra.mxu0 %v440
    %556 = vmatprep.subr.mxu0 %v445
    %557 = vmatpush1.msra.mxu0 %v444
    %558 = vmatprep.subr.mxu0 %v449
    %559 = vmatpush1.msra.mxu0 %v448
    %560 = vmatprep.subr.mxu0 %v453
    %561 = vmatpush1.msra.mxu0 %v452
    %562 = vmatprep.subr.mxu0 %v457
    %563 = vmatpush1.msra.mxu0 %v456
    %564 = vmatprep.subr.mxu0 %v461
    %565 = vmatpush1.msra.mxu0 %v460
    %566 = vmatprep.subr.mxu0 %v465
    %567 = vmatpush1.msra.mxu0 %v464
    %568 = vmatprep.subr.mxu0 %v469
    %569 = vmatpush1.msra.mxu0 %v468
    %570 = vmatprep.subr.mxu0 %v473
    %571 = vmatpush1.msra.mxu0 %v472
    %572 = vmatprep.subr.mxu0 %v477
    %573 = vmatpush1.msra.mxu0 %v476
    %574 = vmatprep.subr.mxu0 %v481
    %575 = vmatpush1.msra.mxu0 %v480
    %576 = vmatprep.subr.mxu0 %v485
    %577 = vmatpush1.msra.mxu0 %v484
    %578 = vmatprep.subr.mxu0 %v489
    %579 = vmatpush1.msra.mxu0 %v488
    %580 = vmatprep.subr.mxu0 %v493
    %581 = vmatpush1.msra.mxu0 %v492
    %582 = vmatprep.mubr.f32.mxu0 %v126
    %583 = vmatmul.mubr.f32.gmra.mrb[0].mxu0 %v367
    %v584 = vpop.f32.mrb[0].mxu0
    %v585 = vadd.f32 %v501, %v584
    %v586 = vpop.f32.mrb[0].mxu0
    %v587 = vadd.f32 %v505, %v586
    %588 = vdwg.mxu0
    %589 = vmatprep.subr.mxu0 %v371
    %590 = vmatpush1.msra.mxu0 %v370
    %591 = vmatprep.subr.mxu0 %v375
    %592 = vmatpush1.msra.mxu0 %v374
    %593 = vmatprep.subr.mxu0 %v379
    %594 = vmatpush1.msra.mxu0 %v378
    %595 = vmatprep.subr.mxu0 %v383
    %596 = vmatpush1.msra.mxu0 %v382
    %597 = vmatprep.subr.mxu0 %v387
    %598 = vmatpush1.msra.mxu0 %v386
    %599 = vmatprep.subr.mxu0 %v391
    %600 = vmatpush1.msra.mxu0 %v390
    %601 = vmatprep.subr.mxu0 %v395
    %602 = vmatpush1.msra.mxu0 %v394
    %603 = vmatprep.subr.mxu0 %v399
    %604 = vmatpush1.msra.mxu0 %v398
    %605 = vmatprep.subr.mxu0 %v403
    %606 = vmatpush1.msra.mxu0 %v402
    %607 = vmatprep.subr.mxu0 %v407
    %608 = vmatpush1.msra.mxu0 %v406
    %609 = vmatprep.subr.mxu0 %v411
    %610 = vmatpush1.msra.mxu0 %v410
    %611 = vmatprep.subr.mxu0 %v415
    %612 = vmatpush1.msra.mxu0 %v414
    %613 = vmatprep.subr.mxu0 %v419
    %614 = vmatpush1.msra.mxu0 %v418
    %615 = vmatprep.subr.mxu0 %v423
    %616 = vmatpush1.msra.mxu0 %v422
    %617 = vmatprep.subr.mxu0 %v427
    %618 = vmatpush1.msra.mxu0 %v426
    %619 = vmatprep.subr.mxu0 %v431
    %620 = vmatpush1.msra.mxu0 %v430
    %621 = vmatprep.subr.mxu0 %v435
    %622 = vmatpush1.msra.mxu0 %v434
    %623 = vmatprep.subr.mxu0 %v439
    %624 = vmatpush1.msra.mxu0 %v438
    %625 = vmatprep.subr.mxu0 %v443
    %626 = vmatpush1.msra.mxu0 %v442
    %627 = vmatprep.subr.mxu0 %v447
    %628 = vmatpush1.msra.mxu0 %v446
    %629 = vmatprep.subr.mxu0 %v451
    %630 = vmatpush1.msra.mxu0 %v450
    %631 = vmatprep.subr.mxu0 %v455
    %632 = vmatpush1.msra.mxu0 %v454
    %633 = vmatprep.subr.mxu0 %v459
    %634 = vmatpush1.msra.mxu0 %v458
    %635 = vmatprep.subr.mxu0 %v463
    %636 = vmatpush1.msra.mxu0 %v462
    %637 = vmatprep.subr.mxu0 %v467
    %638 = vmatpush1.msra.mxu0 %v466
    %639 = vmatprep.subr.mxu0 %v471
    %640 = vmatpush1.msra.mxu0 %v470
    %641 = vmatprep.subr.mxu0 %v475
    %642 = vmatpush1.msra.mxu0 %v474
    %643 = vmatprep.subr.mxu0 %v479
    %644 = vmatpush1.msra.mxu0 %v478
    %645 = vmatprep.subr.mxu0 %v483
    %646 = vmatpush1.msra.mxu0 %v482
    %647 = vmatprep.subr.mxu0 %v487
    %648 = vmatpush1.msra.mxu0 %v486
    %649 = vmatprep.subr.mxu0 %v491
    %650 = vmatpush1.msra.mxu0 %v490
    %651 = vmatprep.subr.mxu0 %v495
    %652 = vmatpush1.msra.mxu0 %v494
    %653 = vmatprep.mubr.f32.mxu0 %v126
    %654 = vmatmul.mubr.f32.gmra.mrb[0].mxu0 %v367
    %v655 = vpop.f32.mrb[0].mxu0
    %v656 = vadd.f32 %v509, %v655
    %v657 = vpop.f32.mrb[0].mxu0
    %v658 = vadd.f32 %v513, %v657
    %659 = vdwg.mxu0
    %v660 = vxor.u32 %v585, 2147483648
    %v661 = vxor.u32 %v587, 2147483648
    %v662 = vxor.u32 %v658, 2147483648
    %v663 = vmul.f32 %v660, 1.442695
    %v664 = vpow.pop %v663
    %v665 = vmul.f32 %v661, 1.442695
    %v666 = vpow.pop %v665
    %v667 = vmul.f32 %v662, 1.442695
    %v668 = vpow.pop %v667
    %v669 = vadd.f32 %v664, 1.0
    %v670 = vadd.f32 %v666, 1.0
    %v671 = vadd.f32 %v668, 1.0
    %v672 = vrcp.pop %v669
    %v673 = vmul.f32 1.0, %v672
    %v674 = vrcp.pop %v670
    %v675 = vmul.f32 1.0, %v674
    %v676 = vrcp.pop %v671
    %v677 = vmul.f32 1.0, %v676
    %v678 = vtanh.pop %v656
    %v679 = vmul.f32 %v675, %v129
    %v680 = vmul.f32 %v673, %v678
    %v681 = vadd.f32 %v679, %v680
    %v682 = vtanh.pop %v681
    %v683 = vmul.f32 %v677, %v682
    %s684 = scalar_lea.vmem [#allocation4], 32
    %v685 = vld [vmem:[%s684] sm:$0xff]
    %v686 = vld [vmem:[%s684 + $0x8] sm:$0xff]
    %v687 = vld [vmem:[%s684 + $0x10] sm:$0xff]
    %v688 = vld [vmem:[%s684 + $0x18] sm:$0xff]
    %689 = vmatprep.subr.mxu0 %v135
    %690 = vmatpush1.msra.mxu0 %v134
    %691 = vmatprep.subr.mxu0 %v139
    %692 = vmatpush1.msra.mxu0 %v138
    %693 = vmatprep.subr.mxu0 %v143
    %694 = vmatpush1.msra.mxu0 %v142
    %695 = vmatprep.subr.mxu0 %v147
    %696 = vmatpush1.msra.mxu0 %v146
    %697 = vmatprep.subr.mxu0 %v151
    %698 = vmatpush1.msra.mxu0 %v150
    %699 = vmatprep.subr.mxu0 %v155
    %700 = vmatpush1.msra.mxu0 %v154
    %701 = vmatprep.subr.mxu0 %v159
    %702 = vmatpush1.msra.mxu0 %v158
    %703 = vmatprep.subr.mxu0 %v163
    %704 = vmatpush1.msra.mxu0 %v162
    %705 = vmatprep.subr.mxu0 %v167
    %706 = vmatpush1.msra.mxu0 %v166
    %707 = vmatprep.subr.mxu0 %v171
    %708 = vmatpush1.msra.mxu0 %v170
    %709 = vmatprep.subr.mxu0 %v175
    %710 = vmatpush1.msra.mxu0 %v174
    %711 = vmatprep.subr.mxu0 %v179
    %712 = vmatpush1.msra.mxu0 %v178
    %713 = vmatprep.subr.mxu0 %v183
    %714 = vmatpush1.msra.mxu0 %v182
    %715 = vmatprep.subr.mxu0 %v187
    %716 = vmatpush1.msra.mxu0 %v186
    %717 = vmatprep.subr.mxu0 %v191
    %718 = vmatpush1.msra.mxu0 %v190
    %719 = vmatprep.subr.mxu0 %v195
    %720 = vmatpush1.msra.mxu0 %v194
    %721 = vmatprep.subr.mxu0 0.0
    %722 = vmatpush1.msra.mxu0 0.0
    %723 = vmatprep.subr.mxu0 0.0
    %724 = vmatpush1.msra.mxu0 0.0
    %725 = vmatprep.subr.mxu0 0.0
    %726 = vmatpush1.msra.mxu0 0.0
    %727 = vmatprep.subr.mxu0 0.0
    %728 = vmatpush1.msra.mxu0 0.0
    %729 = vmatprep.subr.mxu0 0.0
    %730 = vmatpush1.msra.mxu0 0.0
    %731 = vmatprep.subr.mxu0 0.0
    %732 = vmatpush1.msra.mxu0 0.0
    %733 = vmatprep.subr.mxu0 0.0
    %734 = vmatpush1.msra.mxu0 0.0
    %735 = vmatprep.subr.mxu0 0.0
    %736 = vmatpush1.msra.mxu0 0.0
    %737 = vmatprep.subr.mxu0 0.0
    %738 = vmatpush1.msra.mxu0 0.0
    %739 = vmatprep.subr.mxu0 0.0
    %740 = vmatpush1.msra.mxu0 0.0
    %741 = vmatprep.subr.mxu0 0.0
    %742 = vmatpush1.msra.mxu0 0.0
    %743 = vmatprep.subr.mxu0 0.0
    %744 = vmatpush1.msra.mxu0 0.0
    %745 = vmatprep.subr.mxu0 0.0
    %746 = vmatpush1.msra.mxu0 0.0
    %747 = vmatprep.subr.mxu0 0.0
    %748 = vmatpush1.msra.mxu0 0.0
    %749 = vmatprep.subr.mxu0 0.0
    %750 = vmatpush1.msra.mxu0 0.0
    %751 = vmatprep.subr.mxu0 0.0
    %752 = vmatpush1.msra.mxu0 0.0
    %753 = vmatprep.mubr.f32.mxu0 0.0
    %754 = vmatmul.mubr.f32.gmra.mrb[0].mxu0 %v367
    %v755 = vpop.f32.mrb[0].mxu0
    %v756 = vadd.f32 0.0, %v755
    %v757 = vpop.f32.mrb[0].mxu0
    %v758 = vadd.f32 0.0, %v757
    %759 = vdwg.mxu0
    %760 = vmatprep.subr.mxu0 %v137
    %761 = vmatpush1.msra.mxu0 %v136
    %762 = vmatprep.subr.mxu0 %v141
    %763 = vmatpush1.msra.mxu0 %v140
    %764 = vmatprep.subr.mxu0 %v145
    %765 = vmatpush1.msra.mxu0 %v144
    %766 = vmatprep.subr.mxu0 %v149
    %767 = vmatpush1.msra.mxu0 %v148
    %768 = vmatprep.subr.mxu0 %v153
    %769 = vmatpush1.msra.mxu0 %v152
    %770 = vmatprep.subr.mxu0 %v157
    %771 = vmatpush1.msra.mxu0 %v156
    %772 = vmatprep.subr.mxu0 %v161
    %773 = vmatpush1.msra.mxu0 %v160
    %774 = vmatprep.subr.mxu0 %v165
    %775 = vmatpush1.msra.mxu0 %v164
    %776 = vmatprep.subr.mxu0 %v169
    %777 = vmatpush1.msra.mxu0 %v168
    %778 = vmatprep.subr.mxu0 %v173
    %779 = vmatpush1.msra.mxu0 %v172
    %780 = vmatprep.subr.mxu0 %v177
    %781 = vmatpush1.msra.mxu0 %v176
    %782 = vmatprep.subr.mxu0 %v181
    %783 = vmatpush1.msra.mxu0 %v180
    %784 = vmatprep.subr.mxu0 %v185
    %785 = vmatpush1.msra.mxu0 %v184
    %786 = vmatprep.subr.mxu0 %v189
    %787 = vmatpush1.msra.mxu0 %v188
    %788 = vmatprep.subr.mxu0 %v193
    %789 = vmatpush1.msra.mxu0 %v192
    %790 = vmatprep.subr.mxu0 %v197
    %791 = vmatpush1.msra.mxu0 %v196
    %792 = vmatprep.subr.mxu0 0.0
    %793 = vmatpush1.msra.mxu0 0.0
    %794 = vmatprep.subr.mxu0 0.0
    %795 = vmatpush1.msra.mxu0 0.0
    %796 = vmatprep.subr.mxu0 0.0
    %797 = vmatpush1.msra.mxu0 0.0
    %798 = vmatprep.subr.mxu0 0.0
    %799 = vmatpush1.msra.mxu0 0.0
    %800 = vmatprep.subr.mxu0 0.0
    %801 = vmatpush1.msra.mxu0 0.0
    %802 = vmatprep.subr.mxu0 0.0
    %803 = vmatpush1.msra.mxu0 0.0
    %804 = vmatprep.subr.mxu0 0.0
    %805 = vmatpush1.msra.mxu0 0.0
    %806 = vmatprep.subr.mxu0 0.0
    %807 = vmatpush1.msra.mxu0 0.0
    %808 = vmatprep.subr.mxu0 0.0
    %809 = vmatpush1.msra.mxu0 0.0
    %810 = vmatprep.subr.mxu0 0.0
    %811 = vmatpush1.msra.mxu0 0.0
    %812 = vmatprep.subr.mxu0 0.0
    %813 = vmatpush1.msra.mxu0 0.0
    %814 = vmatprep.subr.mxu0 0.0
    %815 = vmatpush1.msra.mxu0 0.0
    %816 = vmatprep.subr.mxu0 0.0
    %817 = vmatpush1.msra.mxu0 0.0
    %818 = vmatprep.subr.mxu0 0.0
    %819 = vmatpush1.msra.mxu0 0.0
    %820 = vmatprep.subr.mxu0 0.0
    %821 = vmatpush1.msra.mxu0 0.0
    %822 = vmatprep.subr.mxu0 0.0
    %823 = vmatpush1.msra.mxu0 0.0
    %824 = vmatprep.mubr.f32.mxu0 0.0
    %825 = vmatmul.mubr.f32.gmra.mrb[0].mxu0 %v367
    %v826 = vpop.f32.mrb[0].mxu0
    %v827 = vadd.f32 0.0, %v826
    %v828 = vpop.f32.mrb[0].mxu0
    %v829 = vadd.f32 0.0, %v828
    %830 = vdwg.mxu0
    %v831 = vadd.f32 %v685, %v756
    %v832 = vadd.f32 %v686, %v758
    %v833 = vadd.f32 %v687, %v827
    %v834 = vadd.f32 %v688, %v829
    %v835 = vxor.u32 %v831, 2147483648
    %v836 = vxor.u32 %v832, 2147483648
    %v837 = vxor.u32 %v834, 2147483648
    %v838 = vmul.f32 %v835, 1.442695
    %v839 = vpow.pop %v838
    %v840 = vmul.f32 %v836, 1.442695
    %v841 = vpow.pop %v840
    %v842 = vmul.f32 %v837, 1.442695
    %v843 = vpow.pop %v842
    %v844 = vadd.f32 %v839, 1.0
    %v845 = vadd.f32 %v841, 1.0
    %v846 = vadd.f32 %v843, 1.0
    %v847 = vrcp.pop %v844
    %v848 = vmul.f32 1.0, %v847
    %v849 = vrcp.pop %v845
    %v850 = vmul.f32 1.0, %v849
    %v851 = vrcp.pop %v846
    %v852 = vmul.f32 1.0, %v851
    %v853 = vtanh.pop %v833
    %v854 = vmul.f32 %v850, %v365
    %v855 = vmul.f32 %v848, %v853
    %v856 = vadd.f32 %v854, %v855
    %v857 = vtanh.pop %v856
    %v858 = vmul.f32 %v852, %v857
    %859 = vmatprep.subr.mxu0 %v369
    %860 = vmatpush1.msra.mxu0 %v368
    %861 = vmatprep.subr.mxu0 %v373
    %862 = vmatpush1.msra.mxu0 %v372
    %863 = vmatprep.subr.mxu0 %v377
    %864 = vmatpush1.msra.mxu0 %v376
    %865 = vmatprep.subr.mxu0 %v381
    %866 = vmatpush1.msra.mxu0 %v380
    %867 = vmatprep.subr.mxu0 %v385
    %868 = vmatpush1.msra.mxu0 %v384
    %869 = vmatprep.subr.mxu0 %v389
    %870 = vmatpush1.msra.mxu0 %v388
    %871 = vmatprep.subr.mxu0 %v393
    %872 = vmatpush1.msra.mxu0 %v392
    %873 = vmatprep.subr.mxu0 %v397
    %874 = vmatpush1.msra.mxu0 %v396
    %875 = vmatprep.subr.mxu0 %v401
    %876 = vmatpush1.msra.mxu0 %v400
    %877 = vmatprep.subr.mxu0 %v405
    %878 = vmatpush1.msra.mxu0 %v404
    %879 = vmatprep.subr.mxu0 %v409
    %880 = vmatpush1.msra.mxu0 %v408
    %881 = vmatprep.subr.mxu0 %v413
    %882 = vmatpush1.msra.mxu0 %v412
    %883 = vmatprep.subr.mxu0 %v417
    %884 = vmatpush1.msra.mxu0 %v416
    %885 = vmatprep.subr.mxu0 %v421
    %886 = vmatpush1.msra.mxu0 %v420
    %887 = vmatprep.subr.mxu0 %v425
    %888 = vmatpush1.msra.mxu0 %v424
    %889 = vmatprep.subr.mxu0 %v429
    %890 = vmatpush1.msra.mxu0 %v428
    %891 = vmatprep.subr.mxu0 %v433
    %892 = vmatpush1.msra.mxu0 %v432
    %893 = vmatprep.subr.mxu0 %v437
    %894 = vmatpush1.msra.mxu0 %v436
    %895 = vmatprep.subr.mxu0 %v441
    %896 = vmatpush1.msra.mxu0 %v440
    %897 = vmatprep.subr.mxu0 %v445
    %898 = vmatpush1.msra.mxu0 %v444
    %899 = vmatprep.subr.mxu0 %v449
    %900 = vmatpush1.msra.mxu0 %v448
    %901 = vmatprep.subr.mxu0 %v453
    %902 = vmatpush1.msra.mxu0 %v452
    %903 = vmatprep.subr.mxu0 %v457
    %904 = vmatpush1.msra.mxu0 %v456
    %905 = vmatprep.subr.mxu0 %v461
    %906 = vmatpush1.msra.mxu0 %v460
    %907 = vmatprep.subr.mxu0 %v465
    %908 = vmatpush1.msra.mxu0 %v464
    %909 = vmatprep.subr.mxu0 %v469
    %910 = vmatpush1.msra.mxu0 %v468
    %911 = vmatprep.subr.mxu0 %v473
    %912 = vmatpush1.msra.mxu0 %v472
    %913 = vmatprep.subr.mxu0 %v477
    %914 = vmatpush1.msra.mxu0 %v476
    %915 = vmatprep.subr.mxu0 %v481
    %916 = vmatpush1.msra.mxu0 %v480
    %917 = vmatprep.subr.mxu0 %v485
    %918 = vmatpush1.msra.mxu0 %v484
    %919 = vmatprep.subr.mxu0 %v489
    %920 = vmatpush1.msra.mxu0 %v488
    %921 = vmatprep.subr.mxu0 %v493
    %922 = vmatpush1.msra.mxu0 %v492
    %923 = vmatprep.mubr.f32.mxu0 %v683
    %924 = vmatmul.mubr.f32.gmra.mrb[0].mxu0 %v858
    %v925 = vpop.f32.mrb[0].mxu0
    %v926 = vadd.f32 %v501, %v925
    %v927 = vpop.f32.mrb[0].mxu0
    %v928 = vadd.f32 %v505, %v927
    %929 = vdwg.mxu0
    %930 = vmatprep.subr.mxu0 %v371
    %931 = vmatpush1.msra.mxu0 %v370
    %932 = vmatprep.subr.mxu0 %v375
    %933 = vmatpush1.msra.mxu0 %v374
    %934 = vmatprep.subr.mxu0 %v379
    %935 = vmatpush1.msra.mxu0 %v378
    %936 = vmatprep.subr.mxu0 %v383
    %937 = vmatpush1.msra.mxu0 %v382
    %938 = vmatprep.subr.mxu0 %v387
    %939 = vmatpush1.msra.mxu0 %v386
    %940 = vmatprep.subr.mxu0 %v391
    %941 = vmatpush1.msra.mxu0 %v390
    %942 = vmatprep.subr.mxu0 %v395
    %943 = vmatpush1.msra.mxu0 %v394
    %944 = vmatprep.subr.mxu0 %v399
    %945 = vmatpush1.msra.mxu0 %v398
    %946 = vmatprep.subr.mxu0 %v403
    %947 = vmatpush1.msra.mxu0 %v402
    %948 = vmatprep.subr.mxu0 %v407
    %949 = vmatpush1.msra.mxu0 %v406
    %950 = vmatprep.subr.mxu0 %v411
    %951 = vmatpush1.msra.mxu0 %v410
    %952 = vmatprep.subr.mxu0 %v415
    %953 = vmatpush1.msra.mxu0 %v414
    %954 = vmatprep.subr.mxu0 %v419
    %955 = vmatpush1.msra.mxu0 %v418
    %956 = vmatprep.subr.mxu0 %v423
    %957 = vmatpush1.msra.mxu0 %v422
    %958 = vmatprep.subr.mxu0 %v427
    %959 = vmatpush1.msra.mxu0 %v426
    %960 = vmatprep.subr.mxu0 %v431
    %961 = vmatpush1.msra.mxu0 %v430
    %962 = vmatprep.subr.mxu0 %v435
    %963 = vmatpush1.msra.mxu0 %v434
    %964 = vmatprep.subr.mxu0 %v439
    %965 = vmatpush1.msra.mxu0 %v438
    %966 = vmatprep.subr.mxu0 %v443
    %967 = vmatpush1.msra.mxu0 %v442
    %968 = vmatprep.subr.mxu0 %v447
    %969 = vmatpush1.msra.mxu0 %v446
    %970 = vmatprep.subr.mxu0 %v451
    %971 = vmatpush1.msra.mxu0 %v450
    %972 = vmatprep.subr.mxu0 %v455
    %973 = vmatpush1.msra.mxu0 %v454
    %974 = vmatprep.subr.mxu0 %v459
    %975 = vmatpush1.msra.mxu0 %v458
    %976 = vmatprep.subr.mxu0 %v463
    %977 = vmatpush1.msra.mxu0 %v462
    %978 = vmatprep.subr.mxu0 %v467
    %979 = vmatpush1.msra.mxu0 %v466
    %980 = vmatprep.subr.mxu0 %v471
    %981 = vmatpush1.msra.mxu0 %v470
    %982 = vmatprep.subr.mxu0 %v475
    %983 = vmatpush1.msra.mxu0 %v474
    %984 = vmatprep.subr.mxu0 %v479
    %985 = vmatpush1.msra.mxu0 %v478
    %986 = vmatprep.subr.mxu0 %v483
    %987 = vmatpush1.msra.mxu0 %v482
    %988 = vmatprep.subr.mxu0 %v487
    %989 = vmatpush1.msra.mxu0 %v486
    %990 = vmatprep.subr.mxu0 %v491
    %991 = vmatpush1.msra.mxu0 %v490
    %992 = vmatprep.subr.mxu0 %v495
    %993 = vmatpush1.msra.mxu0 %v494
    %994 = vmatprep.mubr.f32.mxu0 %v683
    %995 = vmatmul.mubr.f32.gmra.mrb[0].mxu0 %v858
    %v996 = vpop.f32.mrb[0].mxu0
    %v997 = vadd.f32 %v509, %v996
    %v998 = vpop.f32.mrb[0].mxu0
    %v999 = vadd.f32 %v513, %v998
    %1000 = vdwg.mxu0
    %v1001 = vxor.u32 %v926, 2147483648
    %v1002 = vxor.u32 %v928, 2147483648
    %v1003 = vxor.u32 %v999, 2147483648
    %v1004 = vmul.f32 %v1001, 1.442695
    %v1005 = vpow.pop %v1004
    %v1006 = vmul.f32 %v1002, 1.442695
    %v1007 = vpow.pop %v1006
    %v1008 = vmul.f32 %v1003, 1.442695
    %v1009 = vpow.pop %v1008
    %v1010 = vadd.f32 %v1005, 1.0
    %v1011 = vadd.f32 %v1007, 1.0
    %v1012 = vadd.f32 %v1009, 1.0
    %v1013 = vrcp.pop %v1010
    %v1014 = vmul.f32 1.0, %v1013
    %v1015 = vrcp.pop %v1011
    %v1016 = vmul.f32 1.0, %v1015
    %v1017 = vrcp.pop %v1012
    %v1018 = vmul.f32 1.0, %v1017
    %v1019 = vtanh.pop %v997
    %v1020 = vmul.f32 %v1016, %v681
    %v1021 = vmul.f32 %v1014, %v1019
    %v1022 = vadd.f32 %v1020, %v1021
    %v1023 = vtanh.pop %v1022
    %v1024 = vmul.f32 %v1018, %v1023
    %s1025 = scalar_lea.vmem [#allocation4], 64
    %v1026 = vld [vmem:[%s1025] sm:$0xff]
    %v1027 = vld [vmem:[%s1025 + $0x8] sm:$0xff]
    %v1028 = vld [vmem:[%s1025 + $0x10] sm:$0xff]
    %v1029 = vld [vmem:[%s1025 + $0x18] sm:$0xff]
    %1030 = vmatprep.subr.mxu0 %v135
    %1031 = vmatpush1.msra.mxu0 %v134
    %1032 = vmatprep.subr.mxu0 %v139
    %1033 = vmatpush1.msra.mxu0 %v138
    %1034 = vmatprep.subr.mxu0 %v143
    %1035 = vmatpush1.msra.mxu0 %v142
    %1036 = vmatprep.subr.mxu0 %v147
    %1037 = vmatpush1.msra.mxu0 %v146
    %1038 = vmatprep.subr.mxu0 %v151
    %1039 = vmatpush1.msra.mxu0 %v150
    %1040 = vmatprep.subr.mxu0 %v155
    %1041 = vmatpush1.msra.mxu0 %v154
    %1042 = vmatprep.subr.mxu0 %v159
    %1043 = vmatpush1.msra.mxu0 %v158
    %1044 = vmatprep.subr.mxu0 %v163
    %1045 = vmatpush1.msra.mxu0 %v162
    %1046 = vmatprep.subr.mxu0 %v167
    %1047 = vmatpush1.msra.mxu0 %v166
    %1048 = vmatprep.subr.mxu0 %v171
    %1049 = vmatpush1.msra.mxu0 %v170
    %1050 = vmatprep.subr.mxu0 %v175
    %1051 = vmatpush1.msra.mxu0 %v174
    %1052 = vmatprep.subr.mxu0 %v179
    %1053 = vmatpush1.msra.mxu0 %v178
    %1054 = vmatprep.subr.mxu0 %v183
    %1055 = vmatpush1.msra.mxu0 %v182
    %1056 = vmatprep.subr.mxu0 %v187
    %1057 = vmatpush1.msra.mxu0 %v186
    %1058 = vmatprep.subr.mxu0 %v191
    %1059 = vmatpush1.msra.mxu0 %v190
    %1060 = vmatprep.subr.mxu0 %v195
    %1061 = vmatpush1.msra.mxu0 %v194
    %1062 = vmatprep.subr.mxu0 0.0
    %1063 = vmatpush1.msra.mxu0 0.0
    %1064 = vmatprep.subr.mxu0 0.0
    %1065 = vmatpush1.msra.mxu0 0.0
    %1066 = vmatprep.subr.mxu0 0.0
    %1067 = vmatpush1.msra.mxu0 0.0
    %1068 = vmatprep.subr.mxu0 0.0
    %1069 = vmatpush1.msra.mxu0 0.0
    %1070 = vmatprep.subr.mxu0 0.0
    %1071 = vmatpush1.msra.mxu0 0.0
    %1072 = vmatprep.subr.mxu0 0.0
    %1073 = vmatpush1.msra.mxu0 0.0
    %1074 = vmatprep.subr.mxu0 0.0
    %1075 = vmatpush1.msra.mxu0 0.0
    %1076 = vmatprep.subr.mxu0 0.0
    %1077 = vmatpush1.msra.mxu0 0.0
    %1078 = vmatprep.subr.mxu0 0.0
    %1079 = vmatpush1.msra.mxu0 0.0
    %1080 = vmatprep.subr.mxu0 0.0
    %1081 = vmatpush1.msra.mxu0 0.0
    %1082 = vmatprep.subr.mxu0 0.0
    %1083 = vmatpush1.msra.mxu0 0.0
    %1084 = vmatprep.subr.mxu0 0.0
    %1085 = vmatpush1.msra.mxu0 0.0
    %1086 = vmatprep.subr.mxu0 0.0
    %1087 = vmatpush1.msra.mxu0 0.0
    %1088 = vmatprep.subr.mxu0 0.0
    %1089 = vmatpush1.msra.mxu0 0.0
    %1090 = vmatprep.subr.mxu0 0.0
    %1091 = vmatpush1.msra.mxu0 0.0
    %1092 = vmatprep.subr.mxu0 0.0
    %1093 = vmatpush1.msra.mxu0 0.0
    %1094 = vmatprep.mubr.f32.mxu0 0.0
    %1095 = vmatmul.mubr.f32.gmra.mrb[0].mxu0 %v858
    %v1096 = vpop.f32.mrb[0].mxu0
    %v1097 = vadd.f32 0.0, %v1096
    %v1098 = vpop.f32.mrb[0].mxu0
    %v1099 = vadd.f32 0.0, %v1098
    %1100 = vdwg.mxu0
    %1101 = vmatprep.subr.mxu0 %v137
    %1102 = vmatpush1.msra.mxu0 %v136
    %1103 = vmatprep.subr.mxu0 %v141
    %1104 = vmatpush1.msra.mxu0 %v140
    %1105 = vmatprep.subr.mxu0 %v145
    %1106 = vmatpush1.msra.mxu0 %v144
    %1107 = vmatprep.subr.mxu0 %v149
    %1108 = vmatpush1.msra.mxu0 %v148
    %1109 = vmatprep.subr.mxu0 %v153
    %1110 = vmatpush1.msra.mxu0 %v152
    %1111 = vmatprep.subr.mxu0 %v157
    %1112 = vmatpush1.msra.mxu0 %v156
    %1113 = vmatprep.subr.mxu0 %v161
    %1114 = vmatpush1.msra.mxu0 %v160
    %1115 = vmatprep.subr.mxu0 %v165
    %1116 = vmatpush1.msra.mxu0 %v164
    %1117 = vmatprep.subr.mxu0 %v169
    %1118 = vmatpush1.msra.mxu0 %v168
    %1119 = vmatprep.subr.mxu0 %v173
    %1120 = vmatpush1.msra.mxu0 %v172
    %1121 = vmatprep.subr.mxu0 %v177
    %1122 = vmatpush1.msra.mxu0 %v176
    %1123 = vmatprep.subr.mxu0 %v181
    %1124 = vmatpush1.msra.mxu0 %v180
    %1125 = vmatprep.subr.mxu0 %v185
    %1126 = vmatpush1.msra.mxu0 %v184
    %1127 = vmatprep.subr.mxu0 %v189
    %1128 = vmatpush1.msra.mxu0 %v188
    %1129 = vmatprep.subr.mxu0 %v193
    %1130 = vmatpush1.msra.mxu0 %v192
    %1131 = vmatprep.subr.mxu0 %v197
    %1132 = vmatpush1.msra.mxu0 %v196
    %1133 = vmatprep.subr.mxu0 0.0
    %1134 = vmatpush1.msra.mxu0 0.0
    %1135 = vmatprep.subr.mxu0 0.0
    %1136 = vmatpush1.msra.mxu0 0.0
    %1137 = vmatprep.subr.mxu0 0.0
    %1138 = vmatpush1.msra.mxu0 0.0
    %1139 = vmatprep.subr.mxu0 0.0
    %1140 = vmatpush1.msra.mxu0 0.0
    %1141 = vmatprep.subr.mxu0 0.0
    %1142 = vmatpush1.msra.mxu0 0.0
    %1143 = vmatprep.subr.mxu0 0.0
    %1144 = vmatpush1.msra.mxu0 0.0
    %1145 = vmatprep.subr.mxu0 0.0
    %1146 = vmatpush1.msra.mxu0 0.0
    %1147 = vmatprep.subr.mxu0 0.0
    %1148 = vmatpush1.msra.mxu0 0.0
    %1149 = vmatprep.subr.mxu0 0.0
    %1150 = vmatpush1.msra.mxu0 0.0
    %1151 = vmatprep.subr.mxu0 0.0
    %1152 = vmatpush1.msra.mxu0 0.0
    %1153 = vmatprep.subr.mxu0 0.0
    %1154 = vmatpush1.msra.mxu0 0.0
    %1155 = vmatprep.subr.mxu0 0.0
    %1156 = vmatpush1.msra.mxu0 0.0
    %1157 = vmatprep.subr.mxu0 0.0
    %1158 = vmatpush1.msra.mxu0 0.0
    %1159 = vmatprep.subr.mxu0 0.0
    %1160 = vmatpush1.msra.mxu0 0.0
    %1161 = vmatprep.subr.mxu0 0.0
    %1162 = vmatpush1.msra.mxu0 0.0
    %1163 = vmatprep.subr.mxu0 0.0
    %1164 = vmatpush1.msra.mxu0 0.0
    %1165 = vmatprep.mubr.f32.mxu0 0.0
    %1166 = vmatmul.mubr.f32.gmra.mrb[0].mxu0 %v858
    %v1167 = vpop.f32.mrb[0].mxu0
    %v1168 = vadd.f32 0.0, %v1167
    %v1169 = vpop.f32.mrb[0].mxu0
    %v1170 = vadd.f32 0.0, %v1169
    %1171 = vdwg.mxu0
    %v1172 = vadd.f32 %v1026, %v1097
    %v1173 = vadd.f32 %v1027, %v1099
    %v1174 = vadd.f32 %v1028, %v1168
    %v1175 = vadd.f32 %v1029, %v1170
    %v1176 = vxor.u32 %v1172, 2147483648
    %v1177 = vxor.u32 %v1173, 2147483648
    %v1178 = vxor.u32 %v1175, 2147483648
    %v1179 = vmul.f32 %v1176, 1.442695
    %v1180 = vpow.pop %v1179
    %v1181 = vmul.f32 %v1177, 1.442695
    %v1182 = vpow.pop %v1181
    %v1183 = vmul.f32 %v1178, 1.442695
    %v1184 = vpow.pop %v1183
    %v1185 = vadd.f32 %v1180, 1.0
    %v1186 = vadd.f32 %v1182, 1.0
    %v1187 = vadd.f32 %v1184, 1.0
    %v1188 = vrcp.pop %v1185
    %v1189 = vmul.f32 1.0, %v1188
    %v1190 = vrcp.pop %v1186
    %v1191 = vmul.f32 1.0, %v1190
    %v1192 = vrcp.pop %v1187
    %v1193 = vmul.f32 1.0, %v1192
    %v1194 = vtanh.pop %v1174
    %v1195 = vmul.f32 %v1191, %v856
    %v1196 = vmul.f32 %v1189, %v1194
    %v1197 = vadd.f32 %v1195, %v1196
    %v1198 = vtanh.pop %v1197
    %v1199 = vmul.f32 %v1193, %v1198
    %1200 = vmatprep.subr.mxu0 %v369
    %1201 = vmatpush1.msra.mxu0 %v368
    %1202 = vmatprep.subr.mxu0 %v373
    %1203 = vmatpush1.msra.mxu0 %v372
    %1204 = vmatprep.subr.mxu0 %v377
    %1205 = vmatpush1.msra.mxu0 %v376
    %1206 = vmatprep.subr.mxu0 %v381
    %1207 = vmatpush1.msra.mxu0 %v380
    %1208 = vmatprep.subr.mxu0 %v385
    %1209 = vmatpush1.msra.mxu0 %v384
    %1210 = vmatprep.subr.mxu0 %v389
    %1211 = vmatpush1.msra.mxu0 %v388
    %1212 = vmatprep.subr.mxu0 %v393
    %1213 = vmatpush1.msra.mxu0 %v392
    %1214 = vmatprep.subr.mxu0 %v397
    %1215 = vmatpush1.msra.mxu0 %v396
    %1216 = vmatprep.subr.mxu0 %v401
    %1217 = vmatpush1.msra.mxu0 %v400
    %1218 = vmatprep.subr.mxu0 %v405
    %1219 = vmatpush1.msra.mxu0 %v404
    %1220 = vmatprep.subr.mxu0 %v409
    %1221 = vmatpush1.msra.mxu0 %v408
    %1222 = vmatprep.subr.mxu0 %v413
    %1223 = vmatpush1.msra.mxu0 %v412
    %1224 = vmatprep.subr.mxu0 %v417
    %1225 = vmatpush1.msra.mxu0 %v416
    %1226 = vmatprep.subr.mxu0 %v421
    %1227 = vmatpush1.msra.mxu0 %v420
    %1228 = vmatprep.subr.mxu0 %v425
    %1229 = vmatpush1.msra.mxu0 %v424
    %1230 = vmatprep.subr.mxu0 %v429
    %1231 = vmatpush1.msra.mxu0 %v428
    %1232 = vmatprep.subr.mxu0 %v433
    %1233 = vmatpush1.msra.mxu0 %v432
    %1234 = vmatprep.subr.mxu0 %v437
    %1235 = vmatpush1.msra.mxu0 %v436
    %1236 = vmatprep.subr.mxu0 %v441
    %1237 = vmatpush1.msra.mxu0 %v440
    %1238 = vmatprep.subr.mxu0 %v445
    %1239 = vmatpush1.msra.mxu0 %v444
    %1240 = vmatprep.subr.mxu0 %v449
    %1241 = vmatpush1.msra.mxu0 %v448
    %1242 = vmatprep.subr.mxu0 %v453
    %1243 = vmatpush1.msra.mxu0 %v452
    %1244 = vmatprep.subr.mxu0 %v457
    %1245 = vmatpush1.msra.mxu0 %v456
    %1246 = vmatprep.subr.mxu0 %v461
    %1247 = vmatpush1.msra.mxu0 %v460
    %1248 = vmatprep.subr.mxu0 %v465
    %1249 = vmatpush1.msra.mxu0 %v464
    %1250 = vmatprep.subr.mxu0 %v469
    %1251 = vmatpush1.msra.mxu0 %v468
    %1252 = vmatprep.subr.mxu0 %v473
    %1253 = vmatpush1.msra.mxu0 %v472
    %1254 = vmatprep.subr.mxu0 %v477
    %1255 = vmatpush1.msra.mxu0 %v476
    %1256 = vmatprep.subr.mxu0 %v481
    %1257 = vmatpush1.msra.mxu0 %v480
    %1258 = vmatprep.subr.mxu0 %v485
    %1259 = vmatpush1.msra.mxu0 %v484
    %1260 = vmatprep.subr.mxu0 %v489
    %1261 = vmatpush1.msra.mxu0 %v488
    %1262 = vmatprep.subr.mxu0 %v493
    %1263 = vmatpush1.msra.mxu0 %v492
    %1264 = vmatprep.mubr.f32.mxu0 %v1024
    %1265 = vmatmul.mubr.f32.gmra.mrb[0].mxu0 %v1199
    %v1266 = vpop.f32.mrb[0].mxu0
    %v1267 = vadd.f32 %v501, %v1266
    %v1268 = vpop.f32.mrb[0].mxu0
    %v1269 = vadd.f32 %v505, %v1268
    %1270 = vdwg.mxu0
    %1271 = vmatprep.subr.mxu0 %v371
    %1272 = vmatpush1.msra.mxu0 %v370
    %1273 = vmatprep.subr.mxu0 %v375
    %1274 = vmatpush1.msra.mxu0 %v374
    %1275 = vmatprep.subr.mxu0 %v379
    %1276 = vmatpush1.msra.mxu0 %v378
    %1277 = vmatprep.subr.mxu0 %v383
    %1278 = vmatpush1.msra.mxu0 %v382
    %1279 = vmatprep.subr.mxu0 %v387
    %1280 = vmatpush1.msra.mxu0 %v386
    %1281 = vmatprep.subr.mxu0 %v391
    %1282 = vmatpush1.msra.mxu0 %v390
    %1283 = vmatprep.subr.mxu0 %v395
    %1284 = vmatpush1.msra.mxu0 %v394
    %1285 = vmatprep.subr.mxu0 %v399
    %1286 = vmatpush1.msra.mxu0 %v398
    %1287 = vmatprep.subr.mxu0 %v403
    %1288 = vmatpush1.msra.mxu0 %v402
    %1289 = vmatprep.subr.mxu0 %v407
    %1290 = vmatpush1.msra.mxu0 %v406
    %1291 = vmatprep.subr.mxu0 %v411
    %1292 = vmatpush1.msra.mxu0 %v410
    %1293 = vmatprep.subr.mxu0 %v415
    %1294 = vmatpush1.msra.mxu0 %v414
    %1295 = vmatprep.subr.mxu0 %v419
    %1296 = vmatpush1.msra.mxu0 %v418
    %1297 = vmatprep.subr.mxu0 %v423
    %1298 = vmatpush1.msra.mxu0 %v422
    %1299 = vmatprep.subr.mxu0 %v427
    %1300 = vmatpush1.msra.mxu0 %v426
    %1301 = vmatprep.subr.mxu0 %v431
    %1302 = vmatpush1.msra.mxu0 %v430
    %1303 = vmatprep.subr.mxu0 %v435
    %1304 = vmatpush1.msra.mxu0 %v434
    %1305 = vmatprep.subr.mxu0 %v439
    %1306 = vmatpush1.msra.mxu0 %v438
    %1307 = vmatprep.subr.mxu0 %v443
    %1308 = vmatpush1.msra.mxu0 %v442
    %1309 = vmatprep.subr.mxu0 %v447
    %1310 = vmatpush1.msra.mxu0 %v446
    %1311 = vmatprep.subr.mxu0 %v451
    %1312 = vmatpush1.msra.mxu0 %v450
    %1313 = vmatprep.subr.mxu0 %v455
    %1314 = vmatpush1.msra.mxu0 %v454
    %1315 = vmatprep.subr.mxu0 %v459
    %1316 = vmatpush1.msra.mxu0 %v458
    %1317 = vmatprep.subr.mxu0 %v463
    %1318 = vmatpush1.msra.mxu0 %v462
    %1319 = vmatprep.subr.mxu0 %v467
    %1320 = vmatpush1.msra.mxu0 %v466
    %1321 = vmatprep.subr.mxu0 %v471
    %1322 = vmatpush1.msra.mxu0 %v470
    %1323 = vmatprep.subr.mxu0 %v475
    %1324 = vmatpush1.msra.mxu0 %v474
    %1325 = vmatprep.subr.mxu0 %v479
    %1326 = vmatpush1.msra.mxu0 %v478
    %1327 = vmatprep.subr.mxu0 %v483
    %1328 = vmatpush1.msra.mxu0 %v482
    %1329 = vmatprep.subr.mxu0 %v487
    %1330 = vmatpush1.msra.mxu0 %v486
    %1331 = vmatprep.subr.mxu0 %v491
    %1332 = vmatpush1.msra.mxu0 %v490
    %1333 = vmatprep.subr.mxu0 %v495
    %1334 = vmatpush1.msra.mxu0 %v494
    %1335 = vmatprep.mubr.f32.mxu0 %v1024
    %1336 = vmatmul.mubr.f32.gmra.mrb[0].mxu0 %v1199
    %v1337 = vpop.f32.mrb[0].mxu0
    %v1338 = vadd.f32 %v509, %v1337
    %v1339 = vpop.f32.mrb[0].mxu0
    %v1340 = vadd.f32 %v513, %v1339
    %1341 = vdwg.mxu0
    %v1342 = vxor.u32 %v1267, 2147483648
    %v1343 = vxor.u32 %v1269, 2147483648
    %v1344 = vxor.u32 %v1340, 2147483648
    %v1345 = vmul.f32 %v1342, 1.442695
    %v1346 = vpow.pop %v1345
    %v1347 = vmul.f32 %v1343, 1.442695
    %v1348 = vpow.pop %v1347
    %v1349 = vmul.f32 %v1344, 1.442695
    %v1350 = vpow.pop %v1349
    %v1351 = vadd.f32 %v1346, 1.0
    %v1352 = vadd.f32 %v1348, 1.0
    %v1353 = vadd.f32 %v1350, 1.0
    %v1354 = vrcp.pop %v1351
    %v1355 = vmul.f32 1.0, %v1354
    %v1356 = vrcp.pop %v1352
    %v1357 = vmul.f32 1.0, %v1356
    %v1358 = vrcp.pop %v1353
    %v1359 = vmul.f32 1.0, %v1358
    %v1360 = vtanh.pop %v1338
    %v1361 = vmul.f32 %v1357, %v1022
    %v1362 = vmul.f32 %v1355, %v1360
    %v1363 = vadd.f32 %v1361, %v1362
    %v1364 = vtanh.pop %v1363
    %v1365 = vmul.f32 %v1359, %v1364
    %s1366 = scalar_lea.vmem [#allocation4], 96
    %v1367 = vld [vmem:[%s1366] sm:$0xff]
    %v1368 = vld [vmem:[%s1366 + $0x8] sm:$0xff]
    %v1369 = vld [vmem:[%s1366 + $0x10] sm:$0xff]
    %v1370 = vld [vmem:[%s1366 + $0x18] sm:$0xff]
    %1371 = vmatprep.subr.mxu0 %v135
    %1372 = vmatpush1.msra.mxu0 %v134
    %1373 = vmatprep.subr.mxu0 %v139
    %1374 = vmatpush1.msra.mxu0 %v138
    %1375 = vmatprep.subr.mxu0 %v143
    %1376 = vmatpush1.msra.mxu0 %v142
    %1377 = vmatprep.subr.mxu0 %v147
    %1378 = vmatpush1.msra.mxu0 %v146
    %1379 = vmatprep.subr.mxu0 %v151
    %1380 = vmatpush1.msra.mxu0 %v150
    %1381 = vmatprep.subr.mxu0 %v155
    %1382 = vmatpush1.msra.mxu0 %v154
    %1383 = vmatprep.subr.mxu0 %v159
    %1384 = vmatpush1.msra.mxu0 %v158
    %1385 = vmatprep.subr.mxu0 %v163
    %1386 = vmatpush1.msra.mxu0 %v162
    %1387 = vmatprep.subr.mxu0 %v167
    %1388 = vmatpush1.msra.mxu0 %v166
    %1389 = vmatprep.subr.mxu0 %v171
    %1390 = vmatpush1.msra.mxu0 %v170
    %1391 = vmatprep.subr.mxu0 %v175
    %1392 = vmatpush1.msra.mxu0 %v174
    %1393 = vmatprep.subr.mxu0 %v179
    %1394 = vmatpush1.msra.mxu0 %v178
    %1395 = vmatprep.subr.mxu0 %v183
    %1396 = vmatpush1.msra.mxu0 %v182
    %1397 = vmatprep.subr.mxu0 %v187
    %1398 = vmatpush1.msra.mxu0 %v186
    %1399 = vmatprep.subr.mxu0 %v191
    %1400 = vmatpush1.msra.mxu0 %v190
    %1401 = vmatprep.subr.mxu0 %v195
    %1402 = vmatpush1.msra.mxu0 %v194
    %1403 = vmatprep.subr.mxu0 0.0
    %1404 = vmatpush1.msra.mxu0 0.0
    %1405 = vmatprep.subr.mxu0 0.0
    %1406 = vmatpush1.msra.mxu0 0.0
    %1407 = vmatprep.subr.mxu0 0.0
    %1408 = vmatpush1.msra.mxu0 0.0
    %1409 = vmatprep.subr.mxu0 0.0
    %1410 = vmatpush1.msra.mxu0 0.0
    %1411 = vmatprep.subr.mxu0 0.0
    %1412 = vmatpush1.msra.mxu0 0.0
    %1413 = vmatprep.subr.mxu0 0.0
    %1414 = vmatpush1.msra.mxu0 0.0
    %1415 = vmatprep.subr.mxu0 0.0
    %1416 = vmatpush1.msra.mxu0 0.0
    %1417 = vmatprep.subr.mxu0 0.0
    %1418 = vmatpush1.msra.mxu0 0.0
    %1419 = vmatprep.subr.mxu0 0.0
    %1420 = vmatpush1.msra.mxu0 0.0
    %1421 = vmatprep.subr.mxu0 0.0
    %1422 = vmatpush1.msra.mxu0 0.0
    %1423 = vmatprep.subr.mxu0 0.0
    %1424 = vmatpush1.msra.mxu0 0.0
    %1425 = vmatprep.subr.mxu0 0.0
    %1426 = vmatpush1.msra.mxu0 0.0
    %1427 = vmatprep.subr.mxu0 0.0
    %1428 = vmatpush1.msra.mxu0 0.0
    %1429 = vmatprep.subr.mxu0 0.0
    %1430 = vmatpush1.msra.mxu0 0.0
    %1431 = vmatprep.subr.mxu0 0.0
    %1432 = vmatpush1.msra.mxu0 0.0
    %1433 = vmatprep.subr.mxu0 0.0
    %1434 = vmatpush1.msra.mxu0 0.0
    %1435 = vmatprep.mubr.f32.mxu0 0.0
    %1436 = vmatmul.mubr.f32.gmra.mrb[0].mxu0 %v1199
    %v1437 = vpop.f32.mrb[0].mxu0
    %v1438 = vadd.f32 0.0, %v1437
    %v1439 = vpop.f32.mrb[0].mxu0
    %v1440 = vadd.f32 0.0, %v1439
    %1441 = vdwg.mxu0
    %1442 = vmatprep.subr.mxu0 %v137
    %1443 = vmatpush1.msra.mxu0 %v136
    %1444 = vmatprep.subr.mxu0 %v141
    %1445 = vmatpush1.msra.mxu0 %v140
    %1446 = vmatprep.subr.mxu0 %v145
    %1447 = vmatpush1.msra.mxu0 %v144
    %1448 = vmatprep.subr.mxu0 %v149
    %1449 = vmatpush1.msra.mxu0 %v148
    %1450 = vmatprep.subr.mxu0 %v153
    %1451 = vmatpush1.msra.mxu0 %v152
    %1452 = vmatprep.subr.mxu0 %v157
    %1453 = vmatpush1.msra.mxu0 %v156
    %1454 = vmatprep.subr.mxu0 %v161
    %1455 = vmatpush1.msra.mxu0 %v160
    %1456 = vmatprep.subr.mxu0 %v165
    %1457 = vmatpush1.msra.mxu0 %v164
    %1458 = vmatprep.subr.mxu0 %v169
    %1459 = vmatpush1.msra.mxu0 %v168
    %1460 = vmatprep.subr.mxu0 %v173
    %1461 = vmatpush1.msra.mxu0 %v172
    %1462 = vmatprep.subr.mxu0 %v177
    %1463 = vmatpush1.msra.mxu0 %v176
    %1464 = vmatprep.subr.mxu0 %v181
    %1465 = vmatpush1.msra.mxu0 %v180
    %1466 = vmatprep.subr.mxu0 %v185
    %1467 = vmatpush1.msra.mxu0 %v184
    %1468 = vmatprep.subr.mxu0 %v189
    %1469 = vmatpush1.msra.mxu0 %v188
    %1470 = vmatprep.subr.mxu0 %v193
    %1471 = vmatpush1.msra.mxu0 %v192
    %1472 = vmatprep.subr.mxu0 %v197
    %1473 = vmatpush1.msra.mxu0 %v196
    %1474 = vmatprep.subr.mxu0 0.0
    %1475 = vmatpush1.msra.mxu0 0.0
    %1476 = vmatprep.subr.mxu0 0.0
    %1477 = vmatpush1.msra.mxu0 0.0
    %1478 = vmatprep.subr.mxu0 0.0
    %1479 = vmatpush1.msra.mxu0 0.0
    %1480 = vmatprep.subr.mxu0 0.0
    %1481 = vmatpush1.msra.mxu0 0.0
    %1482 = vmatprep.subr.mxu0 0.0
    %1483 = vmatpush1.msra.mxu0 0.0
    %1484 = vmatprep.subr.mxu0 0.0
    %1485 = vmatpush1.msra.mxu0 0.0
    %1486 = vmatprep.subr.mxu0 0.0
    %1487 = vmatpush1.msra.mxu0 0.0
    %1488 = vmatprep.subr.mxu0 0.0
    %1489 = vmatpush1.msra.mxu0 0.0
    %1490 = vmatprep.subr.mxu0 0.0
    %1491 = vmatpush1.msra.mxu0 0.0
    %1492 = vmatprep.subr.mxu0 0.0
    %1493 = vmatpush1.msra.mxu0 0.0
    %1494 = vmatprep.subr.mxu0 0.0
    %1495 = vmatpush1.msra.mxu0 0.0
    %1496 = vmatprep.subr.mxu0 0.0
    %1497 = vmatpush1.msra.mxu0 0.0
    %1498 = vmatprep.subr.mxu0 0.0
    %1499 = vmatpush1.msra.mxu0 0.0
    %1500 = vmatprep.subr.mxu0 0.0
    %1501 = vmatpush1.msra.mxu0 0.0
    %1502 = vmatprep.subr.mxu0 0.0
    %1503 = vmatpush1.msra.mxu0 0.0
    %1504 = vmatprep.subr.mxu0 0.0
    %1505 = vmatpush1.msra.mxu0 0.0
    %1506 = vmatprep.mubr.f32.mxu0 0.0
    %1507 = vmatmul.mubr.f32.gmra.mrb[0].mxu0 %v1199
    %v1508 = vpop.f32.mrb[0].mxu0
    %v1509 = vadd.f32 0.0, %v1508
    %v1510 = vpop.f32.mrb[0].mxu0
    %v1511 = vadd.f32 0.0, %v1510
    %1512 = vdwg.mxu0
    %v1513 = vadd.f32 %v1367, %v1438
    %v1514 = vadd.f32 %v1368, %v1440
    %v1515 = vadd.f32 %v1369, %v1509
    %v1516 = vadd.f32 %v1370, %v1511
    %v1517 = vxor.u32 %v1513, 2147483648
    %v1518 = vxor.u32 %v1514, 2147483648
    %v1519 = vxor.u32 %v1516, 2147483648
    %v1520 = vmul.f32 %v1517, 1.442695
    %v1521 = vpow.pop %v1520
    %v1522 = vmul.f32 %v1518, 1.442695
    %v1523 = vpow.pop %v1522
    %v1524 = vmul.f32 %v1519, 1.442695
    %v1525 = vpow.pop %v1524
    %v1526 = vadd.f32 %v1521, 1.0
    %v1527 = vadd.f32 %v1523, 1.0
    %v1528 = vadd.f32 %v1525, 1.0
    %v1529 = vrcp.pop %v1526
    %v1530 = vmul.f32 1.0, %v1529
    %v1531 = vrcp.pop %v1527
    %v1532 = vmul.f32 1.0, %v1531
    %v1533 = vrcp.pop %v1528
    %v1534 = vmul.f32 1.0, %v1533
    %v1535 = vtanh.pop %v1515
    %v1536 = vmul.f32 %v1532, %v1197
    %v1537 = vmul.f32 %v1530, %v1535
    %v1538 = vadd.f32 %v1536, %v1537
    %v1539 = vtanh.pop %v1538
    %v1540 = vmul.f32 %v1534, %v1539
    %1541 = vmatprep.subr.mxu0 %v369
    %1542 = vmatpush1.msra.mxu0 %v368
    %1543 = vmatprep.subr.mxu0 %v373
    %1544 = vmatpush1.msra.mxu0 %v372
    %1545 = vmatprep.subr.mxu0 %v377
    %1546 = vmatpush1.msra.mxu0 %v376
    %1547 = vmatprep.subr.mxu0 %v381
    %1548 = vmatpush1.msra.mxu0 %v380
    %1549 = vmatprep.subr.mxu0 %v385
    %1550 = vmatpush1.msra.mxu0 %v384
    %1551 = vmatprep.subr.mxu0 %v389
    %1552 = vmatpush1.msra.mxu0 %v388
    %1553 = vmatprep.subr.mxu0 %v393
    %1554 = vmatpush1.msra.mxu0 %v392
    %1555 = vmatprep.subr.mxu0 %v397
    %1556 = vmatpush1.msra.mxu0 %v396
    %1557 = vmatprep.subr.mxu0 %v401
    %1558 = vmatpush1.msra.mxu0 %v400
    %1559 = vmatprep.subr.mxu0 %v405
    %1560 = vmatpush1.msra.mxu0 %v404
    %1561 = vmatprep.subr.mxu0 %v409
    %1562 = vmatpush1.msra.mxu0 %v408
    %1563 = vmatprep.subr.mxu0 %v413
    %1564 = vmatpush1.msra.mxu0 %v412
    %1565 = vmatprep.subr.mxu0 %v417
    %1566 = vmatpush1.msra.mxu0 %v416
    %1567 = vmatprep.subr.mxu0 %v421
    %1568 = vmatpush1.msra.mxu0 %v420
    %1569 = vmatprep.subr.mxu0 %v425
    %1570 = vmatpush1.msra.mxu0 %v424
    %1571 = vmatprep.subr.mxu0 %v429
    %1572 = vmatpush1.msra.mxu0 %v428
    %1573 = vmatprep.subr.mxu0 %v433
    %1574 = vmatpush1.msra.mxu0 %v432
    %1575 = vmatprep.subr.mxu0 %v437
    %1576 = vmatpush1.msra.mxu0 %v436
    %1577 = vmatprep.subr.mxu0 %v441
    %1578 = vmatpush1.msra.mxu0 %v440
    %1579 = vmatprep.subr.mxu0 %v445
    %1580 = vmatpush1.msra.mxu0 %v444
    %1581 = vmatprep.subr.mxu0 %v449
    %1582 = vmatpush1.msra.mxu0 %v448
    %1583 = vmatprep.subr.mxu0 %v453
    %1584 = vmatpush1.msra.mxu0 %v452
    %1585 = vmatprep.subr.mxu0 %v457
    %1586 = vmatpush1.msra.mxu0 %v456
    %1587 = vmatprep.subr.mxu0 %v461
    %1588 = vmatpush1.msra.mxu0 %v460
    %1589 = vmatprep.subr.mxu0 %v465
    %1590 = vmatpush1.msra.mxu0 %v464
    %1591 = vmatprep.subr.mxu0 %v469
    %1592 = vmatpush1.msra.mxu0 %v468
    %1593 = vmatprep.subr.mxu0 %v473
    %1594 = vmatpush1.msra.mxu0 %v472
    %1595 = vmatprep.subr.mxu0 %v477
    %1596 = vmatpush1.msra.mxu0 %v476
    %1597 = vmatprep.subr.mxu0 %v481
    %1598 = vmatpush1.msra.mxu0 %v480
    %1599 = vmatprep.subr.mxu0 %v485
    %1600 = vmatpush1.msra.mxu0 %v484
    %1601 = vmatprep.subr.mxu0 %v489
    %1602 = vmatpush1.msra.mxu0 %v488
    %1603 = vmatprep.subr.mxu0 %v493
    %1604 = vmatpush1.msra.mxu0 %v492
    %1605 = vmatprep.mubr.f32.mxu0 %v1365
    %1606 = vmatmul.mubr.f32.gmra.mrb[0].mxu0 %v1540
    %v1607 = vpop.f32.mrb[0].mxu0
    %v1608 = vadd.f32 %v501, %v1607
    %v1609 = vpop.f32.mrb[0].mxu0
    %v1610 = vadd.f32 %v505, %v1609
    %1611 = vdwg.mxu0
    %1612 = vmatprep.subr.mxu0 %v371
    %1613 = vmatpush1.msra.mxu0 %v370
    %1614 = vmatprep.subr.mxu0 %v375
    %1615 = vmatpush1.msra.mxu0 %v374
    %1616 = vmatprep.subr.mxu0 %v379
    %1617 = vmatpush1.msra.mxu0 %v378
    %1618 = vmatprep.subr.mxu0 %v383
    %1619 = vmatpush1.msra.mxu0 %v382
    %1620 = vmatprep.subr.mxu0 %v387
    %1621 = vmatpush1.msra.mxu0 %v386
    %1622 = vmatprep.subr.mxu0 %v391
    %1623 = vmatpush1.msra.mxu0 %v390
    %1624 = vmatprep.subr.mxu0 %v395
    %1625 = vmatpush1.msra.mxu0 %v394
    %1626 = vmatprep.subr.mxu0 %v399
    %1627 = vmatpush1.msra.mxu0 %v398
    %1628 = vmatprep.subr.mxu0 %v403
    %1629 = vmatpush1.msra.mxu0 %v402
    %1630 = vmatprep.subr.mxu0 %v407
    %1631 = vmatpush1.msra.mxu0 %v406
    %1632 = vmatprep.subr.mxu0 %v411
    %1633 = vmatpush1.msra.mxu0 %v410
    %1634 = vmatprep.subr.mxu0 %v415
    %1635 = vmatpush1.msra.mxu0 %v414
    %1636 = vmatprep.subr.mxu0 %v419
    %1637 = vmatpush1.msra.mxu0 %v418
    %1638 = vmatprep.subr.mxu0 %v423
    %1639 = vmatpush1.msra.mxu0 %v422
    %1640 = vmatprep.subr.mxu0 %v427
    %1641 = vmatpush1.msra.mxu0 %v426
    %1642 = vmatprep.subr.mxu0 %v431
    %1643 = vmatpush1.msra.mxu0 %v430
    %1644 = vmatprep.subr.mxu0 %v435
    %1645 = vmatpush1.msra.mxu0 %v434
    %1646 = vmatprep.subr.mxu0 %v439
    %1647 = vmatpush1.msra.mxu0 %v438
    %1648 = vmatprep.subr.mxu0 %v443
    %1649 = vmatpush1.msra.mxu0 %v442
    %1650 = vmatprep.subr.mxu0 %v447
    %1651 = vmatpush1.msra.mxu0 %v446
    %1652 = vmatprep.subr.mxu0 %v451
    %1653 = vmatpush1.msra.mxu0 %v450
    %1654 = vmatprep.subr.mxu0 %v455
    %1655 = vmatpush1.msra.mxu0 %v454
    %1656 = vmatprep.subr.mxu0 %v459
    %1657 = vmatpush1.msra.mxu0 %v458
    %1658 = vmatprep.subr.mxu0 %v463
    %1659 = vmatpush1.msra.mxu0 %v462
    %1660 = vmatprep.subr.mxu0 %v467
    %1661 = vmatpush1.msra.mxu0 %v466
    %1662 = vmatprep.subr.mxu0 %v471
    %1663 = vmatpush1.msra.mxu0 %v470
    %1664 = vmatprep.subr.mxu0 %v475
    %1665 = vmatpush1.msra.mxu0 %v474
    %1666 = vmatprep.subr.mxu0 %v479
    %1667 = vmatpush1.msra.mxu0 %v478
    %1668 = vmatprep.subr.mxu0 %v483
    %1669 = vmatpush1.msra.mxu0 %v482
    %1670 = vmatprep.subr.mxu0 %v487
    %1671 = vmatpush1.msra.mxu0 %v486
    %1672 = vmatprep.subr.mxu0 %v491
    %1673 = vmatpush1.msra.mxu0 %v490
    %1674 = vmatprep.subr.mxu0 %v495
    %1675 = vmatpush1.msra.mxu0 %v494
    %1676 = vmatprep.mubr.f32.mxu0 %v1365
    %1677 = vmatmul.mubr.f32.gmra.mrb[0].mxu0 %v1540
    %v1678 = vpop.f32.mrb[0].mxu0
    %v1679 = vadd.f32 %v509, %v1678
    %v1680 = vpop.f32.mrb[0].mxu0
    %v1681 = vadd.f32 %v513, %v1680
    %1682 = vdwg.mxu0
    %v1683 = vxor.u32 %v1608, 2147483648
    %v1684 = vxor.u32 %v1610, 2147483648
    %v1685 = vxor.u32 %v1681, 2147483648
    %v1686 = vmul.f32 %v1683, 1.442695
    %v1687 = vpow.pop %v1686
    %v1688 = vmul.f32 %v1684, 1.442695
    %v1689 = vpow.pop %v1688
    %v1690 = vmul.f32 %v1685, 1.442695
    %v1691 = vpow.pop %v1690
    %v1692 = vadd.f32 %v1687, 1.0
    %v1693 = vadd.f32 %v1689, 1.0
    %v1694 = vadd.f32 %v1691, 1.0
    %v1695 = vrcp.pop %v1692
    %v1696 = vmul.f32 1.0, %v1695
    %v1697 = vrcp.pop %v1693
    %v1698 = vmul.f32 1.0, %v1697
    %v1699 = vrcp.pop %v1694
    %v1700 = vmul.f32 1.0, %v1699
    %v1701 = vtanh.pop %v1679
    %v1702 = vmul.f32 %v1698, %v1363
    %v1703 = vmul.f32 %v1696, %v1701
    %v1704 = vadd.f32 %v1702, %v1703
    %v1705 = vtanh.pop %v1704
    %v1706 = vmul.f32 %v1700, %v1705
    %s1707 = scalar_lea.vmem [#allocation4], 128
    %v1708 = vld [vmem:[%s1707] sm:$0xff]
    %v1709 = vld [vmem:[%s1707 + $0x8] sm:$0xff]
    %v1710 = vld [vmem:[%s1707 + $0x10] sm:$0xff]
    %v1711 = vld [vmem:[%s1707 + $0x18] sm:$0xff]
    %1712 = vmatprep.subr.mxu0 %v135
    %1713 = vmatpush1.msra.mxu0 %v134
    %1714 = vmatprep.subr.mxu0 %v139
    %1715 = vmatpush1.msra.mxu0 %v138
    %1716 = vmatprep.subr.mxu0 %v143
    %1717 = vmatpush1.msra.mxu0 %v142
    %1718 = vmatprep.subr.mxu0 %v147
    %1719 = vmatpush1.msra.mxu0 %v146
    %1720 = vmatprep.subr.mxu0 %v151
    %1721 = vmatpush1.msra.mxu0 %v150
    %1722 = vmatprep.subr.mxu0 %v155
    %1723 = vmatpush1.msra.mxu0 %v154
    %1724 = vmatprep.subr.mxu0 %v159
    %1725 = vmatpush1.msra.mxu0 %v158
    %1726 = vmatprep.subr.mxu0 %v163
    %1727 = vmatpush1.msra.mxu0 %v162
    %1728 = vmatprep.subr.mxu0 %v167
    %1729 = vmatpush1.msra.mxu0 %v166
    %1730 = vmatprep.subr.mxu0 %v171
    %1731 = vmatpush1.msra.mxu0 %v170
    %1732 = vmatprep.subr.mxu0 %v175
    %1733 = vmatpush1.msra.mxu0 %v174
    %1734 = vmatprep.subr.mxu0 %v179
    %1735 = vmatpush1.msra.mxu0 %v178
    %1736 = vmatprep.subr.mxu0 %v183
    %1737 = vmatpush1.msra.mxu0 %v182
    %1738 = vmatprep.subr.mxu0 %v187
    %1739 = vmatpush1.msra.mxu0 %v186
    %1740 = vmatprep.subr.mxu0 %v191
    %1741 = vmatpush1.msra.mxu0 %v190
    %1742 = vmatprep.subr.mxu0 %v195
    %1743 = vmatpush1.msra.mxu0 %v194
    %1744 = vmatprep.subr.mxu0 0.0
    %1745 = vmatpush1.msra.mxu0 0.0
    %1746 = vmatprep.subr.mxu0 0.0
    %1747 = vmatpush1.msra.mxu0 0.0
    %1748 = vmatprep.subr.mxu0 0.0
    %1749 = vmatpush1.msra.mxu0 0.0
    %1750 = vmatprep.subr.mxu0 0.0
    %1751 = vmatpush1.msra.mxu0 0.0
    %1752 = vmatprep.subr.mxu0 0.0
    %1753 = vmatpush1.msra.mxu0 0.0
    %1754 = vmatprep.subr.mxu0 0.0
    %1755 = vmatpush1.msra.mxu0 0.0
    %1756 = vmatprep.subr.mxu0 0.0
    %1757 = vmatpush1.msra.mxu0 0.0
    %1758 = vmatprep.subr.mxu0 0.0
    %1759 = vmatpush1.msra.mxu0 0.0
    %1760 = vmatprep.subr.mxu0 0.0
    %1761 = vmatpush1.msra.mxu0 0.0
    %1762 = vmatprep.subr.mxu0 0.0
    %1763 = vmatpush1.msra.mxu0 0.0
    %1764 = vmatprep.subr.mxu0 0.0
    %1765 = vmatpush1.msra.mxu0 0.0
    %1766 = vmatprep.subr.mxu0 0.0
    %1767 = vmatpush1.msra.mxu0 0.0
    %1768 = vmatprep.subr.mxu0 0.0
    %1769 = vmatpush1.msra.mxu0 0.0
    %1770 = vmatprep.subr.mxu0 0.0
    %1771 = vmatpush1.msra.mxu0 0.0
    %1772 = vmatprep.subr.mxu0 0.0
    %1773 = vmatpush1.msra.mxu0 0.0
    %1774 = vmatprep.subr.mxu0 0.0
    %1775 = vmatpush1.msra.mxu0 0.0
    %1776 = vmatprep.mubr.f32.mxu0 0.0
    %1777 = vmatmul.mubr.f32.gmra.mrb[0].mxu0 %v1540
    %v1778 = vpop.f32.mrb[0].mxu0
    %v1779 = vadd.f32 0.0, %v1778
    %v1780 = vpop.f32.mrb[0].mxu0
    %v1781 = vadd.f32 0.0, %v1780
    %1782 = vdwg.mxu0
    %1783 = vmatprep.subr.mxu0 %v137
    %1784 = vmatpush1.msra.mxu0 %v136
    %1785 = vmatprep.subr.mxu0 %v141
    %1786 = vmatpush1.msra.mxu0 %v140
    %1787 = vmatprep.subr.mxu0 %v145
    %1788 = vmatpush1.msra.mxu0 %v144
    %1789 = vmatprep.subr.mxu0 %v149
    %1790 = vmatpush1.msra.mxu0 %v148
    %1791 = vmatprep.subr.mxu0 %v153
    %1792 = vmatpush1.msra.mxu0 %v152
    %1793 = vmatprep.subr.mxu0 %v157
    %1794 = vmatpush1.msra.mxu0 %v156
    %1795 = vmatprep.subr.mxu0 %v161
    %1796 = vmatpush1.msra.mxu0 %v160
    %1797 = vmatprep.subr.mxu0 %v165
    %1798 = vmatpush1.msra.mxu0 %v164
    %1799 = vmatprep.subr.mxu0 %v169
    %1800 = vmatpush1.msra.mxu0 %v168
    %1801 = vmatprep.subr.mxu0 %v173
    %1802 = vmatpush1.msra.mxu0 %v172
    %1803 = vmatprep.subr.mxu0 %v177
    %1804 = vmatpush1.msra.mxu0 %v176
    %1805 = vmatprep.subr.mxu0 %v181
    %1806 = vmatpush1.msra.mxu0 %v180
    %1807 = vmatprep.subr.mxu0 %v185
    %1808 = vmatpush1.msra.mxu0 %v184
    %1809 = vmatprep.subr.mxu0 %v189
    %1810 = vmatpush1.msra.mxu0 %v188
    %1811 = vmatprep.subr.mxu0 %v193
    %1812 = vmatpush1.msra.mxu0 %v192
    %1813 = vmatprep.subr.mxu0 %v197
    %1814 = vmatpush1.msra.mxu0 %v196
    %1815 = vmatprep.subr.mxu0 0.0
    %1816 = vmatpush1.msra.mxu0 0.0
    %1817 = vmatprep.subr.mxu0 0.0
    %1818 = vmatpush1.msra.mxu0 0.0
    %1819 = vmatprep.subr.mxu0 0.0
    %1820 = vmatpush1.msra.mxu0 0.0
    %1821 = vmatprep.subr.mxu0 0.0
    %1822 = vmatpush1.msra.mxu0 0.0
    %1823 = vmatprep.subr.mxu0 0.0
    %1824 = vmatpush1.msra.mxu0 0.0
    %1825 = vmatprep.subr.mxu0 0.0
    %1826 = vmatpush1.msra.mxu0 0.0
    %1827 = vmatprep.subr.mxu0 0.0
    %1828 = vmatpush1.msra.mxu0 0.0
    %1829 = vmatprep.subr.mxu0 0.0
    %1830 = vmatpush1.msra.mxu0 0.0
    %1831 = vmatprep.subr.mxu0 0.0
    %1832 = vmatpush1.msra.mxu0 0.0
    %1833 = vmatprep.subr.mxu0 0.0
    %1834 = vmatpush1.msra.mxu0 0.0
    %1835 = vmatprep.subr.mxu0 0.0
    %1836 = vmatpush1.msra.mxu0 0.0
    %1837 = vmatprep.subr.mxu0 0.0
    %1838 = vmatpush1.msra.mxu0 0.0
    %1839 = vmatprep.subr.mxu0 0.0
    %1840 = vmatpush1.msra.mxu0 0.0
    %1841 = vmatprep.subr.mxu0 0.0
    %1842 = vmatpush1.msra.mxu0 0.0
    %1843 = vmatprep.subr.mxu0 0.0
    %1844 = vmatpush1.msra.mxu0 0.0
    %1845 = vmatprep.subr.mxu0 0.0
    %1846 = vmatpush1.msra.mxu0 0.0
    %1847 = vmatprep.mubr.f32.mxu0 0.0
    %1848 = vmatmul.mubr.f32.gmra.mrb[0].mxu0 %v1540
    %v1849 = vpop.f32.mrb[0].mxu0
    %v1850 = vadd.f32 0.0, %v1849
    %v1851 = vpop.f32.mrb[0].mxu0
    %v1852 = vadd.f32 0.0, %v1851
    %1853 = vdwg.mxu0
    %v1854 = vadd.f32 %v1708, %v1779
    %v1855 = vadd.f32 %v1709, %v1781
    %v1856 = vadd.f32 %v1710, %v1850
    %v1857 = vadd.f32 %v1711, %v1852
    %v1858 = vxor.u32 %v1854, 2147483648
    %v1859 = vxor.u32 %v1855, 2147483648
    %v1860 = vxor.u32 %v1857, 2147483648
    %v1861 = vmul.f32 %v1858, 1.442695
    %v1862 = vpow.pop %v1861
    %v1863 = vmul.f32 %v1859, 1.442695
    %v1864 = vpow.pop %v1863
    %v1865 = vmul.f32 %v1860, 1.442695
    %v1866 = vpow.pop %v1865
    %v1867 = vadd.f32 %v1862, 1.0
    %v1868 = vadd.f32 %v1864, 1.0
    %v1869 = vadd.f32 %v1866, 1.0
    %v1870 = vrcp.pop %v1867
    %v1871 = vmul.f32 1.0, %v1870
    %v1872 = vrcp.pop %v1868
    %v1873 = vmul.f32 1.0, %v1872
    %v1874 = vrcp.pop %v1869
    %v1875 = vmul.f32 1.0, %v1874
    %v1876 = vtanh.pop %v1856
    %v1877 = vmul.f32 %v1873, %v1538
    %v1878 = vmul.f32 %v1871, %v1876
    %v1879 = vadd.f32 %v1877, %v1878
    %v1880 = vtanh.pop %v1879
    %v1881 = vmul.f32 %v1875, %v1880
    %1882 = vmatprep.subr.mxu0 %v369
    %1883 = vmatpush1.msra.mxu0 %v368
    %1884 = vmatprep.subr.mxu0 %v373
    %1885 = vmatpush1.msra.mxu0 %v372
    %1886 = vmatprep.subr.mxu0 %v377
    %1887 = vmatpush1.msra.mxu0 %v376
    %1888 = vmatprep.subr.mxu0 %v381
    %1889 = vmatpush1.msra.mxu0 %v380
    %1890 = vmatprep.subr.mxu0 %v385
    %1891 = vmatpush1.msra.mxu0 %v384
    %1892 = vmatprep.subr.mxu0 %v389
    %1893 = vmatpush1.msra.mxu0 %v388
    %1894 = vmatprep.subr.mxu0 %v393
    %1895 = vmatpush1.msra.mxu0 %v392
    %1896 = vmatprep.subr.mxu0 %v397
    %1897 = vmatpush1.msra.mxu0 %v396
    %1898 = vmatprep.subr.mxu0 %v401
    %1899 = vmatpush1.msra.mxu0 %v400
    %1900 = vmatprep.subr.mxu0 %v405
    %1901 = vmatpush1.msra.mxu0 %v404
    %1902 = vmatprep.subr.mxu0 %v409
    %1903 = vmatpush1.msra.mxu0 %v408
    %1904 = vmatprep.subr.mxu0 %v413
    %1905 = vmatpush1.msra.mxu0 %v412
    %1906 = vmatprep.subr.mxu0 %v417
    %1907 = vmatpush1.msra.mxu0 %v416
    %1908 = vmatprep.subr.mxu0 %v421
    %1909 = vmatpush1.msra.mxu0 %v420
    %1910 = vmatprep.subr.mxu0 %v425
    %1911 = vmatpush1.msra.mxu0 %v424
    %1912 = vmatprep.subr.mxu0 %v429
    %1913 = vmatpush1.msra.mxu0 %v428
    %1914 = vmatprep.subr.mxu0 %v433
    %1915 = vmatpush1.msra.mxu0 %v432
    %1916 = vmatprep.subr.mxu0 %v437
    %1917 = vmatpush1.msra.mxu0 %v436
    %1918 = vmatprep.subr.mxu0 %v441
    %1919 = vmatpush1.msra.mxu0 %v440
    %1920 = vmatprep.subr.mxu0 %v445
    %1921 = vmatpush1.msra.mxu0 %v444
    %1922 = vmatprep.subr.mxu0 %v449
    %1923 = vmatpush1.msra.mxu0 %v448
    %1924 = vmatprep.subr.mxu0 %v453
    %1925 = vmatpush1.msra.mxu0 %v452
    %1926 = vmatprep.subr.mxu0 %v457
    %1927 = vmatpush1.msra.mxu0 %v456
    %1928 = vmatprep.subr.mxu0 %v461
    %1929 = vmatpush1.msra.mxu0 %v460
    %1930 = vmatprep.subr.mxu0 %v465
    %1931 = vmatpush1.msra.mxu0 %v464
    %1932 = vmatprep.subr.mxu0 %v469
    %1933 = vmatpush1.msra.mxu0 %v468
    %1934 = vmatprep.subr.mxu0 %v473
    %1935 = vmatpush1.msra.mxu0 %v472
    %1936 = vmatprep.subr.mxu0 %v477
    %1937 = vmatpush1.msra.mxu0 %v476
    %1938 = vmatprep.subr.mxu0 %v481
    %1939 = vmatpush1.msra.mxu0 %v480
    %1940 = vmatprep.subr.mxu0 %v485
    %1941 = vmatpush1.msra.mxu0 %v484
    %1942 = vmatprep.subr.mxu0 %v489
    %1943 = vmatpush1.msra.mxu0 %v488
    %1944 = vmatprep.subr.mxu0 %v493
    %1945 = vmatpush1.msra.mxu0 %v492
    %1946 = vmatprep.mubr.f32.mxu0 %v1706
    %1947 = vmatmul.mubr.f32.gmra.mrb[0].mxu0 %v1881
    %v1948 = vpop.f32.mrb[0].mxu0
    %v1949 = vadd.f32 %v501, %v1948
    %v1950 = vpop.f32.mrb[0].mxu0
    %v1951 = vadd.f32 %v505, %v1950
    %1952 = vdwg.mxu0
    %1953 = vmatprep.subr.mxu0 %v371
    %1954 = vmatpush1.msra.mxu0 %v370
    %1955 = vmatprep.subr.mxu0 %v375
    %1956 = vmatpush1.msra.mxu0 %v374
    %1957 = vmatprep.subr.mxu0 %v379
    %1958 = vmatpush1.msra.mxu0 %v378
    %1959 = vmatprep.subr.mxu0 %v383
    %1960 = vmatpush1.msra.mxu0 %v382
    %1961 = vmatprep.subr.mxu0 %v387
    %1962 = vmatpush1.msra.mxu0 %v386
    %1963 = vmatprep.subr.mxu0 %v391
    %1964 = vmatpush1.msra.mxu0 %v390
    %1965 = vmatprep.subr.mxu0 %v395
    %1966 = vmatpush1.msra.mxu0 %v394
    %1967 = vmatprep.subr.mxu0 %v399
    %1968 = vmatpush1.msra.mxu0 %v398
    %1969 = vmatprep.subr.mxu0 %v403
    %1970 = vmatpush1.msra.mxu0 %v402
    %1971 = vmatprep.subr.mxu0 %v407
    %1972 = vmatpush1.msra.mxu0 %v406
    %1973 = vmatprep.subr.mxu0 %v411
    %1974 = vmatpush1.msra.mxu0 %v410
    %1975 = vmatprep.subr.mxu0 %v415
    %1976 = vmatpush1.msra.mxu0 %v414
    %1977 = vmatprep.subr.mxu0 %v419
    %1978 = vmatpush1.msra.mxu0 %v418
    %1979 = vmatprep.subr.mxu0 %v423
    %1980 = vmatpush1.msra.mxu0 %v422
    %1981 = vmatprep.subr.mxu0 %v427
    %1982 = vmatpush1.msra.mxu0 %v426
    %1983 = vmatprep.subr.mxu0 %v431
    %1984 = vmatpush1.msra.mxu0 %v430
    %1985 = vmatprep.subr.mxu0 %v435
    %1986 = vmatpush1.msra.mxu0 %v434
    %1987 = vmatprep.subr.mxu0 %v439
    %1988 = vmatpush1.msra.mxu0 %v438
    %1989 = vmatprep.subr.mxu0 %v443
    %1990 = vmatpush1.msra.mxu0 %v442
    %1991 = vmatprep.subr.mxu0 %v447
    %1992 = vmatpush1.msra.mxu0 %v446
    %1993 = vmatprep.subr.mxu0 %v451
    %1994 = vmatpush1.msra.mxu0 %v450
    %1995 = vmatprep.subr.mxu0 %v455
    %1996 = vmatpush1.msra.mxu0 %v454
    %1997 = vmatprep.subr.mxu0 %v459
    %1998 = vmatpush1.msra.mxu0 %v458
    %1999 = vmatprep.subr.mxu0 %v463
    %2000 = vmatpush1.msra.mxu0 %v462
    %2001 = vmatprep.subr.mxu0 %v467
    %2002 = vmatpush1.msra.mxu0 %v466
    %2003 = vmatprep.subr.mxu0 %v471
    %2004 = vmatpush1.msra.mxu0 %v470
    %2005 = vmatprep.subr.mxu0 %v475
    %2006 = vmatpush1.msra.mxu0 %v474
    %2007 = vmatprep.subr.mxu0 %v479
    %2008 = vmatpush1.msra.mxu0 %v478
    %2009 = vmatprep.subr.mxu0 %v483
    %2010 = vmatpush1.msra.mxu0 %v482
    %2011 = vmatprep.subr.mxu0 %v487
    %2012 = vmatpush1.msra.mxu0 %v486
    %2013 = vmatprep.subr.mxu0 %v491
    %2014 = vmatpush1.msra.mxu0 %v490
    %2015 = vmatprep.subr.mxu0 %v495
    %2016 = vmatpush1.msra.mxu0 %v494
    %2017 = vmatprep.mubr.f32.mxu0 %v1706
    %2018 = vmatmul.mubr.f32.gmra.mrb[0].mxu0 %v1881
    %v2019 = vpop.f32.mrb[0].mxu0
    %v2020 = vadd.f32 %v509, %v2019
    %v2021 = vpop.f32.mrb[0].mxu0
    %v2022 = vadd.f32 %v513, %v2021
    %2023 = vdwg.mxu0
    %v2024 = vxor.u32 %v1949, 2147483648
    %v2025 = vxor.u32 %v1951, 2147483648
    %v2026 = vxor.u32 %v2022, 2147483648
    %v2027 = vmul.f32 %v2024, 1.442695
    %v2028 = vpow.pop %v2027
    %v2029 = vmul.f32 %v2025, 1.442695
    %v2030 = vpow.pop %v2029
    %v2031 = vmul.f32 %v2026, 1.442695
    %v2032 = vpow.pop %v2031
    %v2033 = vadd.f32 %v2028, 1.0
    %v2034 = vadd.f32 %v2030, 1.0
    %v2035 = vadd.f32 %v2032, 1.0
    %v2036 = vrcp.pop %v2033
    %v2037 = vmul.f32 1.0, %v2036
    %v2038 = vrcp.pop %v2034
    %v2039 = vmul.f32 1.0, %v2038
    %v2040 = vrcp.pop %v2035
    %v2041 = vmul.f32 1.0, %v2040
    %v2042 = vtanh.pop %v2020
    %v2043 = vmul.f32 %v2039, %v1704
    %v2044 = vmul.f32 %v2037, %v2042
    %v2045 = vadd.f32 %v2043, %v2044
    %v2046 = vtanh.pop %v2045
    %v2047 = vmul.f32 %v2041, %v2046
    %s2048 = scalar_lea.vmem [#allocation4], 160
    %v2049 = vld [vmem:[%s2048] sm:$0xff]
    %v2050 = vld [vmem:[%s2048 + $0x8] sm:$0xff]
    %v2051 = vld [vmem:[%s2048 + $0x10] sm:$0xff]
    %v2052 = vld [vmem:[%s2048 + $0x18] sm:$0xff]
    %2053 = vmatprep.subr.mxu0 %v135
    %2054 = vmatpush1.msra.mxu0 %v134
    %2055 = vmatprep.subr.mxu0 %v139
    %2056 = vmatpush1.msra.mxu0 %v138
    %2057 = vmatprep.subr.mxu0 %v143
    %2058 = vmatpush1.msra.mxu0 %v142
    %2059 = vmatprep.subr.mxu0 %v147
    %2060 = vmatpush1.msra.mxu0 %v146
    %2061 = vmatprep.subr.mxu0 %v151
    %2062 = vmatpush1.msra.mxu0 %v150
    %2063 = vmatprep.subr.mxu0 %v155
    %2064 = vmatpush1.msra.mxu0 %v154
    %2065 = vmatprep.subr.mxu0 %v159
    %2066 = vmatpush1.msra.mxu0 %v158
    %2067 = vmatprep.subr.mxu0 %v163
    %2068 = vmatpush1.msra.mxu0 %v162
    %2069 = vmatprep.subr.mxu0 %v167
    %2070 = vmatpush1.msra.mxu0 %v166
    %2071 = vmatprep.subr.mxu0 %v171
    %2072 = vmatpush1.msra.mxu0 %v170
    %2073 = vmatprep.subr.mxu0 %v175
    %2074 = vmatpush1.msra.mxu0 %v174
    %2075 = vmatprep.subr.mxu0 %v179
    %2076 = vmatpush1.msra.mxu0 %v178
    %2077 = vmatprep.subr.mxu0 %v183
    %2078 = vmatpush1.msra.mxu0 %v182
    %2079 = vmatprep.subr.mxu0 %v187
    %2080 = vmatpush1.msra.mxu0 %v186
    %2081 = vmatprep.subr.mxu0 %v191
    %2082 = vmatpush1.msra.mxu0 %v190
    %2083 = vmatprep.subr.mxu0 %v195
    %2084 = vmatpush1.msra.mxu0 %v194
    %2085 = vmatprep.subr.mxu0 0.0
    %2086 = vmatpush1.msra.mxu0 0.0
    %2087 = vmatprep.subr.mxu0 0.0
    %2088 = vmatpush1.msra.mxu0 0.0
    %2089 = vmatprep.subr.mxu0 0.0
    %2090 = vmatpush1.msra.mxu0 0.0
    %2091 = vmatprep.subr.mxu0 0.0
    %2092 = vmatpush1.msra.mxu0 0.0
    %2093 = vmatprep.subr.mxu0 0.0
    %2094 = vmatpush1.msra.mxu0 0.0
    %2095 = vmatprep.subr.mxu0 0.0
    %2096 = vmatpush1.msra.mxu0 0.0
    %2097 = vmatprep.subr.mxu0 0.0
    %2098 = vmatpush1.msra.mxu0 0.0
    %2099 = vmatprep.subr.mxu0 0.0
    %2100 = vmatpush1.msra.mxu0 0.0
    %2101 = vmatprep.subr.mxu0 0.0
    %2102 = vmatpush1.msra.mxu0 0.0
    %2103 = vmatprep.subr.mxu0 0.0
    %2104 = vmatpush1.msra.mxu0 0.0
    %2105 = vmatprep.subr.mxu0 0.0
    %2106 = vmatpush1.msra.mxu0 0.0
    %2107 = vmatprep.subr.mxu0 0.0
    %2108 = vmatpush1.msra.mxu0 0.0
    %2109 = vmatprep.subr.mxu0 0.0
    %2110 = vmatpush1.msra.mxu0 0.0
    %2111 = vmatprep.subr.mxu0 0.0
    %2112 = vmatpush1.msra.mxu0 0.0
    %2113 = vmatprep.subr.mxu0 0.0
    %2114 = vmatpush1.msra.mxu0 0.0
    %2115 = vmatprep.subr.mxu0 0.0
    %2116 = vmatpush1.msra.mxu0 0.0
    %2117 = vmatprep.mubr.f32.mxu0 0.0
    %2118 = vmatmul.mubr.f32.gmra.mrb[0].mxu0 %v1881
    %v2119 = vpop.f32.mrb[0].mxu0
    %v2120 = vadd.f32 0.0, %v2119
    %v2121 = vpop.f32.mrb[0].mxu0
    %v2122 = vadd.f32 0.0, %v2121
    %2123 = vdwg.mxu0
    %2124 = vmatprep.subr.mxu0 %v137
    %2125 = vmatpush1.msra.mxu0 %v136
    %2126 = vmatprep.subr.mxu0 %v141
    %2127 = vmatpush1.msra.mxu0 %v140
    %2128 = vmatprep.subr.mxu0 %v145
    %2129 = vmatpush1.msra.mxu0 %v144
    %2130 = vmatprep.subr.mxu0 %v149
    %2131 = vmatpush1.msra.mxu0 %v148
    %2132 = vmatprep.subr.mxu0 %v153
    %2133 = vmatpush1.msra.mxu0 %v152
    %2134 = vmatprep.subr.mxu0 %v157
    %2135 = vmatpush1.msra.mxu0 %v156
    %2136 = vmatprep.subr.mxu0 %v161
    %2137 = vmatpush1.msra.mxu0 %v160
    %2138 = vmatprep.subr.mxu0 %v165
    %2139 = vmatpush1.msra.mxu0 %v164
    %2140 = vmatprep.subr.mxu0 %v169
    %2141 = vmatpush1.msra.mxu0 %v168
    %2142 = vmatprep.subr.mxu0 %v173
    %2143 = vmatpush1.msra.mxu0 %v172
    %2144 = vmatprep.subr.mxu0 %v177
    %2145 = vmatpush1.msra.mxu0 %v176
    %2146 = vmatprep.subr.mxu0 %v181
    %2147 = vmatpush1.msra.mxu0 %v180
    %2148 = vmatprep.subr.mxu0 %v185
    %2149 = vmatpush1.msra.mxu0 %v184
    %2150 = vmatprep.subr.mxu0 %v189
    %2151 = vmatpush1.msra.mxu0 %v188
    %2152 = vmatprep.subr.mxu0 %v193
    %2153 = vmatpush1.msra.mxu0 %v192
    %2154 = vmatprep.subr.mxu0 %v197
    %2155 = vmatpush1.msra.mxu0 %v196
    %2156 = vmatprep.subr.mxu0 0.0
    %2157 = vmatpush1.msra.mxu0 0.0
    %2158 = vmatprep.subr.mxu0 0.0
    %2159 = vmatpush1.msra.mxu0 0.0
    %2160 = vmatprep.subr.mxu0 0.0
    %2161 = vmatpush1.msra.mxu0 0.0
    %2162 = vmatprep.subr.mxu0 0.0
    %2163 = vmatpush1.msra.mxu0 0.0
    %2164 = vmatprep.subr.mxu0 0.0
    %2165 = vmatpush1.msra.mxu0 0.0
    %2166 = vmatprep.subr.mxu0 0.0
    %2167 = vmatpush1.msra.mxu0 0.0
    %2168 = vmatprep.subr.mxu0 0.0
    %2169 = vmatpush1.msra.mxu0 0.0
    %2170 = vmatprep.subr.mxu0 0.0
    %2171 = vmatpush1.msra.mxu0 0.0
    %2172 = vmatprep.subr.mxu0 0.0
    %2173 = vmatpush1.msra.mxu0 0.0
    %2174 = vmatprep.subr.mxu0 0.0
    %2175 = vmatpush1.msra.mxu0 0.0
    %2176 = vmatprep.subr.mxu0 0.0
    %2177 = vmatpush1.msra.mxu0 0.0
    %2178 = vmatprep.subr.mxu0 0.0
    %2179 = vmatpush1.msra.mxu0 0.0
    %2180 = vmatprep.subr.mxu0 0.0
    %2181 = vmatpush1.msra.mxu0 0.0
    %2182 = vmatprep.subr.mxu0 0.0
    %2183 = vmatpush1.msra.mxu0 0.0
    %2184 = vmatprep.subr.mxu0 0.0
    %2185 = vmatpush1.msra.mxu0 0.0
    %2186 = vmatprep.subr.mxu0 0.0
    %2187 = vmatpush1.msra.mxu0 0.0
    %2188 = vmatprep.mubr.f32.mxu0 0.0
    %2189 = vmatmul.mubr.f32.gmra.mrb[0].mxu0 %v1881
    %v2190 = vpop.f32.mrb[0].mxu0
    %v2191 = vadd.f32 0.0, %v2190
    %v2192 = vpop.f32.mrb[0].mxu0
    %v2193 = vadd.f32 0.0, %v2192
    %2194 = vdwg.mxu0
    %v2195 = vadd.f32 %v2049, %v2120
    %v2196 = vadd.f32 %v2050, %v2122
    %v2197 = vadd.f32 %v2051, %v2191
    %v2198 = vadd.f32 %v2052, %v2193
    %v2199 = vxor.u32 %v2195, 2147483648
    %v2200 = vxor.u32 %v2196, 2147483648
    %v2201 = vxor.u32 %v2198, 2147483648
    %v2202 = vmul.f32 %v2199, 1.442695
    %v2203 = vpow.pop %v2202
    %v2204 = vmul.f32 %v2200, 1.442695
    %v2205 = vpow.pop %v2204
    %v2206 = vmul.f32 %v2201, 1.442695
    %v2207 = vpow.pop %v2206
    %v2208 = vadd.f32 %v2203, 1.0
    %v2209 = vadd.f32 %v2205, 1.0
    %v2210 = vadd.f32 %v2207, 1.0
    %v2211 = vrcp.pop %v2208
    %v2212 = vmul.f32 1.0, %v2211
    %v2213 = vrcp.pop %v2209
    %v2214 = vmul.f32 1.0, %v2213
    %v2215 = vrcp.pop %v2210
    %v2216 = vmul.f32 1.0, %v2215
    %v2217 = vtanh.pop %v2197
    %v2218 = vmul.f32 %v2214, %v1879
    %v2219 = vmul.f32 %v2212, %v2217
    %v2220 = vadd.f32 %v2218, %v2219
    %v2221 = vtanh.pop %v2220
    %v2222 = vmul.f32 %v2216, %v2221
    %2223 = vmatprep.subr.mxu0 %v369
    %2224 = vmatpush1.msra.mxu0 %v368
    %2225 = vmatprep.subr.mxu0 %v373
    %2226 = vmatpush1.msra.mxu0 %v372
    %2227 = vmatprep.subr.mxu0 %v377
    %2228 = vmatpush1.msra.mxu0 %v376
    %2229 = vmatprep.subr.mxu0 %v381
    %2230 = vmatpush1.msra.mxu0 %v380
    %2231 = vmatprep.subr.mxu0 %v385
    %2232 = vmatpush1.msra.mxu0 %v384
    %2233 = vmatprep.subr.mxu0 %v389
    %2234 = vmatpush1.msra.mxu0 %v388
    %2235 = vmatprep.subr.mxu0 %v393
    %2236 = vmatpush1.msra.mxu0 %v392
    %2237 = vmatprep.subr.mxu0 %v397
    %2238 = vmatpush1.msra.mxu0 %v396
    %2239 = vmatprep.subr.mxu0 %v401
    %2240 = vmatpush1.msra.mxu0 %v400
    %2241 = vmatprep.subr.mxu0 %v405
    %2242 = vmatpush1.msra.mxu0 %v404
    %2243 = vmatprep.subr.mxu0 %v409
    %2244 = vmatpush1.msra.mxu0 %v408
    %2245 = vmatprep.subr.mxu0 %v413
    %2246 = vmatpush1.msra.mxu0 %v412
    %2247 = vmatprep.subr.mxu0 %v417
    %2248 = vmatpush1.msra.mxu0 %v416
    %2249 = vmatprep.subr.mxu0 %v421
    %2250 = vmatpush1.msra.mxu0 %v420
    %2251 = vmatprep.subr.mxu0 %v425
    %2252 = vmatpush1.msra.mxu0 %v424
    %2253 = vmatprep.subr.mxu0 %v429
    %2254 = vmatpush1.msra.mxu0 %v428
    %2255 = vmatprep.subr.mxu0 %v433
    %2256 = vmatpush1.msra.mxu0 %v432
    %2257 = vmatprep.subr.mxu0 %v437
    %2258 = vmatpush1.msra.mxu0 %v436
    %2259 = vmatprep.subr.mxu0 %v441
    %2260 = vmatpush1.msra.mxu0 %v440
    %2261 = vmatprep.subr.mxu0 %v445
    %2262 = vmatpush1.msra.mxu0 %v444
    %2263 = vmatprep.subr.mxu0 %v449
    %2264 = vmatpush1.msra.mxu0 %v448
    %2265 = vmatprep.subr.mxu0 %v453
    %2266 = vmatpush1.msra.mxu0 %v452
    %2267 = vmatprep.subr.mxu0 %v457
    %2268 = vmatpush1.msra.mxu0 %v456
    %2269 = vmatprep.subr.mxu0 %v461
    %2270 = vmatpush1.msra.mxu0 %v460
    %2271 = vmatprep.subr.mxu0 %v465
    %2272 = vmatpush1.msra.mxu0 %v464
    %2273 = vmatprep.subr.mxu0 %v469
    %2274 = vmatpush1.msra.mxu0 %v468
    %2275 = vmatprep.subr.mxu0 %v473
    %2276 = vmatpush1.msra.mxu0 %v472
    %2277 = vmatprep.subr.mxu0 %v477
    %2278 = vmatpush1.msra.mxu0 %v476
    %2279 = vmatprep.subr.mxu0 %v481
    %2280 = vmatpush1.msra.mxu0 %v480
    %2281 = vmatprep.subr.mxu0 %v485
    %2282 = vmatpush1.msra.mxu0 %v484
    %2283 = vmatprep.subr.mxu0 %v489
    %2284 = vmatpush1.msra.mxu0 %v488
    %2285 = vmatprep.subr.mxu0 %v493
    %2286 = vmatpush1.msra.mxu0 %v492
    %2287 = vmatprep.mubr.f32.mxu0 %v2047
    %2288 = vmatmul.mubr.f32.gmra.mrb[0].mxu0 %v2222
    %v2289 = vpop.f32.mrb[0].mxu0
    %v2290 = vadd.f32 %v501, %v2289
    %v2291 = vpop.f32.mrb[0].mxu0
    %v2292 = vadd.f32 %v505, %v2291
    %2293 = vdwg.mxu0
    %2294 = vmatprep.subr.mxu0 %v371
    %2295 = vmatpush1.msra.mxu0 %v370
    %2296 = vmatprep.subr.mxu0 %v375
    %2297 = vmatpush1.msra.mxu0 %v374
    %2298 = vmatprep.subr.mxu0 %v379
    %2299 = vmatpush1.msra.mxu0 %v378
    %2300 = vmatprep.subr.mxu0 %v383
    %2301 = vmatpush1.msra.mxu0 %v382
    %2302 = vmatprep.subr.mxu0 %v387
    %2303 = vmatpush1.msra.mxu0 %v386
    %2304 = vmatprep.subr.mxu0 %v391
    %2305 = vmatpush1.msra.mxu0 %v390
    %2306 = vmatprep.subr.mxu0 %v395
    %2307 = vmatpush1.msra.mxu0 %v394
    %2308 = vmatprep.subr.mxu0 %v399
    %2309 = vmatpush1.msra.mxu0 %v398
    %2310 = vmatprep.subr.mxu0 %v403
    %2311 = vmatpush1.msra.mxu0 %v402
    %2312 = vmatprep.subr.mxu0 %v407
    %2313 = vmatpush1.msra.mxu0 %v406
    %2314 = vmatprep.subr.mxu0 %v411
    %2315 = vmatpush1.msra.mxu0 %v410
    %2316 = vmatprep.subr.mxu0 %v415
    %2317 = vmatpush1.msra.mxu0 %v414
    %2318 = vmatprep.subr.mxu0 %v419
    %2319 = vmatpush1.msra.mxu0 %v418
    %2320 = vmatprep.subr.mxu0 %v423
    %2321 = vmatpush1.msra.mxu0 %v422
    %2322 = vmatprep.subr.mxu0 %v427
    %2323 = vmatpush1.msra.mxu0 %v426
    %2324 = vmatprep.subr.mxu0 %v431
    %2325 = vmatpush1.msra.mxu0 %v430
    %2326 = vmatprep.subr.mxu0 %v435
    %2327 = vmatpush1.msra.mxu0 %v434
    %2328 = vmatprep.subr.mxu0 %v439
    %2329 = vmatpush1.msra.mxu0 %v438
    %2330 = vmatprep.subr.mxu0 %v443
    %2331 = vmatpush1.msra.mxu0 %v442
    %2332 = vmatprep.subr.mxu0 %v447
    %2333 = vmatpush1.msra.mxu0 %v446
    %2334 = vmatprep.subr.mxu0 %v451
    %2335 = vmatpush1.msra.mxu0 %v450
    %2336 = vmatprep.subr.mxu0 %v455
    %2337 = vmatpush1.msra.mxu0 %v454
    %2338 = vmatprep.subr.mxu0 %v459
    %2339 = vmatpush1.msra.mxu0 %v458
    %2340 = vmatprep.subr.mxu0 %v463
    %2341 = vmatpush1.msra.mxu0 %v462
    %2342 = vmatprep.subr.mxu0 %v467
    %2343 = vmatpush1.msra.mxu0 %v466
    %2344 = vmatprep.subr.mxu0 %v471
    %2345 = vmatpush1.msra.mxu0 %v470
    %2346 = vmatprep.subr.mxu0 %v475
    %2347 = vmatpush1.msra.mxu0 %v474
    %2348 = vmatprep.subr.mxu0 %v479
    %2349 = vmatpush1.msra.mxu0 %v478
    %2350 = vmatprep.subr.mxu0 %v483
    %2351 = vmatpush1.msra.mxu0 %v482
    %2352 = vmatprep.subr.mxu0 %v487
    %2353 = vmatpush1.msra.mxu0 %v486
    %2354 = vmatprep.subr.mxu0 %v491
    %2355 = vmatpush1.msra.mxu0 %v490
    %2356 = vmatprep.subr.mxu0 %v495
    %2357 = vmatpush1.msra.mxu0 %v494
    %2358 = vmatprep.mubr.f32.mxu0 %v2047
    %2359 = vmatmul.mubr.f32.gmra.mrb[0].mxu0 %v2222
    %v2360 = vpop.f32.mrb[0].mxu0
    %v2361 = vadd.f32 %v509, %v2360
    %v2362 = vpop.f32.mrb[0].mxu0
    %v2363 = vadd.f32 %v513, %v2362
    %2364 = vdwg.mxu0
    %v2365 = vxor.u32 %v2290, 2147483648
    %v2366 = vxor.u32 %v2292, 2147483648
    %v2367 = vxor.u32 %v2363, 2147483648
    %v2368 = vmul.f32 %v2365, 1.442695
    %v2369 = vpow.pop %v2368
    %v2370 = vmul.f32 %v2366, 1.442695
    %v2371 = vpow.pop %v2370
    %v2372 = vmul.f32 %v2367, 1.442695
    %v2373 = vpow.pop %v2372
    %v2374 = vadd.f32 %v2369, 1.0
    %v2375 = vadd.f32 %v2371, 1.0
    %v2376 = vadd.f32 %v2373, 1.0
    %v2377 = vrcp.pop %v2374
    %v2378 = vmul.f32 1.0, %v2377
    %v2379 = vrcp.pop %v2375
    %v2380 = vmul.f32 1.0, %v2379
    %v2381 = vrcp.pop %v2376
    %v2382 = vmul.f32 1.0, %v2381
    %v2383 = vtanh.pop %v2361
    %v2384 = vmul.f32 %v2380, %v2045
    %v2385 = vmul.f32 %v2378, %v2383
    %v2386 = vadd.f32 %v2384, %v2385
    %v2387 = vtanh.pop %v2386
    %v2388 = vmul.f32 %v2382, %v2387
    %s2389 = scalar_lea.vmem [#allocation4], 192
    %v2390 = vld [vmem:[%s2389] sm:$0xff]
    %v2391 = vld [vmem:[%s2389 + $0x8] sm:$0xff]
    %v2392 = vld [vmem:[%s2389 + $0x10] sm:$0xff]
    %v2393 = vld [vmem:[%s2389 + $0x18] sm:$0xff]
    %2394 = vmatprep.subr.mxu0 %v135
    %2395 = vmatpush1.msra.mxu0 %v134
    %2396 = vmatprep.subr.mxu0 %v139
    %2397 = vmatpush1.msra.mxu0 %v138
    %2398 = vmatprep.subr.mxu0 %v143
    %2399 = vmatpush1.msra.mxu0 %v142
    %2400 = vmatprep.subr.mxu0 %v147
    %2401 = vmatpush1.msra.mxu0 %v146
    %2402 = vmatprep.subr.mxu0 %v151
    %2403 = vmatpush1.msra.mxu0 %v150
    %2404 = vmatprep.subr.mxu0 %v155
    %2405 = vmatpush1.msra.mxu0 %v154
    %2406 = vmatprep.subr.mxu0 %v159
    %2407 = vmatpush1.msra.mxu0 %v158
    %2408 = vmatprep.subr.mxu0 %v163
    %2409 = vmatpush1.msra.mxu0 %v162
    %2410 = vmatprep.subr.mxu0 %v167
    %2411 = vmatpush1.msra.mxu0 %v166
    %2412 = vmatprep.subr.mxu0 %v171
    %2413 = vmatpush1.msra.mxu0 %v170
    %2414 = vmatprep.subr.mxu0 %v175
    %2415 = vmatpush1.msra.mxu0 %v174
    %2416 = vmatprep.subr.mxu0 %v179
    %2417 = vmatpush1.msra.mxu0 %v178
    %2418 = vmatprep.subr.mxu0 %v183
    %2419 = vmatpush1.msra.mxu0 %v182
    %2420 = vmatprep.subr.mxu0 %v187
    %2421 = vmatpush1.msra.mxu0 %v186
    %2422 = vmatprep.subr.mxu0 %v191
    %2423 = vmatpush1.msra.mxu0 %v190
    %2424 = vmatprep.subr.mxu0 %v195
    %2425 = vmatpush1.msra.mxu0 %v194
    %2426 = vmatprep.subr.mxu0 0.0
    %2427 = vmatpush1.msra.mxu0 0.0
    %2428 = vmatprep.subr.mxu0 0.0
    %2429 = vmatpush1.msra.mxu0 0.0
    %2430 = vmatprep.subr.mxu0 0.0
    %2431 = vmatpush1.msra.mxu0 0.0
    %2432 = vmatprep.subr.mxu0 0.0
    %2433 = vmatpush1.msra.mxu0 0.0
    %2434 = vmatprep.subr.mxu0 0.0
    %2435 = vmatpush1.msra.mxu0 0.0
    %2436 = vmatprep.subr.mxu0 0.0
    %2437 = vmatpush1.msra.mxu0 0.0
    %2438 = vmatprep.subr.mxu0 0.0
    %2439 = vmatpush1.msra.mxu0 0.0
    %2440 = vmatprep.subr.mxu0 0.0
    %2441 = vmatpush1.msra.mxu0 0.0
    %2442 = vmatprep.subr.mxu0 0.0
    %2443 = vmatpush1.msra.mxu0 0.0
    %2444 = vmatprep.subr.mxu0 0.0
    %2445 = vmatpush1.msra.mxu0 0.0
    %2446 = vmatprep.subr.mxu0 0.0
    %2447 = vmatpush1.msra.mxu0 0.0
    %2448 = vmatprep.subr.mxu0 0.0
    %2449 = vmatpush1.msra.mxu0 0.0
    %2450 = vmatprep.subr.mxu0 0.0
    %2451 = vmatpush1.msra.mxu0 0.0
    %2452 = vmatprep.subr.mxu0 0.0
    %2453 = vmatpush1.msra.mxu0 0.0
    %2454 = vmatprep.subr.mxu0 0.0
    %2455 = vmatpush1.msra.mxu0 0.0
    %2456 = vmatprep.subr.mxu0 0.0
    %2457 = vmatpush1.msra.mxu0 0.0
    %2458 = vmatprep.mubr.f32.mxu0 0.0
    %2459 = vmatmul.mubr.f32.gmra.mrb[0].mxu0 %v2222
    %v2460 = vpop.f32.mrb[0].mxu0
    %v2461 = vadd.f32 0.0, %v2460
    %v2462 = vpop.f32.mrb[0].mxu0
    %v2463 = vadd.f32 0.0, %v2462
    %2464 = vdwg.mxu0
    %2465 = vmatprep.subr.mxu0 %v137
    %2466 = vmatpush1.msra.mxu0 %v136
    %2467 = vmatprep.subr.mxu0 %v141
    %2468 = vmatpush1.msra.mxu0 %v140
    %2469 = vmatprep.subr.mxu0 %v145
    %2470 = vmatpush1.msra.mxu0 %v144
    %2471 = vmatprep.subr.mxu0 %v149
    %2472 = vmatpush1.msra.mxu0 %v148
    %2473 = vmatprep.subr.mxu0 %v153
    %2474 = vmatpush1.msra.mxu0 %v152
    %2475 = vmatprep.subr.mxu0 %v157
    %2476 = vmatpush1.msra.mxu0 %v156
    %2477 = vmatprep.subr.mxu0 %v161
    %2478 = vmatpush1.msra.mxu0 %v160
    %2479 = vmatprep.subr.mxu0 %v165
    %2480 = vmatpush1.msra.mxu0 %v164
    %2481 = vmatprep.subr.mxu0 %v169
    %2482 = vmatpush1.msra.mxu0 %v168
    %2483 = vmatprep.subr.mxu0 %v173
    %2484 = vmatpush1.msra.mxu0 %v172
    %2485 = vmatprep.subr.mxu0 %v177
    %2486 = vmatpush1.msra.mxu0 %v176
    %2487 = vmatprep.subr.mxu0 %v181
    %2488 = vmatpush1.msra.mxu0 %v180
    %2489 = vmatprep.subr.mxu0 %v185
    %2490 = vmatpush1.msra.mxu0 %v184
    %2491 = vmatprep.subr.mxu0 %v189
    %2492 = vmatpush1.msra.mxu0 %v188
    %2493 = vmatprep.subr.mxu0 %v193
    %2494 = vmatpush1.msra.mxu0 %v192
    %2495 = vmatprep.subr.mxu0 %v197
    %2496 = vmatpush1.msra.mxu0 %v196
    %2497 = vmatprep.subr.mxu0 0.0
    %2498 = vmatpush1.msra.mxu0 0.0
    %2499 = vmatprep.subr.mxu0 0.0
    %2500 = vmatpush1.msra.mxu0 0.0
    %2501 = vmatprep.subr.mxu0 0.0
    %2502 = vmatpush1.msra.mxu0 0.0
    %2503 = vmatprep.subr.mxu0 0.0
    %2504 = vmatpush1.msra.mxu0 0.0
    %2505 = vmatprep.subr.mxu0 0.0
    %2506 = vmatpush1.msra.mxu0 0.0
    %2507 = vmatprep.subr.mxu0 0.0
    %2508 = vmatpush1.msra.mxu0 0.0
    %2509 = vmatprep.subr.mxu0 0.0
    %2510 = vmatpush1.msra.mxu0 0.0
    %2511 = vmatprep.subr.mxu0 0.0
    %2512 = vmatpush1.msra.mxu0 0.0
    %2513 = vmatprep.subr.mxu0 0.0
    %2514 = vmatpush1.msra.mxu0 0.0
    %2515 = vmatprep.subr.mxu0 0.0
    %2516 = vmatpush1.msra.mxu0 0.0
    %2517 = vmatprep.subr.mxu0 0.0
    %2518 = vmatpush1.msra.mxu0 0.0
    %2519 = vmatprep.subr.mxu0 0.0
    %2520 = vmatpush1.msra.mxu0 0.0
    %2521 = vmatprep.subr.mxu0 0.0
    %2522 = vmatpush1.msra.mxu0 0.0
    %2523 = vmatprep.subr.mxu0 0.0
    %2524 = vmatpush1.msra.mxu0 0.0
    %2525 = vmatprep.subr.mxu0 0.0
    %2526 = vmatpush1.msra.mxu0 0.0
    %2527 = vmatprep.subr.mxu0 0.0
    %2528 = vmatpush1.msra.mxu0 0.0
    %2529 = vmatprep.mubr.f32.mxu0 0.0
    %2530 = vmatmul.mubr.f32.gmra.mrb[0].mxu0 %v2222
    %v2531 = vpop.f32.mrb[0].mxu0
    %v2532 = vadd.f32 0.0, %v2531
    %v2533 = vpop.f32.mrb[0].mxu0
    %v2534 = vadd.f32 0.0, %v2533
    %2535 = vdwg.mxu0
    %v2536 = vadd.f32 %v2390, %v2461
    %v2537 = vadd.f32 %v2391, %v2463
    %v2538 = vadd.f32 %v2392, %v2532
    %v2539 = vadd.f32 %v2393, %v2534
    %v2540 = vxor.u32 %v2536, 2147483648
    %v2541 = vxor.u32 %v2537, 2147483648
    %v2542 = vxor.u32 %v2539, 2147483648
    %v2543 = vmul.f32 %v2540, 1.442695
    %v2544 = vpow.pop %v2543
    %v2545 = vmul.f32 %v2541, 1.442695
    %v2546 = vpow.pop %v2545
    %v2547 = vmul.f32 %v2542, 1.442695
    %v2548 = vpow.pop %v2547
    %v2549 = vadd.f32 %v2544, 1.0
    %v2550 = vadd.f32 %v2546, 1.0
    %v2551 = vadd.f32 %v2548, 1.0
    %v2552 = vrcp.pop %v2549
    %v2553 = vmul.f32 1.0, %v2552
    %v2554 = vrcp.pop %v2550
    %v2555 = vmul.f32 1.0, %v2554
    %v2556 = vrcp.pop %v2551
    %v2557 = vmul.f32 1.0, %v2556
    %v2558 = vtanh.pop %v2538
    %v2559 = vmul.f32 %v2555, %v2220
    %v2560 = vmul.f32 %v2553, %v2558
    %v2561 = vadd.f32 %v2559, %v2560
    %v2562 = vtanh.pop %v2561
    %v2563 = vmul.f32 %v2557, %v2562
    %2564 = vmatprep.subr.mxu0 %v369
    %2565 = vmatpush1.msra.mxu0 %v368
    %2566 = vmatprep.subr.mxu0 %v373
    %2567 = vmatpush1.msra.mxu0 %v372
    %2568 = vmatprep.subr.mxu0 %v377
    %2569 = vmatpush1.msra.mxu0 %v376
    %2570 = vmatprep.subr.mxu0 %v381
    %2571 = vmatpush1.msra.mxu0 %v380
    %2572 = vmatprep.subr.mxu0 %v385
    %2573 = vmatpush1.msra.mxu0 %v384
    %2574 = vmatprep.subr.mxu0 %v389
    %2575 = vmatpush1.msra.mxu0 %v388
    %2576 = vmatprep.subr.mxu0 %v393
    %2577 = vmatpush1.msra.mxu0 %v392
    %2578 = vmatprep.subr.mxu0 %v397
    %2579 = vmatpush1.msra.mxu0 %v396
    %2580 = vmatprep.subr.mxu0 %v401
    %2581 = vmatpush1.msra.mxu0 %v400
    %2582 = vmatprep.subr.mxu0 %v405
    %2583 = vmatpush1.msra.mxu0 %v404
    %2584 = vmatprep.subr.mxu0 %v409
    %2585 = vmatpush1.msra.mxu0 %v408
    %2586 = vmatprep.subr.mxu0 %v413
    %2587 = vmatpush1.msra.mxu0 %v412
    %2588 = vmatprep.subr.mxu0 %v417
    %2589 = vmatpush1.msra.mxu0 %v416
    %2590 = vmatprep.subr.mxu0 %v421
    %2591 = vmatpush1.msra.mxu0 %v420
    %2592 = vmatprep.subr.mxu0 %v425
    %2593 = vmatpush1.msra.mxu0 %v424
    %2594 = vmatprep.subr.mxu0 %v429
    %2595 = vmatpush1.msra.mxu0 %v428
    %2596 = vmatprep.subr.mxu0 %v433
    %2597 = vmatpush1.msra.mxu0 %v432
    %2598 = vmatprep.subr.mxu0 %v437
    %2599 = vmatpush1.msra.mxu0 %v436
    %2600 = vmatprep.subr.mxu0 %v441
    %2601 = vmatpush1.msra.mxu0 %v440
    %2602 = vmatprep.subr.mxu0 %v445
    %2603 = vmatpush1.msra.mxu0 %v444
    %2604 = vmatprep.subr.mxu0 %v449
    %2605 = vmatpush1.msra.mxu0 %v448
    %2606 = vmatprep.subr.mxu0 %v453
    %2607 = vmatpush1.msra.mxu0 %v452
    %2608 = vmatprep.subr.mxu0 %v457
    %2609 = vmatpush1.msra.mxu0 %v456
    %2610 = vmatprep.subr.mxu0 %v461
    %2611 = vmatpush1.msra.mxu0 %v460
    %2612 = vmatprep.subr.mxu0 %v465
    %2613 = vmatpush1.msra.mxu0 %v464
    %2614 = vmatprep.subr.mxu0 %v469
    %2615 = vmatpush1.msra.mxu0 %v468
    %2616 = vmatprep.subr.mxu0 %v473
    %2617 = vmatpush1.msra.mxu0 %v472
    %2618 = vmatprep.subr.mxu0 %v477
    %2619 = vmatpush1.msra.mxu0 %v476
    %2620 = vmatprep.subr.mxu0 %v481
    %2621 = vmatpush1.msra.mxu0 %v480
    %2622 = vmatprep.subr.mxu0 %v485
    %2623 = vmatpush1.msra.mxu0 %v484
    %2624 = vmatprep.subr.mxu0 %v489
    %2625 = vmatpush1.msra.mxu0 %v488
    %2626 = vmatprep.subr.mxu0 %v493
    %2627 = vmatpush1.msra.mxu0 %v492
    %2628 = vmatprep.mubr.f32.mxu0 %v2388
    %2629 = vmatmul.mubr.f32.gmra.mrb[0].mxu0 %v2563
    %v2630 = vpop.f32.mrb[0].mxu0
    %v2631 = vadd.f32 %v501, %v2630
    %v2632 = vpop.f32.mrb[0].mxu0
    %v2633 = vadd.f32 %v505, %v2632
    %2634 = vdwg.mxu0
    %2635 = vmatprep.subr.mxu0 %v371
    %2636 = vmatpush1.msra.mxu0 %v370
    %2637 = vmatprep.subr.mxu0 %v375
    %2638 = vmatpush1.msra.mxu0 %v374
    %2639 = vmatprep.subr.mxu0 %v379
    %2640 = vmatpush1.msra.mxu0 %v378
    %2641 = vmatprep.subr.mxu0 %v383
    %2642 = vmatpush1.msra.mxu0 %v382
    %2643 = vmatprep.subr.mxu0 %v387
    %2644 = vmatpush1.msra.mxu0 %v386
    %2645 = vmatprep.subr.mxu0 %v391
    %2646 = vmatpush1.msra.mxu0 %v390
    %2647 = vmatprep.subr.mxu0 %v395
    %2648 = vmatpush1.msra.mxu0 %v394
    %2649 = vmatprep.subr.mxu0 %v399
    %2650 = vmatpush1.msra.mxu0 %v398
    %2651 = vmatprep.subr.mxu0 %v403
    %2652 = vmatpush1.msra.mxu0 %v402
    %2653 = vmatprep.subr.mxu0 %v407
    %2654 = vmatpush1.msra.mxu0 %v406
    %2655 = vmatprep.subr.mxu0 %v411
    %2656 = vmatpush1.msra.mxu0 %v410
    %2657 = vmatprep.subr.mxu0 %v415
    %2658 = vmatpush1.msra.mxu0 %v414
    %2659 = vmatprep.subr.mxu0 %v419
    %2660 = vmatpush1.msra.mxu0 %v418
    %2661 = vmatprep.subr.mxu0 %v423
    %2662 = vmatpush1.msra.mxu0 %v422
    %2663 = vmatprep.subr.mxu0 %v427
    %2664 = vmatpush1.msra.mxu0 %v426
    %2665 = vmatprep.subr.mxu0 %v431
    %2666 = vmatpush1.msra.mxu0 %v430
    %2667 = vmatprep.subr.mxu0 %v435
    %2668 = vmatpush1.msra.mxu0 %v434
    %2669 = vmatprep.subr.mxu0 %v439
    %2670 = vmatpush1.msra.mxu0 %v438
    %2671 = vmatprep.subr.mxu0 %v443
    %2672 = vmatpush1.msra.mxu0 %v442
    %2673 = vmatprep.subr.mxu0 %v447
    %2674 = vmatpush1.msra.mxu0 %v446
    %2675 = vmatprep.subr.mxu0 %v451
    %2676 = vmatpush1.msra.mxu0 %v450
    %2677 = vmatprep.subr.mxu0 %v455
    %2678 = vmatpush1.msra.mxu0 %v454
    %2679 = vmatprep.subr.mxu0 %v459
    %2680 = vmatpush1.msra.mxu0 %v458
    %2681 = vmatprep.subr.mxu0 %v463
    %2682 = vmatpush1.msra.mxu0 %v462
    %2683 = vmatprep.subr.mxu0 %v467
    %2684 = vmatpush1.msra.mxu0 %v466
    %2685 = vmatprep.subr.mxu0 %v471
    %2686 = vmatpush1.msra.mxu0 %v470
    %2687 = vmatprep.subr.mxu0 %v475
    %2688 = vmatpush1.msra.mxu0 %v474
    %2689 = vmatprep.subr.mxu0 %v479
    %2690 = vmatpush1.msra.mxu0 %v478
    %2691 = vmatprep.subr.mxu0 %v483
    %2692 = vmatpush1.msra.mxu0 %v482
    %2693 = vmatprep.subr.mxu0 %v487
    %2694 = vmatpush1.msra.mxu0 %v486
    %2695 = vmatprep.subr.mxu0 %v491
    %2696 = vmatpush1.msra.mxu0 %v490
    %2697 = vmatprep.subr.mxu0 %v495
    %2698 = vmatpush1.msra.mxu0 %v494
    %2699 = vmatprep.mubr.f32.mxu0 %v2388
    %2700 = vmatmul.mubr.f32.gmra.mrb[0].mxu0 %v2563
    %v2701 = vpop.f32.mrb[0].mxu0
    %v2702 = vadd.f32 %v509, %v2701
    %v2703 = vpop.f32.mrb[0].mxu0
    %v2704 = vadd.f32 %v513, %v2703
    %2705 = vdwg.mxu0
    %v2706 = vxor.u32 %v2631, 2147483648
    %v2707 = vxor.u32 %v2633, 2147483648
    %v2708 = vxor.u32 %v2704, 2147483648
    %v2709 = vmul.f32 %v2706, 1.442695
    %v2710 = vpow.pop %v2709
    %v2711 = vmul.f32 %v2707, 1.442695
    %v2712 = vpow.pop %v2711
    %v2713 = vmul.f32 %v2708, 1.442695
    %v2714 = vpow.pop %v2713
    %v2715 = vadd.f32 %v2710, 1.0
    %v2716 = vadd.f32 %v2712, 1.0
    %v2717 = vadd.f32 %v2714, 1.0
    %v2718 = vrcp.pop %v2715
    %v2719 = vmul.f32 1.0, %v2718
    %v2720 = vrcp.pop %v2716
    %v2721 = vmul.f32 1.0, %v2720
    %v2722 = vrcp.pop %v2717
    %v2723 = vmul.f32 1.0, %v2722
    %v2724 = vtanh.pop %v2702
    %v2725 = vmul.f32 %v2721, %v2386
    %v2726 = vmul.f32 %v2719, %v2724
    %v2727 = vadd.f32 %v2725, %v2726
    %v2728 = vtanh.pop %v2727
    %v2729 = vmul.f32 %v2723, %v2728
    %s2730 = scalar_lea.vmem [#allocation4], 224
    %v2731 = vld [vmem:[%s2730] sm:$0xff]
    %v2732 = vld [vmem:[%s2730 + $0x8] sm:$0xff]
    %v2733 = vld [vmem:[%s2730 + $0x10] sm:$0xff]
    %v2734 = vld [vmem:[%s2730 + $0x18] sm:$0xff]
    %2735 = vmatprep.subr.mxu0 %v135
    %2736 = vmatpush1.msra.mxu0 %v134
    %2737 = vmatprep.subr.mxu0 %v139
    %2738 = vmatpush1.msra.mxu0 %v138
    %2739 = vmatprep.subr.mxu0 %v143
    %2740 = vmatpush1.msra.mxu0 %v142
    %2741 = vmatprep.subr.mxu0 %v147
    %2742 = vmatpush1.msra.mxu0 %v146
    %2743 = vmatprep.subr.mxu0 %v151
    %2744 = vmatpush1.msra.mxu0 %v150
    %2745 = vmatprep.subr.mxu0 %v155
    %2746 = vmatpush1.msra.mxu0 %v154
    %2747 = vmatprep.subr.mxu0 %v159
    %2748 = vmatpush1.msra.mxu0 %v158
    %2749 = vmatprep.subr.mxu0 %v163
    %2750 = vmatpush1.msra.mxu0 %v162
    %2751 = vmatprep.subr.mxu0 %v167
    %2752 = vmatpush1.msra.mxu0 %v166
    %2753 = vmatprep.subr.mxu0 %v171
    %2754 = vmatpush1.msra.mxu0 %v170
    %2755 = vmatprep.subr.mxu0 %v175
    %2756 = vmatpush1.msra.mxu0 %v174
    %2757 = vmatprep.subr.mxu0 %v179
    %2758 = vmatpush1.msra.mxu0 %v178
    %2759 = vmatprep.subr.mxu0 %v183
    %2760 = vmatpush1.msra.mxu0 %v182
    %2761 = vmatprep.subr.mxu0 %v187
    %2762 = vmatpush1.msra.mxu0 %v186
    %2763 = vmatprep.subr.mxu0 %v191
    %2764 = vmatpush1.msra.mxu0 %v190
    %2765 = vmatprep.subr.mxu0 %v195
    %2766 = vmatpush1.msra.mxu0 %v194
    %2767 = vmatprep.subr.mxu0 0.0
    %2768 = vmatpush1.msra.mxu0 0.0
    %2769 = vmatprep.subr.mxu0 0.0
    %2770 = vmatpush1.msra.mxu0 0.0
    %2771 = vmatprep.subr.mxu0 0.0
    %2772 = vmatpush1.msra.mxu0 0.0
    %2773 = vmatprep.subr.mxu0 0.0
    %2774 = vmatpush1.msra.mxu0 0.0
    %2775 = vmatprep.subr.mxu0 0.0
    %2776 = vmatpush1.msra.mxu0 0.0
    %2777 = vmatprep.subr.mxu0 0.0
    %2778 = vmatpush1.msra.mxu0 0.0
    %2779 = vmatprep.subr.mxu0 0.0
    %2780 = vmatpush1.msra.mxu0 0.0
    %2781 = vmatprep.subr.mxu0 0.0
    %2782 = vmatpush1.msra.mxu0 0.0
    %2783 = vmatprep.subr.mxu0 0.0
    %2784 = vmatpush1.msra.mxu0 0.0
    %2785 = vmatprep.subr.mxu0 0.0
    %2786 = vmatpush1.msra.mxu0 0.0
    %2787 = vmatprep.subr.mxu0 0.0
    %2788 = vmatpush1.msra.mxu0 0.0
    %2789 = vmatprep.subr.mxu0 0.0
    %2790 = vmatpush1.msra.mxu0 0.0
    %2791 = vmatprep.subr.mxu0 0.0
    %2792 = vmatpush1.msra.mxu0 0.0
    %2793 = vmatprep.subr.mxu0 0.0
    %2794 = vmatpush1.msra.mxu0 0.0
    %2795 = vmatprep.subr.mxu0 0.0
    %2796 = vmatpush1.msra.mxu0 0.0
    %2797 = vmatprep.subr.mxu0 0.0
    %2798 = vmatpush1.msra.mxu0 0.0
    %2799 = vmatprep.mubr.f32.mxu0 0.0
    %2800 = vmatmul.mubr.f32.gmra.mrb[0].mxu0 %v2563
    %v2801 = vpop.f32.mrb[0].mxu0
    %v2802 = vadd.f32 0.0, %v2801
    %v2803 = vpop.f32.mrb[0].mxu0
    %v2804 = vadd.f32 0.0, %v2803
    %2805 = vdwg.mxu0
    %2806 = vmatprep.subr.mxu0 %v137
    %2807 = vmatpush1.msra.mxu0 %v136
    %2808 = vmatprep.subr.mxu0 %v141
    %2809 = vmatpush1.msra.mxu0 %v140
    %2810 = vmatprep.subr.mxu0 %v145
    %2811 = vmatpush1.msra.mxu0 %v144
    %2812 = vmatprep.subr.mxu0 %v149
    %2813 = vmatpush1.msra.mxu0 %v148
    %2814 = vmatprep.subr.mxu0 %v153
    %2815 = vmatpush1.msra.mxu0 %v152
    %2816 = vmatprep.subr.mxu0 %v157
    %2817 = vmatpush1.msra.mxu0 %v156
    %2818 = vmatprep.subr.mxu0 %v161
    %2819 = vmatpush1.msra.mxu0 %v160
    %2820 = vmatprep.subr.mxu0 %v165
    %2821 = vmatpush1.msra.mxu0 %v164
    %2822 = vmatprep.subr.mxu0 %v169
    %2823 = vmatpush1.msra.mxu0 %v168
    %2824 = vmatprep.subr.mxu0 %v173
    %2825 = vmatpush1.msra.mxu0 %v172
    %2826 = vmatprep.subr.mxu0 %v177
    %2827 = vmatpush1.msra.mxu0 %v176
    %2828 = vmatprep.subr.mxu0 %v181
    %2829 = vmatpush1.msra.mxu0 %v180
    %2830 = vmatprep.subr.mxu0 %v185
    %2831 = vmatpush1.msra.mxu0 %v184
    %2832 = vmatprep.subr.mxu0 %v189
    %2833 = vmatpush1.msra.mxu0 %v188
    %2834 = vmatprep.subr.mxu0 %v193
    %2835 = vmatpush1.msra.mxu0 %v192
    %2836 = vmatprep.subr.mxu0 %v197
    %2837 = vmatpush1.msra.mxu0 %v196
    %2838 = vmatprep.subr.mxu0 0.0
    %2839 = vmatpush1.msra.mxu0 0.0
    %2840 = vmatprep.subr.mxu0 0.0
    %2841 = vmatpush1.msra.mxu0 0.0
    %2842 = vmatprep.subr.mxu0 0.0
    %2843 = vmatpush1.msra.mxu0 0.0
    %2844 = vmatprep.subr.mxu0 0.0
    %2845 = vmatpush1.msra.mxu0 0.0
    %2846 = vmatprep.subr.mxu0 0.0
    %2847 = vmatpush1.msra.mxu0 0.0
    %2848 = vmatprep.subr.mxu0 0.0
    %2849 = vmatpush1.msra.mxu0 0.0
    %2850 = vmatprep.subr.mxu0 0.0
    %2851 = vmatpush1.msra.mxu0 0.0
    %2852 = vmatprep.subr.mxu0 0.0
    %2853 = vmatpush1.msra.mxu0 0.0
    %2854 = vmatprep.subr.mxu0 0.0
    %2855 = vmatpush1.msra.mxu0 0.0
    %2856 = vmatprep.subr.mxu0 0.0
    %2857 = vmatpush1.msra.mxu0 0.0
    %2858 = vmatprep.subr.mxu0 0.0
    %2859 = vmatpush1.msra.mxu0 0.0
    %2860 = vmatprep.subr.mxu0 0.0
    %2861 = vmatpush1.msra.mxu0 0.0
    %2862 = vmatprep.subr.mxu0 0.0
    %2863 = vmatpush1.msra.mxu0 0.0
    %2864 = vmatprep.subr.mxu0 0.0
    %2865 = vmatpush1.msra.mxu0 0.0
    %2866 = vmatprep.subr.mxu0 0.0
    %2867 = vmatpush1.msra.mxu0 0.0
    %2868 = vmatprep.subr.mxu0 0.0
    %2869 = vmatpush1.msra.mxu0 0.0
    %2870 = vmatprep.mubr.f32.mxu0 0.0
    %2871 = vmatmul.mubr.f32.gmra.mrb[0].mxu0 %v2563
    %v2872 = vpop.f32.mrb[0].mxu0
    %v2873 = vadd.f32 0.0, %v2872
    %v2874 = vpop.f32.mrb[0].mxu0
    %v2875 = vadd.f32 0.0, %v2874
    %2876 = vdwg.mxu0
    %v2877 = vadd.f32 %v2731, %v2802
    %v2878 = vadd.f32 %v2732, %v2804
    %v2879 = vadd.f32 %v2733, %v2873
    %v2880 = vadd.f32 %v2734, %v2875
    %v2881 = vxor.u32 %v2877, 2147483648
    %v2882 = vxor.u32 %v2878, 2147483648
    %v2883 = vxor.u32 %v2880, 2147483648
    %v2884 = vmul.f32 %v2881, 1.442695
    %v2885 = vpow.pop %v2884
    %v2886 = vmul.f32 %v2882, 1.442695
    %v2887 = vpow.pop %v2886
    %v2888 = vmul.f32 %v2883, 1.442695
    %v2889 = vpow.pop %v2888
    %v2890 = vadd.f32 %v2885, 1.0
    %v2891 = vadd.f32 %v2887, 1.0
    %v2892 = vadd.f32 %v2889, 1.0
    %v2893 = vrcp.pop %v2890
    %v2894 = vmul.f32 1.0, %v2893
    %v2895 = vrcp.pop %v2891
    %v2896 = vmul.f32 1.0, %v2895
    %v2897 = vrcp.pop %v2892
    %v2898 = vmul.f32 1.0, %v2897
    %v2899 = vtanh.pop %v2879
    %v2900 = vmul.f32 %v2896, %v2561
    %v2901 = vmul.f32 %v2894, %v2899
    %v2902 = vadd.f32 %v2900, %v2901
    %v2903 = vtanh.pop %v2902
    %v2904 = vmul.f32 %v2898, %v2903
    %2905 = vmatprep.subr.mxu0 %v369
    %2906 = vmatpush1.msra.mxu0 %v368
    %2907 = vmatprep.subr.mxu0 %v373
    %2908 = vmatpush1.msra.mxu0 %v372
    %2909 = vmatprep.subr.mxu0 %v377
    %2910 = vmatpush1.msra.mxu0 %v376
    %2911 = vmatprep.subr.mxu0 %v381
    %2912 = vmatpush1.msra.mxu0 %v380
    %2913 = vmatprep.subr.mxu0 %v385
    %2914 = vmatpush1.msra.mxu0 %v384
    %2915 = vmatprep.subr.mxu0 %v389
    %2916 = vmatpush1.msra.mxu0 %v388
    %2917 = vmatprep.subr.mxu0 %v393
    %2918 = vmatpush1.msra.mxu0 %v392
    %2919 = vmatprep.subr.mxu0 %v397
    %2920 = vmatpush1.msra.mxu0 %v396
    %2921 = vmatprep.subr.mxu0 %v401
    %2922 = vmatpush1.msra.mxu0 %v400
    %2923 = vmatprep.subr.mxu0 %v405
    %2924 = vmatpush1.msra.mxu0 %v404
    %2925 = vmatprep.subr.mxu0 %v409
    %2926 = vmatpush1.msra.mxu0 %v408
    %2927 = vmatprep.subr.mxu0 %v413
    %2928 = vmatpush1.msra.mxu0 %v412
    %2929 = vmatprep.subr.mxu0 %v417
    %2930 = vmatpush1.msra.mxu0 %v416
    %2931 = vmatprep.subr.mxu0 %v421
    %2932 = vmatpush1.msra.mxu0 %v420
    %2933 = vmatprep.subr.mxu0 %v425
    %2934 = vmatpush1.msra.mxu0 %v424
    %2935 = vmatprep.subr.mxu0 %v429
    %2936 = vmatpush1.msra.mxu0 %v428
    %2937 = vmatprep.subr.mxu0 %v433
    %2938 = vmatpush1.msra.mxu0 %v432
    %2939 = vmatprep.subr.mxu0 %v437
    %2940 = vmatpush1.msra.mxu0 %v436
    %2941 = vmatprep.subr.mxu0 %v441
    %2942 = vmatpush1.msra.mxu0 %v440
    %2943 = vmatprep.subr.mxu0 %v445
    %2944 = vmatpush1.msra.mxu0 %v444
    %2945 = vmatprep.subr.mxu0 %v449
    %2946 = vmatpush1.msra.mxu0 %v448
    %2947 = vmatprep.subr.mxu0 %v453
    %2948 = vmatpush1.msra.mxu0 %v452
    %2949 = vmatprep.subr.mxu0 %v457
    %2950 = vmatpush1.msra.mxu0 %v456
    %2951 = vmatprep.subr.mxu0 %v461
    %2952 = vmatpush1.msra.mxu0 %v460
    %2953 = vmatprep.subr.mxu0 %v465
    %2954 = vmatpush1.msra.mxu0 %v464
    %2955 = vmatprep.subr.mxu0 %v469
    %2956 = vmatpush1.msra.mxu0 %v468
    %2957 = vmatprep.subr.mxu0 %v473
    %2958 = vmatpush1.msra.mxu0 %v472
    %2959 = vmatprep.subr.mxu0 %v477
    %2960 = vmatpush1.msra.mxu0 %v476
    %2961 = vmatprep.subr.mxu0 %v481
    %2962 = vmatpush1.msra.mxu0 %v480
    %2963 = vmatprep.subr.mxu0 %v485
    %2964 = vmatpush1.msra.mxu0 %v484
    %2965 = vmatprep.subr.mxu0 %v489
    %2966 = vmatpush1.msra.mxu0 %v488
    %2967 = vmatprep.subr.mxu0 %v493
    %2968 = vmatpush1.msra.mxu0 %v492
    %2969 = vmatprep.mubr.f32.mxu0 %v2729
    %2970 = vmatmul.mubr.f32.gmra.mrb[0].mxu0 %v2904
    %v2971 = vpop.f32.mrb[0].mxu0
    %v2972 = vadd.f32 %v501, %v2971
    %v2973 = vpop.f32.mrb[0].mxu0
    %v2974 = vadd.f32 %v505, %v2973
    %2975 = vdwg.mxu0
    %2976 = vmatprep.subr.mxu0 %v371
    %2977 = vmatpush1.msra.mxu0 %v370
    %2978 = vmatprep.subr.mxu0 %v375
    %2979 = vmatpush1.msra.mxu0 %v374
    %2980 = vmatprep.subr.mxu0 %v379
    %2981 = vmatpush1.msra.mxu0 %v378
    %2982 = vmatprep.subr.mxu0 %v383
    %2983 = vmatpush1.msra.mxu0 %v382
    %2984 = vmatprep.subr.mxu0 %v387
    %2985 = vmatpush1.msra.mxu0 %v386
    %2986 = vmatprep.subr.mxu0 %v391
    %2987 = vmatpush1.msra.mxu0 %v390
    %2988 = vmatprep.subr.mxu0 %v395
    %2989 = vmatpush1.msra.mxu0 %v394
    %2990 = vmatprep.subr.mxu0 %v399
    %2991 = vmatpush1.msra.mxu0 %v398
    %2992 = vmatprep.subr.mxu0 %v403
    %2993 = vmatpush1.msra.mxu0 %v402
    %2994 = vmatprep.subr.mxu0 %v407
    %2995 = vmatpush1.msra.mxu0 %v406
    %2996 = vmatprep.subr.mxu0 %v411
    %2997 = vmatpush1.msra.mxu0 %v410
    %2998 = vmatprep.subr.mxu0 %v415
    %2999 = vmatpush1.msra.mxu0 %v414
    %3000 = vmatprep.subr.mxu0 %v419
    %3001 = vmatpush1.msra.mxu0 %v418
    %3002 = vmatprep.subr.mxu0 %v423
    %3003 = vmatpush1.msra.mxu0 %v422
    %3004 = vmatprep.subr.mxu0 %v427
    %3005 = vmatpush1.msra.mxu0 %v426
    %3006 = vmatprep.subr.mxu0 %v431
    %3007 = vmatpush1.msra.mxu0 %v430
    %3008 = vmatprep.subr.mxu0 %v435
    %3009 = vmatpush1.msra.mxu0 %v434
    %3010 = vmatprep.subr.mxu0 %v439
    %3011 = vmatpush1.msra.mxu0 %v438
    %3012 = vmatprep.subr.mxu0 %v443
    %3013 = vmatpush1.msra.mxu0 %v442
    %3014 = vmatprep.subr.mxu0 %v447
    %3015 = vmatpush1.msra.mxu0 %v446
    %3016 = vmatprep.subr.mxu0 %v451
    %3017 = vmatpush1.msra.mxu0 %v450
    %3018 = vmatprep.subr.mxu0 %v455
    %3019 = vmatpush1.msra.mxu0 %v454
    %3020 = vmatprep.subr.mxu0 %v459
    %3021 = vmatpush1.msra.mxu0 %v458
    %3022 = vmatprep.subr.mxu0 %v463
    %3023 = vmatpush1.msra.mxu0 %v462
    %3024 = vmatprep.subr.mxu0 %v467
    %3025 = vmatpush1.msra.mxu0 %v466
    %3026 = vmatprep.subr.mxu0 %v471
    %3027 = vmatpush1.msra.mxu0 %v470
    %3028 = vmatprep.subr.mxu0 %v475
    %3029 = vmatpush1.msra.mxu0 %v474
    %3030 = vmatprep.subr.mxu0 %v479
    %3031 = vmatpush1.msra.mxu0 %v478
    %3032 = vmatprep.subr.mxu0 %v483
    %3033 = vmatpush1.msra.mxu0 %v482
    %3034 = vmatprep.subr.mxu0 %v487
    %3035 = vmatpush1.msra.mxu0 %v486
    %3036 = vmatprep.subr.mxu0 %v491
    %3037 = vmatpush1.msra.mxu0 %v490
    %3038 = vmatprep.subr.mxu0 %v495
    %3039 = vmatpush1.msra.mxu0 %v494
    %3040 = vmatprep.mubr.f32.mxu0 %v2729
    %3041 = vmatmul.mubr.f32.gmra.mrb[0].mxu0 %v2904
    %v3042 = vpop.f32.mrb[0].mxu0
    %v3043 = vadd.f32 %v509, %v3042
    %v3044 = vpop.f32.mrb[0].mxu0
    %v3045 = vadd.f32 %v513, %v3044
    %3046 = vdwg.mxu0
    %v3047 = vxor.u32 %v2972, 2147483648
    %v3048 = vxor.u32 %v2974, 2147483648
    %v3049 = vxor.u32 %v3045, 2147483648
    %v3050 = vmul.f32 %v3047, 1.442695
    %v3051 = vpow.pop %v3050
    %v3052 = vmul.f32 %v3048, 1.442695
    %v3053 = vpow.pop %v3052
    %v3054 = vmul.f32 %v3049, 1.442695
    %v3055 = vpow.pop %v3054
    %v3056 = vadd.f32 %v3051, 1.0
    %v3057 = vadd.f32 %v3053, 1.0
    %v3058 = vadd.f32 %v3055, 1.0
    %v3059 = vrcp.pop %v3056
    %v3060 = vmul.f32 1.0, %v3059
    %v3061 = vrcp.pop %v3057
    %v3062 = vmul.f32 1.0, %v3061
    %v3063 = vrcp.pop %v3058
    %v3064 = vmul.f32 1.0, %v3063
    %v3065 = vtanh.pop %v3043
    %v3066 = vmul.f32 %v3062, %v2727
    %v3067 = vmul.f32 %v3060, %v3065
    %v3068 = vadd.f32 %v3066, %v3067
    %v3069 = vtanh.pop %v3068
    %v3070 = vmul.f32 %v3064, %v3069
    %3071 = vst [vmem:[#allocation2] sm:$0xff] %v2904
    %3072 = vst [vmem:[#allocation3] sm:$0xff] %v2902
    %3073 = vst [vmem:[%s125] sm:$0xff] %v3070
    %3074 = vst [vmem:[%s128] sm:$0xff] %v3068
    %v3075 = vld [vmem:[#allocation13] sm:$0xff]
    %v3076 = vld [vmem:[#allocation13 + $0x8] sm:$0xff]
    %v3077 = vld [vmem:[#allocation13 + $0x10] sm:$0xff]
    %v3078 = vld [vmem:[#allocation13 + $0x18] sm:$0xff]
    %v3079 = vld [vmem:[#allocation13 + $0x20] sm:$0xff]
    %v3080 = vld [vmem:[#allocation13 + $0x28] sm:$0xff]
    %v3081 = vld [vmem:[#allocation13 + $0x30] sm:$0xff]
    %v3082 = vld [vmem:[#allocation13 + $0x38] sm:$0xff]
    %v3083 = vld [vmem:[#allocation13 + $0x40] sm:$0xff]
    %v3084 = vld [vmem:[#allocation13 + $0x48] sm:$0xff]
    %v3085 = vld [vmem:[#allocation13 + $0x50] sm:$0xff]
    %v3086 = vld [vmem:[#allocation13 + $0x58] sm:$0xff]
    %v3087 = vld [vmem:[#allocation13 + $0x60] sm:$0xff]
    %v3088 = vld [vmem:[#allocation13 + $0x68] sm:$0xff]
    %v3089 = vld [vmem:[#allocation13 + $0x70] sm:$0xff]
    %v3090 = vld [vmem:[#allocation13 + $0x78] sm:$0xff]
    %v3091 = vld [vmem:[%s7] sm:$0x1]
    %v3093 = vlaneseq
    %v3094 = vshrl.u32 %v3093, 7
    %v3095 = vsub.s32 0, %v3094
    %v3096 = vrot.slane %v3091, %v3095
    %3098 = vmatprep.subr.mxu0 0.0
    %3099 = vmatpush1.msra.mxu0 %v3075
    %3100 = vmatprep.subr.mxu0 0.0
    %3101 = vmatpush1.msra.mxu0 %v3076
    %3102 = vmatprep.subr.mxu0 0.0
    %3103 = vmatpush1.msra.mxu0 %v3077
    %3104 = vmatprep.subr.mxu0 0.0
    %3105 = vmatpush1.msra.mxu0 %v3078
    %3106 = vmatprep.subr.mxu0 0.0
    %3107 = vmatpush1.msra.mxu0 %v3079
    %3108 = vmatprep.subr.mxu0 0.0
    %3109 = vmatpush1.msra.mxu0 %v3080
    %3110 = vmatprep.subr.mxu0 0.0
    %3111 = vmatpush1.msra.mxu0 %v3081
    %3112 = vmatprep.subr.mxu0 0.0
    %3113 = vmatpush1.msra.mxu0 %v3082
    %3114 = vmatprep.subr.mxu0 0.0
    %3115 = vmatpush1.msra.mxu0 %v3083
    %3116 = vmatprep.subr.mxu0 0.0
    %3117 = vmatpush1.msra.mxu0 %v3084
    %3118 = vmatprep.subr.mxu0 0.0
    %3119 = vmatpush1.msra.mxu0 %v3085
    %3120 = vmatprep.subr.mxu0 0.0
    %3121 = vmatpush1.msra.mxu0 %v3086
    %3122 = vmatprep.subr.mxu0 0.0
    %3123 = vmatpush1.msra.mxu0 %v3087
    %3124 = vmatprep.subr.mxu0 0.0
    %3125 = vmatpush1.msra.mxu0 %v3088
    %3126 = vmatprep.subr.mxu0 0.0
    %3127 = vmatpush1.msra.mxu0 %v3089
    %3128 = vmatprep.subr.mxu0 0.0
    %3129 = vmatpush1.msra.mxu0 %v3090
    %3130 = vmatprep.subr.mxu0 0.0
    %3131 = vmatpush1.msra.mxu0 0.0
    %3132 = vmatprep.subr.mxu0 0.0
    %3133 = vmatpush1.msra.mxu0 0.0
    %3134 = vmatprep.subr.mxu0 0.0
    %3135 = vmatpush1.msra.mxu0 0.0
    %3136 = vmatprep.subr.mxu0 0.0
    %3137 = vmatpush1.msra.mxu0 0.0
    %3138 = vmatprep.subr.mxu0 0.0
    %3139 = vmatpush1.msra.mxu0 0.0
    %3140 = vmatprep.subr.mxu0 0.0
    %3141 = vmatpush1.msra.mxu0 0.0
    %3142 = vmatprep.subr.mxu0 0.0
    %3143 = vmatpush1.msra.mxu0 0.0
    %3144 = vmatprep.subr.mxu0 0.0
    %3145 = vmatpush1.msra.mxu0 0.0
    %3146 = vmatprep.subr.mxu0 0.0
    %3147 = vmatpush1.msra.mxu0 0.0
    %3148 = vmatprep.subr.mxu0 0.0
    %3149 = vmatpush1.msra.mxu0 0.0
    %3150 = vmatprep.subr.mxu0 0.0
    %3151 = vmatpush1.msra.mxu0 0.0
    %3152 = vmatprep.subr.mxu0 0.0
    %3153 = vmatpush1.msra.mxu0 0.0
    %3154 = vmatprep.subr.mxu0 0.0
    %3155 = vmatpush1.msra.mxu0 0.0
    %3156 = vmatprep.subr.mxu0 0.0
    %3157 = vmatpush1.msra.mxu0 0.0
    %3158 = vmatprep.subr.mxu0 0.0
    %3159 = vmatpush1.msra.mxu0 0.0
    %3160 = vmatprep.subr.mxu0 0.0
    %3161 = vmatpush1.msra.mxu0 0.0
    %3162 = vmatprep.mubr.f32.mxu0 0.0
    %3163 = vmatmul.mubr.f32.gmra.mrb[0].mxu0 %v3070
    %v3164 = vpop.f32.mrb[0].mxu0
    %v3165 = vadd.f32 %v3096, %v3164
    %v3166 = vpop.f32.mrb[0].mxu0
    %3167 = vdwg.mxu0
    %v3168 = vxor.u32 %v3165, 2147483648
    %v3169 = vmul.f32 %v3168, 1.442695
    %v3170 = vpow.pop %v3169
    %v3171 = vadd.f32 %v3170, 1.0
    %v3172 = vrcp.pop %v3171
    %v3173 = vmul.f32 1.0, %v3172
    %3174 = vst [vmem:[#allocation15] sm:$0xff] %v3173
    // Predicated region
    $region62: #{tpu_custom_call.1} parent=1 // pred_check
      _
    $region63: #{tpu_custom_call.1} parent=1 // pred_check_branch
      %3176 = sbr.rel (0) target = $region65
    $region64: #{tpu_custom_call.1} parent=1 // pred_region
      %s3178 = ssub.s32 128, 128
      %3179 = vsyncadd [#allocation6], %s3178
      %s3181 = sshll.u32 [#allocation15], 4
      %s3182 = int_to_ptr.vmem [resolvable:$true] %s3181
      %3184 = dma.vmem_to_hbm [thread:$0]  %s3182, 128, %s8, [#allocation6]
    $region65: #{tpu_custom_call.1} parent=1 // pred_fallthru
      _
    // Predicated region
    $region66: #{tpu_custom_call.1} parent=1 // pred_check
      _
    $region67: #{tpu_custom_call.1} parent=1 // pred_check_branch
      %3186 = sbr.rel (0) target = $region69
    $region68: #{tpu_custom_call.1} parent=1 // pred_region
      %3187 = dma.done [#allocation6], 128
    $region69: #{tpu_custom_call.1} parent=1 // pred_fallthru
      _
    %3188 = vsyncpa [#allocation5], 1
    %3189 = vsyncpa [#allocation8], 1
    %3190 = vsyncpa [#allocation11], 1
    %3191 = vsyncpa [#allocation14], 1
    %3192 = vsyncpa [#allocation6], 1

</llo_original>
